<compile_context>
chip_gen: v5e
topology: v5e:2x2
jax: 0.10.0
libtpu: 0.0.40
codegen_flags: <defaults>
</compile_context>

<pallas_src>
import functools

import numpy as np
import jax
import jax.numpy as jnp
from jax.experimental import pallas as pl
from jax.experimental.pallas import tpu as pltpu


def _round_up(x, m):
    return ((x + m - 1) // m) * m


def _fused_enc_dec_kernel(xe_ref, xd_ref,
                          wih_e_ref, whh_e_ref, b_e_ref,
                          wih_dy_ref, wih_dx_ref, whh_d_ref, b_d_ref,
                          whh_d_eff_ref, b_d_eff_ref,
                          wout_ref, bout_ref,
                          out_ref,
                          xproj_e_scr, xproj_d_scr,
                          *, S, B, T, H):
    """Fused encoder LSTM + autoregressive decoder (gate order i, f, o, g; H = padded hidden).

    xe_ref       : (S*B, Fe_p)   encoder input, time-major flattened (row = t*B + b), lane-padded
    xd_ref       : (T*B, Fd_p)   known decoder inputs, time-major flattened, lane-padded
    wih_e_ref    : (Fe_p, 4H)    encoder W_ih^T
    whh_e_ref    : (H, 4H)       encoder W_hh^T
    b_e_ref      : (1, 4H)       encoder b_ih + b_hh
    wih_dy_ref   : (1, 4H)       decoder W_ih^T row for the fed-back scalar y_prev
    wih_dx_ref   : (Fd_p, 4H)    decoder W_ih^T rows for the known decoder features
    whh_d_ref    : (H, 4H)       decoder W_hh^T                  (used for step 0 only)
    b_d_ref      : (1, 4H)       decoder b_ih + b_hh             (used for step 0 only)
    whh_d_eff_ref: (H, 4H)       W_hh^T + W_out^T @ W_ih_y       (steps i >= 1, head folded in)
    b_d_eff_ref  : (1, 4H)       b_dec + b_out * W_ih_y          (steps i >= 1)
    wout_ref     : (H, 1)        Linear(H, 1) weight^T
    bout_ref     : (1, 1)        Linear bias
    out_ref      : (B, T)        autoregressive outputs
    """

    def lstm_cell(gates, c):
        # Gate layout (i, f, o, g): one sigmoid over the first 3 gate blocks, one tanh over the
        # last -> half the EUP element work of a full sigmoid+tanh over all 4H columns.
        # With H padded to a lane multiple, every slice below is a whole-vreg, lane-aligned
        # extract (no XLU rotates on the serial chain).
        sig = jax.nn.sigmoid(gates[:, 0:3 * H])
        g_g = jnp.tanh(gates[:, 3 * H:4 * H])
        i_g = sig[:, 0 * H:1 * H]
        f_g = sig[:, 1 * H:2 * H]
        o_g = sig[:, 2 * H:3 * H]
        c_new = f_g * c + i_g * g_g
        h_new = o_g * jnp.tanh(c_new)
        return h_new, c_new

    # ---------------- Hoisted input projections (off the serial chain) ----------------
    # One MXU matmul for all S encoder steps and one for all T decoder steps; results live in
    # VMEM scratch (not as giant live SSA values) to bound vreg pressure across the unroll.
    xproj_e_scr[...] = (jnp.dot(xe_ref[...], wih_e_ref[...],
                                preferred_element_type=jnp.float32) + b_e_ref[...])
    xproj_d_scr[...] = jnp.dot(xd_ref[...], wih_dx_ref[...],
                               preferred_element_type=jnp.float32)

    # ---------------- Encoder LSTM (zero initial state) ----------------
    h = jnp.zeros((B, H), jnp.float32)
    c = jnp.zeros((B, H), jnp.float32)
    for t in range(S):  # fully unrolled; only h @ W_hh stays on the serial chain
        gates = xproj_e_scr[t * B:(t + 1) * B, :] + jnp.dot(
            h, whh_e_ref[...], preferred_element_type=jnp.float32)
        h, c = lstm_cell(gates, c)

    # ---------------- Autoregressive decoder ----------------
    hs = []

    # Step 0: un-folded weights + explicit y_prev = input_seq[:, -1, 0:1] feedback term.
    y0 = xe_ref[(S - 1) * B:S * B, 0:1]                                   # (B, 1)
    gates = (xproj_d_scr[0:B, :] + b_d_ref[...] + y0 * wih_dy_ref[...]
             + jnp.dot(h, whh_d_ref[...], preferred_element_type=jnp.float32))
    h, c = lstm_cell(gates, c)
    hs.append(h)

    # Steps i >= 1: output head folded into the recurrent weight -> one dependent MXU op/step,
    # no per-step y_prev computation or broadcast on the chain.
    for i in range(1, T):
        gates = (xproj_d_scr[i * B:(i + 1) * B, :] + b_d_eff_ref[...]
                 + jnp.dot(h, whh_d_eff_ref[...], preferred_element_type=jnp.float32))
        h, c = lstm_cell(gates, c)
        hs.append(h)

    # Output head applied once, entirely off the recurrent chain; single store of all T columns.
    wout = wout_ref[...]
    bout = bout_ref[...]
    ys = [jnp.dot(hi, wout, preferred_element_type=jnp.float32) + bout for hi in hs]
    out_ref[...] = jnp.concatenate(ys, axis=1)                            # (B, T), one store


def _prepare_kernel_params(params):
    """Permute gate columns (i,f,g,o)->(i,f,o,g), pad H and feature dims to lane multiples,
    and fold the output head into the decoder recurrent weight for steps i >= 1."""
    H = params["whh_enc_t"].shape[0]
    Hp = _round_up(H, 128)
    Fe_p = _round_up(params["wih_enc_t"].shape[0], 128)
    Fd_p = _round_up(params["wih_dec_x"].shape[0], 128)

    def permute(w):                      # (..., 4H) gate columns (i,f,g,o) -> (i,f,o,g)
        i, f, g, o = jnp.split(w, 4, axis=-1)
        return jnp.concatenate([i, f, o, g], axis=-1)

    def pad_gate_cols(w):                # pad each gate block H -> Hp
        parts = jnp.split(w, 4, axis=-1)
        pad = [(0, 0)] * (w.ndim - 1) + [(0, Hp - H)]
        return jnp.concatenate([jnp.pad(p, pad) for p in parts], axis=-1)

    def pad_rows(w, rows):
        return jnp.pad(w, ((0, rows - w.shape[0]), (0, 0)))

    prep = lambda w: pad_gate_cols(permute(w.astype(jnp.float32)))

    wih_e = pad_rows(prep(params["wih_enc_t"]), Fe_p)        # (Fe_p, 4Hp)
    whh_e = pad_rows(prep(params["whh_enc_t"]), Hp)          # (Hp, 4Hp)
    b_e = prep(params["b_enc"])                              # (1, 4Hp)
    wih_dy = prep(params["wih_dec_y"])                       # (1, 4Hp)
    wih_dx = pad_rows(prep(params["wih_dec_x"]), Fd_p)       # (Fd_p, 4Hp)
    whh_d = pad_rows(prep(params["whh_dec_t"]), Hp)          # (Hp, 4Hp)
    b_d = prep(params["b_dec"])                              # (1, 4Hp)
    wout = pad_rows(params["wout_t"].astype(jnp.float32), Hp)  # (Hp, 1)
    bout = params["b_out"].astype(jnp.float32)               # (1, 1)

    # Fold Linear head feedback into the recurrence (valid for decoder steps i >= 1).
    whh_d_eff = whh_d + wout @ wih_dy                        # (Hp, 4Hp)
    b_d_eff = b_d + bout * wih_dy                            # (1, 4Hp)

    return dict(wih_enc_t=wih_e, whh_enc_t=whh_e, b_enc=b_e,
                wih_dec_y=wih_dy, wih_dec_x=wih_dx, whh_dec_t=whh_d, b_dec=b_d,
                whh_dec_eff=whh_d_eff, b_dec_eff=b_d_eff,
                wout_t=wout, b_out=bout, Hp=Hp, Fe_p=Fe_p, Fd_p=Fd_p)


def encoder_decoder_forward(params, xb, yb=None):
    """Pallas equivalent of EncoderDecoderWrapper.forward(xb, yb=None) (decoder_input=True).

    xb = [input_seq (B, S, F_enc), decoder_input (B, T, F_dec)].
    Returns outputs of shape (B, T) (== (B, output_size)).
    """
    del yb  # TODO(synk): stochastic teacher forcing not implemented (yb=None path only).
    x_enc, x_dec = xb[0], xb[-1]
    B, S, _ = x_enc.shape
    _, T, _ = x_dec.shape
    B_p = _round_up(B, 8)  # pad batch to a sublane multiple -> vreg-aligned slices in-kernel

    kp = _prepare_kernel_params(params)
    Hp, Fe_p, Fd_p = kp["Hp"], kp["Fe_p"], kp["Fd_p"]

    def to_time_major_flat(a, feat_pad):
        a = jnp.transpose(a.astype(jnp.float32), (1, 0, 2))              # (steps, B, feat)
        a = jnp.pad(a, ((0, 0), (0, B_p - a.shape[1]), (0, feat_pad - a.shape[2])))
        return a.reshape(a.shape[0] * B_p, feat_pad)

    xe = to_time_major_flat(x_enc, Fe_p)     # (S*B_p, Fe_p)
    xd = to_time_major_flat(x_dec, Fd_p)     # (T*B_p, Fd_p)

    vmem = pl.BlockSpec(memory_space=pltpu.MemorySpace.VMEM)
    out = pl.pallas_call(
        functools.partial(_fused_enc_dec_kernel, S=S, B=B_p, T=T, H=Hp),
        out_shape=jax.ShapeDtypeStruct((B_p, T), jnp.float32),
        in_specs=[vmem] * 13,
        out_specs=vmem,
        scratch_shapes=[pltpu.VMEM((S * B_p, 4 * Hp), jnp.float32),
                        pltpu.VMEM((T * B_p, 4 * Hp), jnp.float32)],
    )(xe, xd,
      kp["wih_enc_t"], kp["whh_enc_t"], kp["b_enc"],
      kp["wih_dec_y"], kp["wih_dec_x"], kp["whh_dec_t"], kp["b_dec"],
      kp["whh_dec_eff"], kp["b_dec_eff"],
      kp["wout_t"], kp["b_out"])
    return out[:B]


def encoder_decoder_reference(params, xb):
    """Pure-JAX reference with the exact PyTorch-loop structure (no Pallas, no fold/padding)."""
    x_enc, x_dec = xb[0], xb[-1]
    B, S, _ = x_enc.shape
    _, T, _ = x_dec.shape
    H = params["whh_enc_t"].shape[0]

    def lstm_step(x, h, c, wih_t, whh_t, b):
        gates = x @ wih_t + h @ whh_t + b
        ig = jax.nn.sigmoid(gates[:, 0 * H:1 * H])
        fg = jax.nn.sigmoid(gates[:, 1 * H:2 * H])
        gg = jnp.tanh(gates[:, 2 * H:3 * H])
        og = jax.nn.sigmoid(gates[:, 3 * H:4 * H])
        c = fg * c + ig * gg
        h = og * jnp.tanh(c)
        return h, c

    h = jnp.zeros((B, H), jnp.float32)
    c = jnp.zeros((B, H), jnp.float32)
    for t in range(S):
        h, c = lstm_step(x_enc[:, t, :], h, c,
                         params["wih_enc_t"], params["whh_enc_t"], params["b_enc"])

    wih_dec_t = jnp.concatenate([params["wih_dec_y"], params["wih_dec_x"]], axis=0)
    y_prev = x_enc[:, -1, 0:1]
    outs = []
    for i in range(T):
        step_in = jnp.concatenate([y_prev, x_dec[:, i, :]], axis=1)
        h, c = lstm_step(step_in, h, c, wih_dec_t, params["whh_dec_t"], params["b_dec"])
        y_prev = h @ params["wout_t"] + params["b_out"]
        outs.append(y_prev)
    return jnp.concatenate(outs, axis=1)   # (B, T)


def init_params(key, n_features_enc, n_features_dec, hidden, dtype=jnp.float32):
    """Deterministic synthetic parameters matching nn.LSTM / nn.Linear shapes (gate order i,f,g,o)."""
    k = 1.0 / np.sqrt(hidden)
    ks = jax.random.split(key, 10)
    w_ih_e = jax.random.uniform(ks[0], (4 * hidden, n_features_enc), dtype, -k, k)
    w_hh_e = jax.random.uniform(ks[1], (4 * hidden, hidden), dtype, -k, k)
    b_ih_e = jax.random.uniform(ks[2], (4 * hidden,), dtype, -k, k)
    b_hh_e = jax.random.uniform(ks[3], (4 * hidden,), dtype, -k, k)
    w_ih_d = jax.random.uniform(ks[4], (4 * hidden, 1 + n_features_dec), dtype, -k, k)
    w_hh_d = jax.random.uniform(ks[5], (4 * hidden, hidden), dtype, -k, k)
    b_ih_d = jax.random.uniform(ks[6], (4 * hidden,), dtype, -k, k)
    b_hh_d = jax.random.uniform(ks[7], (4 * hidden,), dtype, -k, k)
    w_out = jax.random.uniform(ks[8], (1, hidden), dtype, -k, k)
    b_out = jax.random.uniform(ks[9], (1,), dtype, -k, k)
    wih_d_t = jnp.asarray(w_ih_d.T)                          # (1+F_dec, 4H)
    return dict(
        wih_enc_t=jnp.asarray(w_ih_e.T),                     # (F_enc, 4H)
        whh_enc_t=jnp.asarray(w_hh_e.T),                     # (H, 4H)
        b_enc=jnp.asarray((b_ih_e + b_hh_e)[None, :]),       # (1, 4H)
        wih_dec_y=wih_d_t[0:1, :],                           # (1, 4H)   row for y_prev
        wih_dec_x=wih_d_t[1:, :],                            # (F_dec, 4H)
        whh_dec_t=jnp.asarray(w_hh_d.T),                     # (H, 4H)
        b_dec=jnp.asarray((b_ih_d + b_hh_d)[None, :]),       # (1, 4H)
        wout_t=jnp.asarray(w_out.T),                         # (H, 1)
        b_out=jnp.asarray(b_out[None, :]),                   # (1, 1)
    )


if __name__ == "__main__":
    B, S, F_ENC, F_DEC, H, T_OUT = 2, 8, 4, 3, 32, 4  # batch, enc seq, features, hidden, output_size

    key = jax.random.PRNGKey(0)
    kx, kd, kp = jax.random.split(key, 3)
    x_enc = jax.random.normal(kx, (B, S, F_ENC), jnp.float32)        # input_seq
    x_dec = jax.random.normal(kd, (B, T_OUT, F_DEC), jnp.float32)    # decoder_input
    params = init_params(kp, F_ENC, F_DEC, H)

    xb = [x_enc, x_dec]
    out = encoder_decoder_forward(params, xb)
    jax.block_until_ready(out)

    out_ref = encoder_decoder_reference(params, xb)
    assert out.shape == (B, T_OUT)
    assert jnp.allclose(out, out_ref, atol=1e-3, rtol=1e-3)

    print("KERNEL_OK")
</pallas_src>

<mosaic_0001>
module attributes {stable_mosaic.version = 11 : i64} {
  func.func @_fused_enc_dec_kernel(%arg0: memref<64x128xf32, #tpu.memory_space<vmem>>, %arg1: memref<32x128xf32, #tpu.memory_space<vmem>>, %arg2: memref<128x512xf32, #tpu.memory_space<vmem>>, %arg3: memref<128x512xf32, #tpu.memory_space<vmem>>, %arg4: memref<1x512xf32, #tpu.memory_space<vmem>>, %arg5: memref<1x512xf32, #tpu.memory_space<vmem>>, %arg6: memref<128x512xf32, #tpu.memory_space<vmem>>, %arg7: memref<128x512xf32, #tpu.memory_space<vmem>>, %arg8: memref<1x512xf32, #tpu.memory_space<vmem>>, %arg9: memref<128x512xf32, #tpu.memory_space<vmem>>, %arg10: memref<1x512xf32, #tpu.memory_space<vmem>>, %arg11: memref<128x1xf32, #tpu.memory_space<vmem>>, %arg12: memref<1x1xf32, #tpu.memory_space<vmem>>, %arg13: memref<8x4xf32, #tpu.memory_space<vmem>>, %arg14: memref<64x512xf32, #tpu.memory_space<vmem>>, %arg15: memref<32x512xf32, #tpu.memory_space<vmem>>) attributes {dimension_semantics = [], scalar_prefetch = 0 : i64, scratch_operands = 2 : i64, tpu.core_type = #tpu.core_type<tc>} {
    %c0 = arith.constant 0 : index
    %c0_0 = arith.constant 0 : index
    %0 = vector.load %arg0[%c0, %c0_0] : memref<64x128xf32, #tpu.memory_space<vmem>>, vector<64x128xf32>
    %c0_1 = arith.constant 0 : index
    %c0_2 = arith.constant 0 : index
    %1 = vector.load %arg2[%c0_1, %c0_2] : memref<128x512xf32, #tpu.memory_space<vmem>>, vector<128x512xf32>
    %cst = arith.constant dense<0.000000e+00> : vector<64x512xf32>
    %2 = tpu.matmul %0, %1, %cst {dimension_numbers = #tpu.dot_dimension_numbers<[1], [0], [0], [1], [0, 0, 1, 1], [], []>} : vector<64x128xf32>, vector<128x512xf32>, vector<64x512xf32> -> vector<64x512xf32>
    %c0_3 = arith.constant 0 : index
    %c0_4 = arith.constant 0 : index
    %3 = vector.load %arg4[%c0_3, %c0_4] : memref<1x512xf32, #tpu.memory_space<vmem>>, vector<1x512xf32>
    %4 = vector.broadcast %3 : vector<1x512xf32> to vector<64x512xf32>
    %5 = arith.addf %2, %4 : vector<64x512xf32>
    %c0_5 = arith.constant 0 : index
    %c0_6 = arith.constant 0 : index
    %6 = vector.load %arg14[%c0_5, %c0_6] : memref<64x512xf32, #tpu.memory_space<vmem>>, vector<64x512xf32>
    tpu.vector_store %arg14[%c0_5, %c0_6], %5 {strides = array<i32>} : memref<64x512xf32, #tpu.memory_space<vmem>>, vector<64x512xf32>,
    %c0_7 = arith.constant 0 : index
    %c0_8 = arith.constant 0 : index
    %7 = vector.load %arg1[%c0_7, %c0_8] : memref<32x128xf32, #tpu.memory_space<vmem>>, vector<32x128xf32>
    %c0_9 = arith.constant 0 : index
    %c0_10 = arith.constant 0 : index
    %8 = vector.load %arg6[%c0_9, %c0_10] : memref<128x512xf32, #tpu.memory_space<vmem>>, vector<128x512xf32>
    %cst_11 = arith.constant dense<0.000000e+00> : vector<32x512xf32>
    %9 = tpu.matmul %7, %8, %cst_11 {dimension_numbers = #tpu.dot_dimension_numbers<[1], [0], [0], [1], [0, 0, 1, 1], [], []>} : vector<32x128xf32>, vector<128x512xf32>, vector<32x512xf32> -> vector<32x512xf32>
    %c0_12 = arith.constant 0 : index
    %c0_13 = arith.constant 0 : index
    %10 = vector.load %arg15[%c0_12, %c0_13] : memref<32x512xf32, #tpu.memory_space<vmem>>, vector<32x512xf32>
    tpu.vector_store %arg15[%c0_12, %c0_13], %9 {strides = array<i32>} : memref<32x512xf32, #tpu.memory_space<vmem>>, vector<32x512xf32>,
    %cst_14 = arith.constant 0.000000e+00 : f32
    %11 = vector.broadcast %cst_14 : f32 to vector<8x128xf32>
    %cst_15 = arith.constant 0.000000e+00 : f32
    %12 = vector.broadcast %cst_15 : f32 to vector<8x128xf32>
    %c0_16 = arith.constant 0 : index
    %c0_17 = arith.constant 0 : index
    %13 = vector.load %arg14[%c0_16, %c0_17] : memref<64x512xf32, #tpu.memory_space<vmem>>, vector<8x512xf32>
    %c0_18 = arith.constant 0 : index
    %c0_19 = arith.constant 0 : index
    %14 = vector.load %arg3[%c0_18, %c0_19] : memref<128x512xf32, #tpu.memory_space<vmem>>, vector<128x512xf32>
    %cst_20 = arith.constant dense<0.000000e+00> : vector<8x512xf32>
    %15 = tpu.matmul %11, %14, %cst_20 {dimension_numbers = #tpu.dot_dimension_numbers<[1], [0], [0], [1], [0, 0, 1, 1], [], []>} : vector<8x128xf32>, vector<128x512xf32>, vector<8x512xf32> -> vector<8x512xf32>
    %16 = arith.addf %13, %15 : vector<8x512xf32>
    %17 = vector.extract_strided_slice %16 {offsets = [0, 0], sizes = [8, 384], strides = [1, 1]} : vector<8x512xf32> to vector<8x384xf32>
    %18 = arith.negf %17 : vector<8x384xf32>
    %19 = math.exp %18 : vector<8x384xf32>
    %cst_21 = arith.constant 1.000000e+00 : f32
    %20 = vector.broadcast %cst_21 : f32 to vector<8x384xf32>
    %21 = arith.addf %20, %19 : vector<8x384xf32>
    %22 = arith.divf %20, %21 : vector<8x384xf32>
    %23 = vector.extract_strided_slice %16 {offsets = [0, 384], sizes = [8, 128], strides = [1, 1]} : vector<8x512xf32> to vector<8x128xf32>
    %24 = math.tanh %23 : vector<8x128xf32>
    %25 = vector.extract_strided_slice %22 {offsets = [0, 0], sizes = [8, 128], strides = [1, 1]} : vector<8x384xf32> to vector<8x128xf32>
    %26 = vector.extract_strided_slice %22 {offsets = [0, 128], sizes = [8, 128], strides = [1, 1]} : vector<8x384xf32> to vector<8x128xf32>
    %27 = vector.extract_strided_slice %22 {offsets = [0, 256], sizes = [8, 128], strides = [1, 1]} : vector<8x384xf32> to vector<8x128xf32>
    %28 = arith.mulf %26, %12 : vector<8x128xf32>
    %29 = arith.mulf %25, %24 : vector<8x128xf32>
    %30 = arith.addf %28, %29 : vector<8x128xf32>
    %31 = math.tanh %30 : vector<8x128xf32>
    %32 = arith.mulf %27, %31 : vector<8x128xf32>
    %c8 = arith.constant 8 : index
    %c0_22 = arith.constant 0 : index
    %33 = vector.load %arg14[%c8, %c0_22] : memref<64x512xf32, #tpu.memory_space<vmem>>, vector<8x512xf32>
    %c0_23 = arith.constant 0 : index
    %c0_24 = arith.constant 0 : index
    %34 = vector.load %arg3[%c0_23, %c0_24] : memref<128x512xf32, #tpu.memory_space<vmem>>, vector<128x512xf32>
    %cst_25 = arith.constant dense<0.000000e+00> : vector<8x512xf32>
    %35 = tpu.matmul %32, %34, %cst_25 {dimension_numbers = #tpu.dot_dimension_numbers<[1], [0], [0], [1], [0, 0, 1, 1], [], []>} : vector<8x128xf32>, vector<128x512xf32>, vector<8x512xf32> -> vector<8x512xf32>
    %36 = arith.addf %33, %35 : vector<8x512xf32>
    %37 = vector.extract_strided_slice %36 {offsets = [0, 0], sizes = [8, 384], strides = [1, 1]} : vector<8x512xf32> to vector<8x384xf32>
    %38 = arith.negf %37 : vector<8x384xf32>
    %39 = math.exp %38 : vector<8x384xf32>
    %cst_26 = arith.constant 1.000000e+00 : f32
    %40 = vector.broadcast %cst_26 : f32 to vector<8x384xf32>
    %41 = arith.addf %40, %39 : vector<8x384xf32>
    %42 = arith.divf %40, %41 : vector<8x384xf32>
    %43 = vector.extract_strided_slice %36 {offsets = [0, 384], sizes = [8, 128], strides = [1, 1]} : vector<8x512xf32> to vector<8x128xf32>
    %44 = math.tanh %43 : vector<8x128xf32>
    %45 = vector.extract_strided_slice %42 {offsets = [0, 0], sizes = [8, 128], strides = [1, 1]} : vector<8x384xf32> to vector<8x128xf32>
    %46 = vector.extract_strided_slice %42 {offsets = [0, 128], sizes = [8, 128], strides = [1, 1]} : vector<8x384xf32> to vector<8x128xf32>
    %47 = vector.extract_strided_slice %42 {offsets = [0, 256], sizes = [8, 128], strides = [1, 1]} : vector<8x384xf32> to vector<8x128xf32>
    %48 = arith.mulf %46, %30 : vector<8x128xf32>
    %49 = arith.mulf %45, %44 : vector<8x128xf32>
    %50 = arith.addf %48, %49 : vector<8x128xf32>
    %51 = math.tanh %50 : vector<8x128xf32>
    %52 = arith.mulf %47, %51 : vector<8x128xf32>
    %c16 = arith.constant 16 : index
    %c0_27 = arith.constant 0 : index
    %53 = vector.load %arg14[%c16, %c0_27] : memref<64x512xf32, #tpu.memory_space<vmem>>, vector<8x512xf32>
    %c0_28 = arith.constant 0 : index
    %c0_29 = arith.constant 0 : index
    %54 = vector.load %arg3[%c0_28, %c0_29] : memref<128x512xf32, #tpu.memory_space<vmem>>, vector<128x512xf32>
    %cst_30 = arith.constant dense<0.000000e+00> : vector<8x512xf32>
    %55 = tpu.matmul %52, %54, %cst_30 {dimension_numbers = #tpu.dot_dimension_numbers<[1], [0], [0], [1], [0, 0, 1, 1], [], []>} : vector<8x128xf32>, vector<128x512xf32>, vector<8x512xf32> -> vector<8x512xf32>
    %56 = arith.addf %53, %55 : vector<8x512xf32>
    %57 = vector.extract_strided_slice %56 {offsets = [0, 0], sizes = [8, 384], strides = [1, 1]} : vector<8x512xf32> to vector<8x384xf32>
    %58 = arith.negf %57 : vector<8x384xf32>
    %59 = math.exp %58 : vector<8x384xf32>
    %cst_31 = arith.constant 1.000000e+00 : f32
    %60 = vector.broadcast %cst_31 : f32 to vector<8x384xf32>
    %61 = arith.addf %60, %59 : vector<8x384xf32>
    %62 = arith.divf %60, %61 : vector<8x384xf32>
    %63 = vector.extract_strided_slice %56 {offsets = [0, 384], sizes = [8, 128], strides = [1, 1]} : vector<8x512xf32> to vector<8x128xf32>
    %64 = math.tanh %63 : vector<8x128xf32>
    %65 = vector.extract_strided_slice %62 {offsets = [0, 0], sizes = [8, 128], strides = [1, 1]} : vector<8x384xf32> to vector<8x128xf32>
    %66 = vector.extract_strided_slice %62 {offsets = [0, 128], sizes = [8, 128], strides = [1, 1]} : vector<8x384xf32> to vector<8x128xf32>
    %67 = vector.extract_strided_slice %62 {offsets = [0, 256], sizes = [8, 128], strides = [1, 1]} : vector<8x384xf32> to vector<8x128xf32>
    %68 = arith.mulf %66, %50 : vector<8x128xf32>
    %69 = arith.mulf %65, %64 : vector<8x128xf32>
    %70 = arith.addf %68, %69 : vector<8x128xf32>
    %71 = math.tanh %70 : vector<8x128xf32>
    %72 = arith.mulf %67, %71 : vector<8x128xf32>
    %c24 = arith.constant 24 : index
    %c0_32 = arith.constant 0 : index
    %73 = vector.load %arg14[%c24, %c0_32] : memref<64x512xf32, #tpu.memory_space<vmem>>, vector<8x512xf32>
    %c0_33 = arith.constant 0 : index
    %c0_34 = arith.constant 0 : index
    %74 = vector.load %arg3[%c0_33, %c0_34] : memref<128x512xf32, #tpu.memory_space<vmem>>, vector<128x512xf32>
    %cst_35 = arith.constant dense<0.000000e+00> : vector<8x512xf32>
    %75 = tpu.matmul %72, %74, %cst_35 {dimension_numbers = #tpu.dot_dimension_numbers<[1], [0], [0], [1], [0, 0, 1, 1], [], []>} : vector<8x128xf32>, vector<128x512xf32>, vector<8x512xf32> -> vector<8x512xf32>
    %76 = arith.addf %73, %75 : vector<8x512xf32>
    %77 = vector.extract_strided_slice %76 {offsets = [0, 0], sizes = [8, 384], strides = [1, 1]} : vector<8x512xf32> to vector<8x384xf32>
    %78 = arith.negf %77 : vector<8x384xf32>
    %79 = math.exp %78 : vector<8x384xf32>
    %cst_36 = arith.constant 1.000000e+00 : f32
    %80 = vector.broadcast %cst_36 : f32 to vector<8x384xf32>
    %81 = arith.addf %80, %79 : vector<8x384xf32>
    %82 = arith.divf %80, %81 : vector<8x384xf32>
    %83 = vector.extract_strided_slice %76 {offsets = [0, 384], sizes = [8, 128], strides = [1, 1]} : vector<8x512xf32> to vector<8x128xf32>
    %84 = math.tanh %83 : vector<8x128xf32>
    %85 = vector.extract_strided_slice %82 {offsets = [0, 0], sizes = [8, 128], strides = [1, 1]} : vector<8x384xf32> to vector<8x128xf32>
    %86 = vector.extract_strided_slice %82 {offsets = [0, 128], sizes = [8, 128], strides = [1, 1]} : vector<8x384xf32> to vector<8x128xf32>
    %87 = vector.extract_strided_slice %82 {offsets = [0, 256], sizes = [8, 128], strides = [1, 1]} : vector<8x384xf32> to vector<8x128xf32>
    %88 = arith.mulf %86, %70 : vector<8x128xf32>
    %89 = arith.mulf %85, %84 : vector<8x128xf32>
    %90 = arith.addf %88, %89 : vector<8x128xf32>
    %91 = math.tanh %90 : vector<8x128xf32>
    %92 = arith.mulf %87, %91 : vector<8x128xf32>
    %c32 = arith.constant 32 : index
    %c0_37 = arith.constant 0 : index
    %93 = vector.load %arg14[%c32, %c0_37] : memref<64x512xf32, #tpu.memory_space<vmem>>, vector<8x512xf32>
    %c0_38 = arith.constant 0 : index
    %c0_39 = arith.constant 0 : index
    %94 = vector.load %arg3[%c0_38, %c0_39] : memref<128x512xf32, #tpu.memory_space<vmem>>, vector<128x512xf32>
    %cst_40 = arith.constant dense<0.000000e+00> : vector<8x512xf32>
    %95 = tpu.matmul %92, %94, %cst_40 {dimension_numbers = #tpu.dot_dimension_numbers<[1], [0], [0], [1], [0, 0, 1, 1], [], []>} : vector<8x128xf32>, vector<128x512xf32>, vector<8x512xf32> -> vector<8x512xf32>
    %96 = arith.addf %93, %95 : vector<8x512xf32>
    %97 = vector.extract_strided_slice %96 {offsets = [0, 0], sizes = [8, 384], strides = [1, 1]} : vector<8x512xf32> to vector<8x384xf32>
    %98 = arith.negf %97 : vector<8x384xf32>
    %99 = math.exp %98 : vector<8x384xf32>
    %cst_41 = arith.constant 1.000000e+00 : f32
    %100 = vector.broadcast %cst_41 : f32 to vector<8x384xf32>
    %101 = arith.addf %100, %99 : vector<8x384xf32>
    %102 = arith.divf %100, %101 : vector<8x384xf32>
    %103 = vector.extract_strided_slice %96 {offsets = [0, 384], sizes = [8, 128], strides = [1, 1]} : vector<8x512xf32> to vector<8x128xf32>
    %104 = math.tanh %103 : vector<8x128xf32>
    %105 = vector.extract_strided_slice %102 {offsets = [0, 0], sizes = [8, 128], strides = [1, 1]} : vector<8x384xf32> to vector<8x128xf32>
    %106 = vector.extract_strided_slice %102 {offsets = [0, 128], sizes = [8, 128], strides = [1, 1]} : vector<8x384xf32> to vector<8x128xf32>
    %107 = vector.extract_strided_slice %102 {offsets = [0, 256], sizes = [8, 128], strides = [1, 1]} : vector<8x384xf32> to vector<8x128xf32>
    %108 = arith.mulf %106, %90 : vector<8x128xf32>
    %109 = arith.mulf %105, %104 : vector<8x128xf32>
    %110 = arith.addf %108, %109 : vector<8x128xf32>
    %111 = math.tanh %110 : vector<8x128xf32>
    %112 = arith.mulf %107, %111 : vector<8x128xf32>
    %c40 = arith.constant 40 : index
    %c0_42 = arith.constant 0 : index
    %113 = vector.load %arg14[%c40, %c0_42] : memref<64x512xf32, #tpu.memory_space<vmem>>, vector<8x512xf32>
    %c0_43 = arith.constant 0 : index
    %c0_44 = arith.constant 0 : index
    %114 = vector.load %arg3[%c0_43, %c0_44] : memref<128x512xf32, #tpu.memory_space<vmem>>, vector<128x512xf32>
    %cst_45 = arith.constant dense<0.000000e+00> : vector<8x512xf32>
    %115 = tpu.matmul %112, %114, %cst_45 {dimension_numbers = #tpu.dot_dimension_numbers<[1], [0], [0], [1], [0, 0, 1, 1], [], []>} : vector<8x128xf32>, vector<128x512xf32>, vector<8x512xf32> -> vector<8x512xf32>
    %116 = arith.addf %113, %115 : vector<8x512xf32>
    %117 = vector.extract_strided_slice %116 {offsets = [0, 0], sizes = [8, 384], strides = [1, 1]} : vector<8x512xf32> to vector<8x384xf32>
    %118 = arith.negf %117 : vector<8x384xf32>
    %119 = math.exp %118 : vector<8x384xf32>
    %cst_46 = arith.constant 1.000000e+00 : f32
    %120 = vector.broadcast %cst_46 : f32 to vector<8x384xf32>
    %121 = arith.addf %120, %119 : vector<8x384xf32>
    %122 = arith.divf %120, %121 : vector<8x384xf32>
    %123 = vector.extract_strided_slice %116 {offsets = [0, 384], sizes = [8, 128], strides = [1, 1]} : vector<8x512xf32> to vector<8x128xf32>
    %124 = math.tanh %123 : vector<8x128xf32>
    %125 = vector.extract_strided_slice %122 {offsets = [0, 0], sizes = [8, 128], strides = [1, 1]} : vector<8x384xf32> to vector<8x128xf32>
    %126 = vector.extract_strided_slice %122 {offsets = [0, 128], sizes = [8, 128], strides = [1, 1]} : vector<8x384xf32> to vector<8x128xf32>
    %127 = vector.extract_strided_slice %122 {offsets = [0, 256], sizes = [8, 128], strides = [1, 1]} : vector<8x384xf32> to vector<8x128xf32>
    %128 = arith.mulf %126, %110 : vector<8x128xf32>
    %129 = arith.mulf %125, %124 : vector<8x128xf32>
    %130 = arith.addf %128, %129 : vector<8x128xf32>
    %131 = math.tanh %130 : vector<8x128xf32>
    %132 = arith.mulf %127, %131 : vector<8x128xf32>
    %c48 = arith.constant 48 : index
    %c0_47 = arith.constant 0 : index
    %133 = vector.load %arg14[%c48, %c0_47] : memref<64x512xf32, #tpu.memory_space<vmem>>, vector<8x512xf32>
    %c0_48 = arith.constant 0 : index
    %c0_49 = arith.constant 0 : index
    %134 = vector.load %arg3[%c0_48, %c0_49] : memref<128x512xf32, #tpu.memory_space<vmem>>, vector<128x512xf32>
    %cst_50 = arith.constant dense<0.000000e+00> : vector<8x512xf32>
    %135 = tpu.matmul %132, %134, %cst_50 {dimension_numbers = #tpu.dot_dimension_numbers<[1], [0], [0], [1], [0, 0, 1, 1], [], []>} : vector<8x128xf32>, vector<128x512xf32>, vector<8x512xf32> -> vector<8x512xf32>
    %136 = arith.addf %133, %135 : vector<8x512xf32>
    %137 = vector.extract_strided_slice %136 {offsets = [0, 0], sizes = [8, 384], strides = [1, 1]} : vector<8x512xf32> to vector<8x384xf32>
    %138 = arith.negf %137 : vector<8x384xf32>
    %139 = math.exp %138 : vector<8x384xf32>
    %cst_51 = arith.constant 1.000000e+00 : f32
    %140 = vector.broadcast %cst_51 : f32 to vector<8x384xf32>
    %141 = arith.addf %140, %139 : vector<8x384xf32>
    %142 = arith.divf %140, %141 : vector<8x384xf32>
    %143 = vector.extract_strided_slice %136 {offsets = [0, 384], sizes = [8, 128], strides = [1, 1]} : vector<8x512xf32> to vector<8x128xf32>
    %144 = math.tanh %143 : vector<8x128xf32>
    %145 = vector.extract_strided_slice %142 {offsets = [0, 0], sizes = [8, 128], strides = [1, 1]} : vector<8x384xf32> to vector<8x128xf32>
    %146 = vector.extract_strided_slice %142 {offsets = [0, 128], sizes = [8, 128], strides = [1, 1]} : vector<8x384xf32> to vector<8x128xf32>
    %147 = vector.extract_strided_slice %142 {offsets = [0, 256], sizes = [8, 128], strides = [1, 1]} : vector<8x384xf32> to vector<8x128xf32>
    %148 = arith.mulf %146, %130 : vector<8x128xf32>
    %149 = arith.mulf %145, %144 : vector<8x128xf32>
    %150 = arith.addf %148, %149 : vector<8x128xf32>
    %151 = math.tanh %150 : vector<8x128xf32>
    %152 = arith.mulf %147, %151 : vector<8x128xf32>
    %c56 = arith.constant 56 : index
    %c0_52 = arith.constant 0 : index
    %153 = vector.load %arg14[%c56, %c0_52] : memref<64x512xf32, #tpu.memory_space<vmem>>, vector<8x512xf32>
    %c0_53 = arith.constant 0 : index
    %c0_54 = arith.constant 0 : index
    %154 = vector.load %arg3[%c0_53, %c0_54] : memref<128x512xf32, #tpu.memory_space<vmem>>, vector<128x512xf32>
    %cst_55 = arith.constant dense<0.000000e+00> : vector<8x512xf32>
    %155 = tpu.matmul %152, %154, %cst_55 {dimension_numbers = #tpu.dot_dimension_numbers<[1], [0], [0], [1], [0, 0, 1, 1], [], []>} : vector<8x128xf32>, vector<128x512xf32>, vector<8x512xf32> -> vector<8x512xf32>
    %156 = arith.addf %153, %155 : vector<8x512xf32>
    %157 = vector.extract_strided_slice %156 {offsets = [0, 0], sizes = [8, 384], strides = [1, 1]} : vector<8x512xf32> to vector<8x384xf32>
    %158 = arith.negf %157 : vector<8x384xf32>
    %159 = math.exp %158 : vector<8x384xf32>
    %cst_56 = arith.constant 1.000000e+00 : f32
    %160 = vector.broadcast %cst_56 : f32 to vector<8x384xf32>
    %161 = arith.addf %160, %159 : vector<8x384xf32>
    %162 = arith.divf %160, %161 : vector<8x384xf32>
    %163 = vector.extract_strided_slice %156 {offsets = [0, 384], sizes = [8, 128], strides = [1, 1]} : vector<8x512xf32> to vector<8x128xf32>
    %164 = math.tanh %163 : vector<8x128xf32>
    %165 = vector.extract_strided_slice %162 {offsets = [0, 0], sizes = [8, 128], strides = [1, 1]} : vector<8x384xf32> to vector<8x128xf32>
    %166 = vector.extract_strided_slice %162 {offsets = [0, 128], sizes = [8, 128], strides = [1, 1]} : vector<8x384xf32> to vector<8x128xf32>
    %167 = vector.extract_strided_slice %162 {offsets = [0, 256], sizes = [8, 128], strides = [1, 1]} : vector<8x384xf32> to vector<8x128xf32>
    %168 = arith.mulf %166, %150 : vector<8x128xf32>
    %169 = arith.mulf %165, %164 : vector<8x128xf32>
    %170 = arith.addf %168, %169 : vector<8x128xf32>
    %171 = math.tanh %170 : vector<8x128xf32>
    %172 = arith.mulf %167, %171 : vector<8x128xf32>
    %c56_57 = arith.constant 56 : index
    %c0_58 = arith.constant 0 : index
    %173 = vector.load %arg0[%c56_57, %c0_58] : memref<64x128xf32, #tpu.memory_space<vmem>>, vector<8x1xf32>
    %c0_59 = arith.constant 0 : index
    %c0_60 = arith.constant 0 : index
    %174 = vector.load %arg15[%c0_59, %c0_60] : memref<32x512xf32, #tpu.memory_space<vmem>>, vector<8x512xf32>
    %c0_61 = arith.constant 0 : index
    %c0_62 = arith.constant 0 : index
    %175 = vector.load %arg8[%c0_61, %c0_62] : memref<1x512xf32, #tpu.memory_space<vmem>>, vector<1x512xf32>
    %176 = vector.broadcast %175 : vector<1x512xf32> to vector<8x512xf32>
    %177 = arith.addf %174, %176 : vector<8x512xf32>
    %c0_63 = arith.constant 0 : index
    %c0_64 = arith.constant 0 : index
    %178 = vector.load %arg5[%c0_63, %c0_64] : memref<1x512xf32, #tpu.memory_space<vmem>>, vector<1x512xf32>
    %179 = vector.broadcast %173 : vector<8x1xf32> to vector<8x512xf32>
    %180 = vector.broadcast %178 : vector<1x512xf32> to vector<8x512xf32>
    %181 = arith.mulf %179, %180 : vector<8x512xf32>
    %182 = arith.addf %177, %181 : vector<8x512xf32>
    %c0_65 = arith.constant 0 : index
    %c0_66 = arith.constant 0 : index
    %183 = vector.load %arg7[%c0_65, %c0_66] : memref<128x512xf32, #tpu.memory_space<vmem>>, vector<128x512xf32>
    %cst_67 = arith.constant dense<0.000000e+00> : vector<8x512xf32>
    %184 = tpu.matmul %172, %183, %cst_67 {dimension_numbers = #tpu.dot_dimension_numbers<[1], [0], [0], [1], [0, 0, 1, 1], [], []>} : vector<8x128xf32>, vector<128x512xf32>, vector<8x512xf32> -> vector<8x512xf32>
    %185 = arith.addf %182, %184 : vector<8x512xf32>
    %186 = vector.extract_strided_slice %185 {offsets = [0, 0], sizes = [8, 384], strides = [1, 1]} : vector<8x512xf32> to vector<8x384xf32>
    %187 = arith.negf %186 : vector<8x384xf32>
    %188 = math.exp %187 : vector<8x384xf32>
    %cst_68 = arith.constant 1.000000e+00 : f32
    %189 = vector.broadcast %cst_68 : f32 to vector<8x384xf32>
    %190 = arith.addf %189, %188 : vector<8x384xf32>
    %191 = arith.divf %189, %190 : vector<8x384xf32>
    %192 = vector.extract_strided_slice %185 {offsets = [0, 384], sizes = [8, 128], strides = [1, 1]} : vector<8x512xf32> to vector<8x128xf32>
    %193 = math.tanh %192 : vector<8x128xf32>
    %194 = vector.extract_strided_slice %191 {offsets = [0, 0], sizes = [8, 128], strides = [1, 1]} : vector<8x384xf32> to vector<8x128xf32>
    %195 = vector.extract_strided_slice %191 {offsets = [0, 128], sizes = [8, 128], strides = [1, 1]} : vector<8x384xf32> to vector<8x128xf32>
    %196 = vector.extract_strided_slice %191 {offsets = [0, 256], sizes = [8, 128], strides = [1, 1]} : vector<8x384xf32> to vector<8x128xf32>
    %197 = arith.mulf %195, %170 : vector<8x128xf32>
    %198 = arith.mulf %194, %193 : vector<8x128xf32>
    %199 = arith.addf %197, %198 : vector<8x128xf32>
    %200 = math.tanh %199 : vector<8x128xf32>
    %201 = arith.mulf %196, %200 : vector<8x128xf32>
    %c8_69 = arith.constant 8 : index
    %c0_70 = arith.constant 0 : index
    %202 = vector.load %arg15[%c8_69, %c0_70] : memref<32x512xf32, #tpu.memory_space<vmem>>, vector<8x512xf32>
    %c0_71 = arith.constant 0 : index
    %c0_72 = arith.constant 0 : index
    %203 = vector.load %arg10[%c0_71, %c0_72] : memref<1x512xf32, #tpu.memory_space<vmem>>, vector<1x512xf32>
    %204 = vector.broadcast %203 : vector<1x512xf32> to vector<8x512xf32>
    %205 = arith.addf %202, %204 : vector<8x512xf32>
    %c0_73 = arith.constant 0 : index
    %c0_74 = arith.constant 0 : index
    %206 = vector.load %arg9[%c0_73, %c0_74] : memref<128x512xf32, #tpu.memory_space<vmem>>, vector<128x512xf32>
    %cst_75 = arith.constant dense<0.000000e+00> : vector<8x512xf32>
    %207 = tpu.matmul %201, %206, %cst_75 {dimension_numbers = #tpu.dot_dimension_numbers<[1], [0], [0], [1], [0, 0, 1, 1], [], []>} : vector<8x128xf32>, vector<128x512xf32>, vector<8x512xf32> -> vector<8x512xf32>
    %208 = arith.addf %205, %207 : vector<8x512xf32>
    %209 = vector.extract_strided_slice %208 {offsets = [0, 0], sizes = [8, 384], strides = [1, 1]} : vector<8x512xf32> to vector<8x384xf32>
    %210 = arith.negf %209 : vector<8x384xf32>
    %211 = math.exp %210 : vector<8x384xf32>
    %cst_76 = arith.constant 1.000000e+00 : f32
    %212 = vector.broadcast %cst_76 : f32 to vector<8x384xf32>
    %213 = arith.addf %212, %211 : vector<8x384xf32>
    %214 = arith.divf %212, %213 : vector<8x384xf32>
    %215 = vector.extract_strided_slice %208 {offsets = [0, 384], sizes = [8, 128], strides = [1, 1]} : vector<8x512xf32> to vector<8x128xf32>
    %216 = math.tanh %215 : vector<8x128xf32>
    %217 = vector.extract_strided_slice %214 {offsets = [0, 0], sizes = [8, 128], strides = [1, 1]} : vector<8x384xf32> to vector<8x128xf32>
    %218 = vector.extract_strided_slice %214 {offsets = [0, 128], sizes = [8, 128], strides = [1, 1]} : vector<8x384xf32> to vector<8x128xf32>
    %219 = vector.extract_strided_slice %214 {offsets = [0, 256], sizes = [8, 128], strides = [1, 1]} : vector<8x384xf32> to vector<8x128xf32>
    %220 = arith.mulf %218, %199 : vector<8x128xf32>
    %221 = arith.mulf %217, %216 : vector<8x128xf32>
    %222 = arith.addf %220, %221 : vector<8x128xf32>
    %223 = math.tanh %222 : vector<8x128xf32>
    %224 = arith.mulf %219, %223 : vector<8x128xf32>
    %c16_77 = arith.constant 16 : index
    %c0_78 = arith.constant 0 : index
    %225 = vector.load %arg15[%c16_77, %c0_78] : memref<32x512xf32, #tpu.memory_space<vmem>>, vector<8x512xf32>
    %c0_79 = arith.constant 0 : index
    %c0_80 = arith.constant 0 : index
    %226 = vector.load %arg10[%c0_79, %c0_80] : memref<1x512xf32, #tpu.memory_space<vmem>>, vector<1x512xf32>
    %227 = vector.broadcast %226 : vector<1x512xf32> to vector<8x512xf32>
    %228 = arith.addf %225, %227 : vector<8x512xf32>
    %c0_81 = arith.constant 0 : index
    %c0_82 = arith.constant 0 : index
    %229 = vector.load %arg9[%c0_81, %c0_82] : memref<128x512xf32, #tpu.memory_space<vmem>>, vector<128x512xf32>
    %cst_83 = arith.constant dense<0.000000e+00> : vector<8x512xf32>
    %230 = tpu.matmul %224, %229, %cst_83 {dimension_numbers = #tpu.dot_dimension_numbers<[1], [0], [0], [1], [0, 0, 1, 1], [], []>} : vector<8x128xf32>, vector<128x512xf32>, vector<8x512xf32> -> vector<8x512xf32>
    %231 = arith.addf %228, %230 : vector<8x512xf32>
    %232 = vector.extract_strided_slice %231 {offsets = [0, 0], sizes = [8, 384], strides = [1, 1]} : vector<8x512xf32> to vector<8x384xf32>
    %233 = arith.negf %232 : vector<8x384xf32>
    %234 = math.exp %233 : vector<8x384xf32>
    %cst_84 = arith.constant 1.000000e+00 : f32
    %235 = vector.broadcast %cst_84 : f32 to vector<8x384xf32>
    %236 = arith.addf %235, %234 : vector<8x384xf32>
    %237 = arith.divf %235, %236 : vector<8x384xf32>
    %238 = vector.extract_strided_slice %231 {offsets = [0, 384], sizes = [8, 128], strides = [1, 1]} : vector<8x512xf32> to vector<8x128xf32>
    %239 = math.tanh %238 : vector<8x128xf32>
    %240 = vector.extract_strided_slice %237 {offsets = [0, 0], sizes = [8, 128], strides = [1, 1]} : vector<8x384xf32> to vector<8x128xf32>
    %241 = vector.extract_strided_slice %237 {offsets = [0, 128], sizes = [8, 128], strides = [1, 1]} : vector<8x384xf32> to vector<8x128xf32>
    %242 = vector.extract_strided_slice %237 {offsets = [0, 256], sizes = [8, 128], strides = [1, 1]} : vector<8x384xf32> to vector<8x128xf32>
    %243 = arith.mulf %241, %222 : vector<8x128xf32>
    %244 = arith.mulf %240, %239 : vector<8x128xf32>
    %245 = arith.addf %243, %244 : vector<8x128xf32>
    %246 = math.tanh %245 : vector<8x128xf32>
    %247 = arith.mulf %242, %246 : vector<8x128xf32>
    %c24_85 = arith.constant 24 : index
    %c0_86 = arith.constant 0 : index
    %248 = vector.load %arg15[%c24_85, %c0_86] : memref<32x512xf32, #tpu.memory_space<vmem>>, vector<8x512xf32>
    %c0_87 = arith.constant 0 : index
    %c0_88 = arith.constant 0 : index
    %249 = vector.load %arg10[%c0_87, %c0_88] : memref<1x512xf32, #tpu.memory_space<vmem>>, vector<1x512xf32>
    %250 = vector.broadcast %249 : vector<1x512xf32> to vector<8x512xf32>
    %251 = arith.addf %248, %250 : vector<8x512xf32>
    %c0_89 = arith.constant 0 : index
    %c0_90 = arith.constant 0 : index
    %252 = vector.load %arg9[%c0_89, %c0_90] : memref<128x512xf32, #tpu.memory_space<vmem>>, vector<128x512xf32>
    %cst_91 = arith.constant dense<0.000000e+00> : vector<8x512xf32>
    %253 = tpu.matmul %247, %252, %cst_91 {dimension_numbers = #tpu.dot_dimension_numbers<[1], [0], [0], [1], [0, 0, 1, 1], [], []>} : vector<8x128xf32>, vector<128x512xf32>, vector<8x512xf32> -> vector<8x512xf32>
    %254 = arith.addf %251, %253 : vector<8x512xf32>
    %255 = vector.extract_strided_slice %254 {offsets = [0, 0], sizes = [8, 384], strides = [1, 1]} : vector<8x512xf32> to vector<8x384xf32>
    %256 = arith.negf %255 : vector<8x384xf32>
    %257 = math.exp %256 : vector<8x384xf32>
    %cst_92 = arith.constant 1.000000e+00 : f32
    %258 = vector.broadcast %cst_92 : f32 to vector<8x384xf32>
    %259 = arith.addf %258, %257 : vector<8x384xf32>
    %260 = arith.divf %258, %259 : vector<8x384xf32>
    %261 = vector.extract_strided_slice %254 {offsets = [0, 384], sizes = [8, 128], strides = [1, 1]} : vector<8x512xf32> to vector<8x128xf32>
    %262 = math.tanh %261 : vector<8x128xf32>
    %263 = vector.extract_strided_slice %260 {offsets = [0, 0], sizes = [8, 128], strides = [1, 1]} : vector<8x384xf32> to vector<8x128xf32>
    %264 = vector.extract_strided_slice %260 {offsets = [0, 128], sizes = [8, 128], strides = [1, 1]} : vector<8x384xf32> to vector<8x128xf32>
    %265 = vector.extract_strided_slice %260 {offsets = [0, 256], sizes = [8, 128], strides = [1, 1]} : vector<8x384xf32> to vector<8x128xf32>
    %266 = arith.mulf %264, %245 : vector<8x128xf32>
    %267 = arith.mulf %263, %262 : vector<8x128xf32>
    %268 = arith.addf %266, %267 : vector<8x128xf32>
    %269 = math.tanh %268 : vector<8x128xf32>
    %270 = arith.mulf %265, %269 : vector<8x128xf32>
    %c0_93 = arith.constant 0 : index
    %c0_94 = arith.constant 0 : index
    %271 = vector.load %arg11[%c0_93, %c0_94] : memref<128x1xf32, #tpu.memory_space<vmem>>, vector<128x1xf32>
    %c0_95 = arith.constant 0 : index
    %c0_96 = arith.constant 0 : index
    %272 = vector.load %arg12[%c0_95, %c0_96] : memref<1x1xf32, #tpu.memory_space<vmem>>, vector<1x1xf32>
    %cst_97 = arith.constant dense<0.000000e+00> : vector<8x1xf32>
    %273 = tpu.matmul %201, %271, %cst_97 {dimension_numbers = #tpu.dot_dimension_numbers<[1], [0], [0], [1], [0, 0, 1, 1], [], []>} : vector<8x128xf32>, vector<128x1xf32>, vector<8x1xf32> -> vector<8x1xf32>
    %274 = vector.broadcast %272 : vector<1x1xf32> to vector<8x1xf32>
    %275 = arith.addf %273, %274 : vector<8x1xf32>
    %cst_98 = arith.constant dense<0.000000e+00> : vector<8x1xf32>
    %276 = tpu.matmul %224, %271, %cst_98 {dimension_numbers = #tpu.dot_dimension_numbers<[1], [0], [0], [1], [0, 0, 1, 1], [], []>} : vector<8x128xf32>, vector<128x1xf32>, vector<8x1xf32> -> vector<8x1xf32>
    %277 = vector.broadcast %272 : vector<1x1xf32> to vector<8x1xf32>
    %278 = arith.addf %276, %277 : vector<8x1xf32>
    %cst_99 = arith.constant dense<0.000000e+00> : vector<8x1xf32>
    %279 = tpu.matmul %247, %271, %cst_99 {dimension_numbers = #tpu.dot_dimension_numbers<[1], [0], [0], [1], [0, 0, 1, 1], [], []>} : vector<8x128xf32>, vector<128x1xf32>, vector<8x1xf32> -> vector<8x1xf32>
    %280 = vector.broadcast %272 : vector<1x1xf32> to vector<8x1xf32>
    %281 = arith.addf %279, %280 : vector<8x1xf32>
    %cst_100 = arith.constant dense<0.000000e+00> : vector<8x1xf32>
    %282 = tpu.matmul %270, %271, %cst_100 {dimension_numbers = #tpu.dot_dimension_numbers<[1], [0], [0], [1], [0, 0, 1, 1], [], []>} : vector<8x128xf32>, vector<128x1xf32>, vector<8x1xf32> -> vector<8x1xf32>
    %283 = vector.broadcast %272 : vector<1x1xf32> to vector<8x1xf32>
    %284 = arith.addf %282, %283 : vector<8x1xf32>
    %285 = tpu.concatenate %275, %278, %281, %284 in 1 : vector<8x1xf32>, vector<8x1xf32>, vector<8x1xf32>, vector<8x1xf32> -> vector<8x4xf32>
    %c0_101 = arith.constant 0 : index
    %c0_102 = arith.constant 0 : index
    %286 = vector.load %arg13[%c0_101, %c0_102] : memref<8x4xf32, #tpu.memory_space<vmem>>, vector<8x4xf32>
    tpu.vector_store %arg13[%c0_101, %c0_102], %285 {strides = array<i32>} : memref<8x4xf32, #tpu.memory_space<vmem>>, vector<8x4xf32>,
    return
  }
}

</mosaic_0001>

<llo_original>
// kernel: tpu_custom_call.1
$region0: #{tpu_custom_call.1}
  #allocation0 [shape = 'u32[]', space=smem, size = 0x4, offset = 0x4, fixed_abs, tag = 'smem constant byte address 0x4 - core index']
  #allocation1 [shape = 'u32[72,128]{1,0:T(1,128)}', space=vmem, size = 0x9000, scoped, tag = 'internal scratch']
  #allocation2 [shape = 'f32[64,512]{1,0:T(8,128)}', space=vmem, size = 0x20000, scoped, tag = 'scratch operand']
  #allocation3 [shape = 'f32[32,512]{1,0:T(8,128)}', space=vmem, size = 0x10000, scoped, tag = 'scratch operand']
  #allocation4 [shape = 'f32[1,1]{1,0:T(1,128)S(1)}', space=vmem, size = 0x200, scoped, tag = 'scoped memory for tpu_custom_call.1']
  %s0 = inlined_call_operand.vmem [shape: f32[64,128], index: 0, kind: input, shape index: {}]
  %s1 = inlined_call_operand.vmem [shape: f32[32,128], index: 1, kind: input, shape index: {}]
  %s2 = inlined_call_operand.hbm [shape: f32[128,512], index: 2, kind: input, shape index: {}]
  %s3 = inlined_call_operand.hbm [shape: f32[128,512], index: 3, kind: input, shape index: {}]
  %s4 = inlined_call_operand.vmem [shape: f32[1,512], index: 4, kind: input, shape index: {}]
  %s5 = inlined_call_operand.vmem [shape: f32[1,512], index: 5, kind: input, shape index: {}]
  %s6 = inlined_call_operand.hbm [shape: f32[128,512], index: 6, kind: input, shape index: {}]
  %s7 = inlined_call_operand.hbm [shape: f32[128,512], index: 7, kind: input, shape index: {}]
  %s8 = inlined_call_operand.vmem [shape: f32[1,512], index: 8, kind: input, shape index: {}]
  %s9 = inlined_call_operand.hbm [shape: f32[128,512], index: 9, kind: input, shape index: {}]
  %s10 = inlined_call_operand.vmem [shape: f32[1,512], index: 10, kind: input, shape index: {}]
  %s11 = inlined_call_operand.vmem [shape: f32[128,1], index: 11, kind: input, shape index: {}]
  %s12 = inlined_call_operand.<no memory space> [shape: f32[1,1], index: 12, kind: input, shape index: {}]
  %s13 = inlined_call_operand.vmem [shape: f32[8,4], index: 13, kind: output, shape index: {}]
  %s14 = sld [smem:[#allocation0]]
  $region82: #{tpu_custom_call.1} parent=0
    _
  %s16 = ssub.s32 1, %s14
  %s17 = scalar_select 0, %s16, %s14
  %v18 = vstv %s12
  %19 = vst [vmem:[#allocation4] sm:$0x1] %v18
  $region1: #{tpu_custom_call.1} parent=0
    #allocation5 [shape = 'u8[262144]{0}', space=vmem, size = 0x40000, scoped, tag = 'input window, operand 2, single buffered']
    #allocation6 [shape = 's32[1]{0}', space=sflag, size = 0x4, scoped, tag = 'scoped memory for tpu_custom_call.1']
    #allocation7 [shape = 'u8[262144]{0}', space=vmem, size = 0x40000, scoped, tag = 'input window, operand 3, single buffered']
    #allocation8 [shape = 's32[1]{0}', space=sflag, size = 0x4, scoped, tag = 'scoped memory for tpu_custom_call.1']
    #allocation9 [shape = 'u8[262144]{0}', space=vmem, size = 0x40000, scoped, tag = 'input window, operand 6, single buffered']
    #allocation10 [shape = 'u8[262144]{0}', space=vmem, size = 0x40000, scoped, tag = 'input window, operand 7, single buffered']
    #allocation11 [shape = 's32[1]{0}', space=sflag, size = 0x4, scoped, tag = 'scoped memory for tpu_custom_call.1']
    #allocation12 [shape = 'u8[262144]{0}', space=vmem, size = 0x40000, scoped, tag = 'input window, operand 9, single buffered']
    %20 = vsyncpa [#allocation6], 0
    %21 = vsyncpa [#allocation8], 0
    %22 = vsyncpa [#allocation11], 0
    // Predicated region
    $region2: #{tpu_custom_call.1} parent=1 // pred_check
      _
    $region3: #{tpu_custom_call.1} parent=1 // pred_check_branch
      %24 = sbr.rel (0) target = $region5
    $region4: #{tpu_custom_call.1} parent=1 // pred_region
      _
    $region5: #{tpu_custom_call.1} parent=1 // pred_fallthru
      _
    // Predicated region
    $region6: #{tpu_custom_call.1} parent=1 // pred_check
      _
    $region7: #{tpu_custom_call.1} parent=1 // pred_check_branch
      %26 = sbr.rel (0) target = $region9
    $region8: #{tpu_custom_call.1} parent=1 // pred_region
      _
    $region9: #{tpu_custom_call.1} parent=1 // pred_fallthru
      _
    // Predicated region
    $region10: #{tpu_custom_call.1} parent=1 // pred_check
      _
    $region11: #{tpu_custom_call.1} parent=1 // pred_check_branch
      %28 = sbr.rel (0) target = $region13
    $region12: #{tpu_custom_call.1} parent=1 // pred_region
      %30 = vsyncadd [#allocation6], 0
      %s31 = sshll.u32 %s2, 4
      %s32 = int_to_ptr.hbm [resolvable:$true] %s31
      %s33 = sshll.u32 [#allocation5], 4
      %s34 = int_to_ptr.vmem [resolvable:$true] %s33
      %39 = dma.hbm_to_vmem [thread:$0]  %s32, 8192, %s34, [#allocation6], 512, 512, 32
    $region13: #{tpu_custom_call.1} parent=1 // pred_fallthru
      _
    // Predicated region
    $region14: #{tpu_custom_call.1} parent=1 // pred_check
      _
    $region15: #{tpu_custom_call.1} parent=1 // pred_check_branch
      %41 = sbr.rel (0) target = $region17
    $region16: #{tpu_custom_call.1} parent=1 // pred_region
      %43 = vsyncadd [#allocation8], 0
      %s44 = sshll.u32 %s3, 4
      %s45 = int_to_ptr.hbm [resolvable:$true] %s44
      %s46 = sshll.u32 [#allocation7], 4
      %s47 = int_to_ptr.vmem [resolvable:$true] %s46
      %52 = dma.hbm_to_vmem [thread:$0]  %s45, 8192, %s47, [#allocation8], 512, 512, 32
    $region17: #{tpu_custom_call.1} parent=1 // pred_fallthru
      _
    // Predicated region
    $region18: #{tpu_custom_call.1} parent=1 // pred_check
      _
    $region19: #{tpu_custom_call.1} parent=1 // pred_check_branch
      %54 = sbr.rel (0) target = $region21
    $region20: #{tpu_custom_call.1} parent=1 // pred_region
      _
    $region21: #{tpu_custom_call.1} parent=1 // pred_fallthru
      _
    // Predicated region
    $region22: #{tpu_custom_call.1} parent=1 // pred_check
      _
    $region23: #{tpu_custom_call.1} parent=1 // pred_check_branch
      %56 = sbr.rel (0) target = $region25
    $region24: #{tpu_custom_call.1} parent=1 // pred_region
      _
    $region25: #{tpu_custom_call.1} parent=1 // pred_fallthru
      _
    // Predicated region
    $region26: #{tpu_custom_call.1} parent=1 // pred_check
      _
    $region27: #{tpu_custom_call.1} parent=1 // pred_check_branch
      %58 = sbr.rel (0) target = $region29
    $region28: #{tpu_custom_call.1} parent=1 // pred_region
      %60 = vsyncadd [#allocation8], 0
      %s61 = sshll.u32 %s6, 4
      %s62 = int_to_ptr.hbm [resolvable:$true] %s61
      %s63 = sshll.u32 [#allocation9], 4
      %s64 = int_to_ptr.vmem [resolvable:$true] %s63
      %69 = dma.hbm_to_vmem [thread:$0]  %s62, 8192, %s64, [#allocation8], 512, 512, 32
    $region29: #{tpu_custom_call.1} parent=1 // pred_fallthru
      _
    // Predicated region
    $region30: #{tpu_custom_call.1} parent=1 // pred_check
      _
    $region31: #{tpu_custom_call.1} parent=1 // pred_check_branch
      %71 = sbr.rel (0) target = $region33
    $region32: #{tpu_custom_call.1} parent=1 // pred_region
      %73 = vsyncadd [#allocation11], 0
      %s74 = sshll.u32 %s7, 4
      %s75 = int_to_ptr.hbm [resolvable:$true] %s74
      %s76 = sshll.u32 [#allocation10], 4
      %s77 = int_to_ptr.vmem [resolvable:$true] %s76
      %82 = dma.hbm_to_vmem [thread:$0]  %s75, 8192, %s77, [#allocation11], 512, 512, 32
    $region33: #{tpu_custom_call.1} parent=1 // pred_fallthru
      _
    // Predicated region
    $region34: #{tpu_custom_call.1} parent=1 // pred_check
      _
    $region35: #{tpu_custom_call.1} parent=1 // pred_check_branch
      %84 = sbr.rel (0) target = $region37
    $region36: #{tpu_custom_call.1} parent=1 // pred_region
      _
    $region37: #{tpu_custom_call.1} parent=1 // pred_fallthru
      _
    // Predicated region
    $region38: #{tpu_custom_call.1} parent=1 // pred_check
      _
    $region39: #{tpu_custom_call.1} parent=1 // pred_check_branch
      %86 = sbr.rel (0) target = $region41
    $region40: #{tpu_custom_call.1} parent=1 // pred_region
      %88 = vsyncadd [#allocation11], 0
      %s89 = sshll.u32 %s9, 4
      %s90 = int_to_ptr.hbm [resolvable:$true] %s89
      %s91 = sshll.u32 [#allocation12], 4
      %s92 = int_to_ptr.vmem [resolvable:$true] %s91
      %97 = dma.hbm_to_vmem [thread:$0]  %s90, 8192, %s92, [#allocation11], 512, 512, 32
    $region41: #{tpu_custom_call.1} parent=1 // pred_fallthru
      _
    // Predicated region
    $region42: #{tpu_custom_call.1} parent=1 // pred_check
      _
    $region43: #{tpu_custom_call.1} parent=1 // pred_check_branch
      %99 = sbr.rel (0) target = $region45
    $region44: #{tpu_custom_call.1} parent=1 // pred_region
      _
    $region45: #{tpu_custom_call.1} parent=1 // pred_fallthru
      _
    // Predicated region
    $region46: #{tpu_custom_call.1} parent=1 // pred_check
      _
    $region47: #{tpu_custom_call.1} parent=1 // pred_check_branch
      %101 = sbr.rel (0) target = $region49
    $region48: #{tpu_custom_call.1} parent=1 // pred_region
      _
    $region49: #{tpu_custom_call.1} parent=1 // pred_fallthru
      _
    // Predicated region
    $region50: #{tpu_custom_call.1} parent=1 // pred_check
      _
    $region51: #{tpu_custom_call.1} parent=1 // pred_check_branch
      %103 = sbr.rel (0) target = $region53
    $region52: #{tpu_custom_call.1} parent=1 // pred_region
      _
    $region53: #{tpu_custom_call.1} parent=1 // pred_fallthru
      _
    // Predicated region
    $region54: #{tpu_custom_call.1} parent=1 // pred_check
      _
    $region55: #{tpu_custom_call.1} parent=1 // pred_check_branch
      %105 = sbr.rel (0) target = $region57
    $region56: #{tpu_custom_call.1} parent=1 // pred_region
      %107 = dma.done [#allocation6], 8192
    $region57: #{tpu_custom_call.1} parent=1 // pred_fallthru
      _
    // Predicated region
    $region58: #{tpu_custom_call.1} parent=1 // pred_check
      _
    $region59: #{tpu_custom_call.1} parent=1 // pred_check_branch
      %109 = sbr.rel (0) target = $region61
    $region60: #{tpu_custom_call.1} parent=1 // pred_region
      %111 = dma.done [#allocation8], 8192
    $region61: #{tpu_custom_call.1} parent=1 // pred_fallthru
      _
    // Predicated region
    $region62: #{tpu_custom_call.1} parent=1 // pred_check
      _
    $region63: #{tpu_custom_call.1} parent=1 // pred_check_branch
      %113 = sbr.rel (0) target = $region65
    $region64: #{tpu_custom_call.1} parent=1 // pred_region
      %115 = dma.done [#allocation8], 8192
    $region65: #{tpu_custom_call.1} parent=1 // pred_fallthru
      _
    // Predicated region
    $region66: #{tpu_custom_call.1} parent=1 // pred_check
      _
    $region67: #{tpu_custom_call.1} parent=1 // pred_check_branch
      %117 = sbr.rel (0) target = $region69
    $region68: #{tpu_custom_call.1} parent=1 // pred_region
      %119 = dma.done [#allocation11], 8192
    $region69: #{tpu_custom_call.1} parent=1 // pred_fallthru
      _
    // Predicated region
    $region70: #{tpu_custom_call.1} parent=1 // pred_check
      _
    $region71: #{tpu_custom_call.1} parent=1 // pred_check_branch
      %121 = sbr.rel (0) target = $region73
    $region72: #{tpu_custom_call.1} parent=1 // pred_region
      %123 = dma.done [#allocation11], 8192
    $region73: #{tpu_custom_call.1} parent=1 // pred_fallthru
      _
    %v124 = vld [vmem:[%s0] sm:$0xff]
    %v125 = vld [vmem:[%s0 + $0x8] sm:$0xff]
    %v126 = vld [vmem:[%s0 + $0x10] sm:$0xff]
    %v127 = vld [vmem:[%s0 + $0x18] sm:$0xff]
    %v128 = vld [vmem:[%s0 + $0x20] sm:$0xff]
    %v129 = vld [vmem:[%s0 + $0x28] sm:$0xff]
    %v130 = vld [vmem:[%s0 + $0x30] sm:$0xff]
    %v131 = vld [vmem:[%s0 + $0x38] sm:$0xff]
    %v132 = vld [vmem:[#allocation5] sm:$0xff]
    %v133 = vld [vmem:[#allocation5 + $0x8] sm:$0xff]
    %v134 = vld [vmem:[#allocation5 + $0x10] sm:$0xff]
    %v135 = vld [vmem:[#allocation5 + $0x18] sm:$0xff]
    %v136 = vld [vmem:[#allocation5 + $0x20] sm:$0xff]
    %v137 = vld [vmem:[#allocation5 + $0x28] sm:$0xff]
    %v138 = vld [vmem:[#allocation5 + $0x30] sm:$0xff]
    %v139 = vld [vmem:[#allocation5 + $0x38] sm:$0xff]
    %v140 = vld [vmem:[#allocation5 + $0x40] sm:$0xff]
    %v141 = vld [vmem:[#allocation5 + $0x48] sm:$0xff]
    %v142 = vld [vmem:[#allocation5 + $0x50] sm:$0xff]
    %v143 = vld [vmem:[#allocation5 + $0x58] sm:$0xff]
    %v144 = vld [vmem:[#allocation5 + $0x60] sm:$0xff]
    %v145 = vld [vmem:[#allocation5 + $0x68] sm:$0xff]
    %v146 = vld [vmem:[#allocation5 + $0x70] sm:$0xff]
    %v147 = vld [vmem:[#allocation5 + $0x78] sm:$0xff]
    %v148 = vld [vmem:[#allocation5 + $0x80] sm:$0xff]
    %v149 = vld [vmem:[#allocation5 + $0x88] sm:$0xff]
    %v150 = vld [vmem:[#allocation5 + $0x90] sm:$0xff]
    %v151 = vld [vmem:[#allocation5 + $0x98] sm:$0xff]
    %v152 = vld [vmem:[#allocation5 + $0xa0] sm:$0xff]
    %v153 = vld [vmem:[#allocation5 + $0xa8] sm:$0xff]
    %v154 = vld [vmem:[#allocation5 + $0xb0] sm:$0xff]
    %v155 = vld [vmem:[#allocation5 + $0xb8] sm:$0xff]
    %v156 = vld [vmem:[#allocation5 + $0xc0] sm:$0xff]
    %v157 = vld [vmem:[#allocation5 + $0xc8] sm:$0xff]
    %v158 = vld [vmem:[#allocation5 + $0xd0] sm:$0xff]
    %v159 = vld [vmem:[#allocation5 + $0xd8] sm:$0xff]
    %v160 = vld [vmem:[#allocation5 + $0xe0] sm:$0xff]
    %v161 = vld [vmem:[#allocation5 + $0xe8] sm:$0xff]
    %v162 = vld [vmem:[#allocation5 + $0xf0] sm:$0xff]
    %v163 = vld [vmem:[#allocation5 + $0xf8] sm:$0xff]
    %v164 = vld [vmem:[#allocation5 + $0x100] sm:$0xff]
    %v165 = vld [vmem:[#allocation5 + $0x108] sm:$0xff]
    %v166 = vld [vmem:[#allocation5 + $0x110] sm:$0xff]
    %v167 = vld [vmem:[#allocation5 + $0x118] sm:$0xff]
    %v168 = vld [vmem:[#allocation5 + $0x120] sm:$0xff]
    %v169 = vld [vmem:[#allocation5 + $0x128] sm:$0xff]
    %v170 = vld [vmem:[#allocation5 + $0x130] sm:$0xff]
    %v171 = vld [vmem:[#allocation5 + $0x138] sm:$0xff]
    %v172 = vld [vmem:[#allocation5 + $0x140] sm:$0xff]
    %v173 = vld [vmem:[#allocation5 + $0x148] sm:$0xff]
    %v174 = vld [vmem:[#allocation5 + $0x150] sm:$0xff]
    %v175 = vld [vmem:[#allocation5 + $0x158] sm:$0xff]
    %v176 = vld [vmem:[#allocation5 + $0x160] sm:$0xff]
    %v177 = vld [vmem:[#allocation5 + $0x168] sm:$0xff]
    %v178 = vld [vmem:[#allocation5 + $0x170] sm:$0xff]
    %v179 = vld [vmem:[#allocation5 + $0x178] sm:$0xff]
    %v180 = vld [vmem:[#allocation5 + $0x180] sm:$0xff]
    %v181 = vld [vmem:[#allocation5 + $0x188] sm:$0xff]
    %v182 = vld [vmem:[#allocation5 + $0x190] sm:$0xff]
    %v183 = vld [vmem:[#allocation5 + $0x198] sm:$0xff]
    %v184 = vld [vmem:[#allocation5 + $0x1a0] sm:$0xff]
    %v185 = vld [vmem:[#allocation5 + $0x1a8] sm:$0xff]
    %v186 = vld [vmem:[#allocation5 + $0x1b0] sm:$0xff]
    %v187 = vld [vmem:[#allocation5 + $0x1b8] sm:$0xff]
    %v188 = vld [vmem:[#allocation5 + $0x1c0] sm:$0xff]
    %v189 = vld [vmem:[#allocation5 + $0x1c8] sm:$0xff]
    %v190 = vld [vmem:[#allocation5 + $0x1d0] sm:$0xff]
    %v191 = vld [vmem:[#allocation5 + $0x1d8] sm:$0xff]
    %v192 = vld [vmem:[#allocation5 + $0x1e0] sm:$0xff]
    %v193 = vld [vmem:[#allocation5 + $0x1e8] sm:$0xff]
    %v194 = vld [vmem:[#allocation5 + $0x1f0] sm:$0xff]
    %v195 = vld [vmem:[#allocation5 + $0x1f8] sm:$0xff]
    %v196 = vld [vmem:[%s4] sm:$0xf]
    %v198 = vperm.slane %v196, 0
    %v199 = vperm.slane %v196, 1
    %v200 = vperm.slane %v196, 2
    %v201 = vperm.slane %v196, 3
    %206 = vmatpush.msra.mxu0 %v192
    %207 = vmatpush.msra.mxu0 %v188
    %208 = vmatpush.msra.mxu0 %v184
    %209 = vmatpush.msra.mxu0 %v180
    %210 = vmatpush.msra.mxu0 %v176
    %211 = vmatpush.msra.mxu0 %v172
    %212 = vmatpush.msra.mxu0 %v168
    %213 = vmatpush.msra.mxu0 %v164
    %214 = vmatpush.msra.mxu0 %v160
    %215 = vmatpush.msra.mxu0 %v156
    %216 = vmatpush.msra.mxu0 %v152
    %217 = vmatpush.msra.mxu0 %v148
    %218 = vmatpush.msra.mxu0 %v144
    %219 = vmatpush.msra.mxu0 %v140
    %220 = vmatpush.msra.mxu0 %v136
    %221 = vmatpush.msra.mxu0 %v132
    %222 = vmatmul.f32.gmra.mxu0 %v124
    %v223 = vpop.f32.mrf.mxu0
    %v224 = vadd.f32 %v198, %v223
    %225 = vmatmul.f32.gmra.mxu0 %v125
    %v226 = vpop.f32.mrf.mxu0
    %v227 = vadd.f32 %v198, %v226
    %228 = vmatmul.f32.gmra.mxu0 %v126
    %v229 = vpop.f32.mrf.mxu0
    %v230 = vadd.f32 %v198, %v229
    %231 = vmatmul.f32.gmra.mxu0 %v127
    %v232 = vpop.f32.mrf.mxu0
    %v233 = vadd.f32 %v198, %v232
    %234 = vmatmul.f32.gmra.mxu0 %v128
    %v235 = vpop.f32.mrf.mxu0
    %v236 = vadd.f32 %v198, %v235
    %237 = vmatmul.f32.gmra.mxu0 %v129
    %v238 = vpop.f32.mrf.mxu0
    %v239 = vadd.f32 %v198, %v238
    %240 = vmatmul.f32.gmra.mxu0 %v130
    %v241 = vpop.f32.mrf.mxu0
    %v242 = vadd.f32 %v198, %v241
    %243 = vmatmul.f32.gmra.mxu0 %v131
    %v244 = vpop.f32.mrf.mxu0
    %v245 = vadd.f32 %v198, %v244
    %246 = vdwg.mxu0
    %247 = vmatpush.msra.mxu0 %v193
    %248 = vmatpush.msra.mxu0 %v189
    %249 = vmatpush.msra.mxu0 %v185
    %250 = vmatpush.msra.mxu0 %v181
    %251 = vmatpush.msra.mxu0 %v177
    %252 = vmatpush.msra.mxu0 %v173
    %253 = vmatpush.msra.mxu0 %v169
    %254 = vmatpush.msra.mxu0 %v165
    %255 = vmatpush.msra.mxu0 %v161
    %256 = vmatpush.msra.mxu0 %v157
    %257 = vmatpush.msra.mxu0 %v153
    %258 = vmatpush.msra.mxu0 %v149
    %259 = vmatpush.msra.mxu0 %v145
    %260 = vmatpush.msra.mxu0 %v141
    %261 = vmatpush.msra.mxu0 %v137
    %262 = vmatpush.msra.mxu0 %v133
    %263 = vmatmul.f32.gmra.mxu0 %v124
    %v264 = vpop.f32.mrf.mxu0
    %v265 = vadd.f32 %v199, %v264
    %266 = vmatmul.f32.gmra.mxu0 %v125
    %v267 = vpop.f32.mrf.mxu0
    %v268 = vadd.f32 %v199, %v267
    %269 = vmatmul.f32.gmra.mxu0 %v126
    %v270 = vpop.f32.mrf.mxu0
    %v271 = vadd.f32 %v199, %v270
    %272 = vmatmul.f32.gmra.mxu0 %v127
    %v273 = vpop.f32.mrf.mxu0
    %v274 = vadd.f32 %v199, %v273
    %275 = vmatmul.f32.gmra.mxu0 %v128
    %v276 = vpop.f32.mrf.mxu0
    %v277 = vadd.f32 %v199, %v276
    %278 = vmatmul.f32.gmra.mxu0 %v129
    %v279 = vpop.f32.mrf.mxu0
    %v280 = vadd.f32 %v199, %v279
    %281 = vmatmul.f32.gmra.mxu0 %v130
    %v282 = vpop.f32.mrf.mxu0
    %v283 = vadd.f32 %v199, %v282
    %284 = vmatmul.f32.gmra.mxu0 %v131
    %v285 = vpop.f32.mrf.mxu0
    %v286 = vadd.f32 %v199, %v285
    %287 = vdwg.mxu0
    %288 = vmatpush.msra.mxu0 %v194
    %289 = vmatpush.msra.mxu0 %v190
    %290 = vmatpush.msra.mxu0 %v186
    %291 = vmatpush.msra.mxu0 %v182
    %292 = vmatpush.msra.mxu0 %v178
    %293 = vmatpush.msra.mxu0 %v174
    %294 = vmatpush.msra.mxu0 %v170
    %295 = vmatpush.msra.mxu0 %v166
    %296 = vmatpush.msra.mxu0 %v162
    %297 = vmatpush.msra.mxu0 %v158
    %298 = vmatpush.msra.mxu0 %v154
    %299 = vmatpush.msra.mxu0 %v150
    %300 = vmatpush.msra.mxu0 %v146
    %301 = vmatpush.msra.mxu0 %v142
    %302 = vmatpush.msra.mxu0 %v138
    %303 = vmatpush.msra.mxu0 %v134
    %304 = vmatmul.f32.gmra.mxu0 %v124
    %v305 = vpop.f32.mrf.mxu0
    %v306 = vadd.f32 %v200, %v305
    %307 = vmatmul.f32.gmra.mxu0 %v125
    %v308 = vpop.f32.mrf.mxu0
    %v309 = vadd.f32 %v200, %v308
    %310 = vmatmul.f32.gmra.mxu0 %v126
    %v311 = vpop.f32.mrf.mxu0
    %v312 = vadd.f32 %v200, %v311
    %313 = vmatmul.f32.gmra.mxu0 %v127
    %v314 = vpop.f32.mrf.mxu0
    %v315 = vadd.f32 %v200, %v314
    %316 = vmatmul.f32.gmra.mxu0 %v128
    %v317 = vpop.f32.mrf.mxu0
    %v318 = vadd.f32 %v200, %v317
    %319 = vmatmul.f32.gmra.mxu0 %v129
    %v320 = vpop.f32.mrf.mxu0
    %v321 = vadd.f32 %v200, %v320
    %322 = vmatmul.f32.gmra.mxu0 %v130
    %v323 = vpop.f32.mrf.mxu0
    %v324 = vadd.f32 %v200, %v323
    %325 = vmatmul.f32.gmra.mxu0 %v131
    %v326 = vpop.f32.mrf.mxu0
    %v327 = vadd.f32 %v200, %v326
    %328 = vdwg.mxu0
    %329 = vmatpush.msra.mxu0 %v195
    %330 = vmatpush.msra.mxu0 %v191
    %331 = vmatpush.msra.mxu0 %v187
    %332 = vmatpush.msra.mxu0 %v183
    %333 = vmatpush.msra.mxu0 %v179
    %334 = vmatpush.msra.mxu0 %v175
    %335 = vmatpush.msra.mxu0 %v171
    %336 = vmatpush.msra.mxu0 %v167
    %337 = vmatpush.msra.mxu0 %v163
    %338 = vmatpush.msra.mxu0 %v159
    %339 = vmatpush.msra.mxu0 %v155
    %340 = vmatpush.msra.mxu0 %v151
    %341 = vmatpush.msra.mxu0 %v147
    %342 = vmatpush.msra.mxu0 %v143
    %343 = vmatpush.msra.mxu0 %v139
    %344 = vmatpush.msra.mxu0 %v135
    %345 = vmatmul.f32.gmra.mxu0 %v124
    %v346 = vpop.f32.mrf.mxu0
    %v347 = vadd.f32 %v201, %v346
    %348 = vmatmul.f32.gmra.mxu0 %v125
    %v349 = vpop.f32.mrf.mxu0
    %v350 = vadd.f32 %v201, %v349
    %351 = vmatmul.f32.gmra.mxu0 %v126
    %v352 = vpop.f32.mrf.mxu0
    %v353 = vadd.f32 %v201, %v352
    %354 = vmatmul.f32.gmra.mxu0 %v127
    %v355 = vpop.f32.mrf.mxu0
    %v356 = vadd.f32 %v201, %v355
    %357 = vmatmul.f32.gmra.mxu0 %v128
    %v358 = vpop.f32.mrf.mxu0
    %v359 = vadd.f32 %v201, %v358
    %360 = vmatmul.f32.gmra.mxu0 %v129
    %v361 = vpop.f32.mrf.mxu0
    %v362 = vadd.f32 %v201, %v361
    %363 = vmatmul.f32.gmra.mxu0 %v130
    %v364 = vpop.f32.mrf.mxu0
    %v365 = vadd.f32 %v201, %v364
    %366 = vmatmul.f32.gmra.mxu0 %v131
    %v367 = vpop.f32.mrf.mxu0
    %v368 = vadd.f32 %v201, %v367
    %369 = vdwg.mxu0
    %370 = vst [vmem:[#allocation2] sm:$0xff] %v224
    %371 = vst [vmem:[#allocation2 + $0x8] sm:$0xff] %v265
    %372 = vst [vmem:[#allocation2 + $0x10] sm:$0xff] %v306
    %373 = vst [vmem:[#allocation2 + $0x18] sm:$0xff] %v347
    %374 = vst [vmem:[#allocation2 + $0x20] sm:$0xff] %v227
    %375 = vst [vmem:[#allocation2 + $0x28] sm:$0xff] %v268
    %376 = vst [vmem:[#allocation2 + $0x30] sm:$0xff] %v309
    %377 = vst [vmem:[#allocation2 + $0x38] sm:$0xff] %v350
    %378 = vst [vmem:[#allocation2 + $0x40] sm:$0xff] %v230
    %379 = vst [vmem:[#allocation2 + $0x48] sm:$0xff] %v271
    %380 = vst [vmem:[#allocation2 + $0x50] sm:$0xff] %v312
    %381 = vst [vmem:[#allocation2 + $0x58] sm:$0xff] %v353
    %382 = vst [vmem:[#allocation2 + $0x60] sm:$0xff] %v233
    %383 = vst [vmem:[#allocation2 + $0x68] sm:$0xff] %v274
    %384 = vst [vmem:[#allocation2 + $0x70] sm:$0xff] %v315
    %385 = vst [vmem:[#allocation2 + $0x78] sm:$0xff] %v356
    %386 = vst [vmem:[#allocation2 + $0x80] sm:$0xff] %v236
    %387 = vst [vmem:[#allocation2 + $0x88] sm:$0xff] %v277
    %388 = vst [vmem:[#allocation2 + $0x90] sm:$0xff] %v318
    %389 = vst [vmem:[#allocation2 + $0x98] sm:$0xff] %v359
    %390 = vst [vmem:[#allocation2 + $0xa0] sm:$0xff] %v239
    %391 = vst [vmem:[#allocation2 + $0xa8] sm:$0xff] %v280
    %392 = vst [vmem:[#allocation2 + $0xb0] sm:$0xff] %v321
    %393 = vst [vmem:[#allocation2 + $0xb8] sm:$0xff] %v362
    %394 = vst [vmem:[#allocation2 + $0xc0] sm:$0xff] %v242
    %395 = vst [vmem:[#allocation2 + $0xc8] sm:$0xff] %v283
    %396 = vst [vmem:[#allocation2 + $0xd0] sm:$0xff] %v324
    %397 = vst [vmem:[#allocation2 + $0xd8] sm:$0xff] %v365
    %398 = vst [vmem:[#allocation2 + $0xe0] sm:$0xff] %v245
    %399 = vst [vmem:[#allocation2 + $0xe8] sm:$0xff] %v286
    %400 = vst [vmem:[#allocation2 + $0xf0] sm:$0xff] %v327
    %401 = vst [vmem:[#allocation2 + $0xf8] sm:$0xff] %v368
    %v402 = vld [vmem:[%s1] sm:$0xff]
    %v403 = vld [vmem:[%s1 + $0x8] sm:$0xff]
    %v404 = vld [vmem:[%s1 + $0x10] sm:$0xff]
    %v405 = vld [vmem:[%s1 + $0x18] sm:$0xff]
    %v406 = vld [vmem:[#allocation9] sm:$0xff]
    %v407 = vld [vmem:[#allocation9 + $0x8] sm:$0xff]
    %v408 = vld [vmem:[#allocation9 + $0x10] sm:$0xff]
    %v409 = vld [vmem:[#allocation9 + $0x18] sm:$0xff]
    %v410 = vld [vmem:[#allocation9 + $0x20] sm:$0xff]
    %v411 = vld [vmem:[#allocation9 + $0x28] sm:$0xff]
    %v412 = vld [vmem:[#allocation9 + $0x30] sm:$0xff]
    %v413 = vld [vmem:[#allocation9 + $0x38] sm:$0xff]
    %v414 = vld [vmem:[#allocation9 + $0x40] sm:$0xff]
    %v415 = vld [vmem:[#allocation9 + $0x48] sm:$0xff]
    %v416 = vld [vmem:[#allocation9 + $0x50] sm:$0xff]
    %v417 = vld [vmem:[#allocation9 + $0x58] sm:$0xff]
    %v418 = vld [vmem:[#allocation9 + $0x60] sm:$0xff]
    %v419 = vld [vmem:[#allocation9 + $0x68] sm:$0xff]
    %v420 = vld [vmem:[#allocation9 + $0x70] sm:$0xff]
    %v421 = vld [vmem:[#allocation9 + $0x78] sm:$0xff]
    %v422 = vld [vmem:[#allocation9 + $0x80] sm:$0xff]
    %v423 = vld [vmem:[#allocation9 + $0x88] sm:$0xff]
    %v424 = vld [vmem:[#allocation9 + $0x90] sm:$0xff]
    %v425 = vld [vmem:[#allocation9 + $0x98] sm:$0xff]
    %v426 = vld [vmem:[#allocation9 + $0xa0] sm:$0xff]
    %v427 = vld [vmem:[#allocation9 + $0xa8] sm:$0xff]
    %v428 = vld [vmem:[#allocation9 + $0xb0] sm:$0xff]
    %v429 = vld [vmem:[#allocation9 + $0xb8] sm:$0xff]
    %v430 = vld [vmem:[#allocation9 + $0xc0] sm:$0xff]
    %v431 = vld [vmem:[#allocation9 + $0xc8] sm:$0xff]
    %v432 = vld [vmem:[#allocation9 + $0xd0] sm:$0xff]
    %v433 = vld [vmem:[#allocation9 + $0xd8] sm:$0xff]
    %v434 = vld [vmem:[#allocation9 + $0xe0] sm:$0xff]
    %v435 = vld [vmem:[#allocation9 + $0xe8] sm:$0xff]
    %v436 = vld [vmem:[#allocation9 + $0xf0] sm:$0xff]
    %v437 = vld [vmem:[#allocation9 + $0xf8] sm:$0xff]
    %v438 = vld [vmem:[#allocation9 + $0x100] sm:$0xff]
    %v439 = vld [vmem:[#allocation9 + $0x108] sm:$0xff]
    %v440 = vld [vmem:[#allocation9 + $0x110] sm:$0xff]
    %v441 = vld [vmem:[#allocation9 + $0x118] sm:$0xff]
    %v442 = vld [vmem:[#allocation9 + $0x120] sm:$0xff]
    %v443 = vld [vmem:[#allocation9 + $0x128] sm:$0xff]
    %v444 = vld [vmem:[#allocation9 + $0x130] sm:$0xff]
    %v445 = vld [vmem:[#allocation9 + $0x138] sm:$0xff]
    %v446 = vld [vmem:[#allocation9 + $0x140] sm:$0xff]
    %v447 = vld [vmem:[#allocation9 + $0x148] sm:$0xff]
    %v448 = vld [vmem:[#allocation9 + $0x150] sm:$0xff]
    %v449 = vld [vmem:[#allocation9 + $0x158] sm:$0xff]
    %v450 = vld [vmem:[#allocation9 + $0x160] sm:$0xff]
    %v451 = vld [vmem:[#allocation9 + $0x168] sm:$0xff]
    %v452 = vld [vmem:[#allocation9 + $0x170] sm:$0xff]
    %v453 = vld [vmem:[#allocation9 + $0x178] sm:$0xff]
    %v454 = vld [vmem:[#allocation9 + $0x180] sm:$0xff]
    %v455 = vld [vmem:[#allocation9 + $0x188] sm:$0xff]
    %v456 = vld [vmem:[#allocation9 + $0x190] sm:$0xff]
    %v457 = vld [vmem:[#allocation9 + $0x198] sm:$0xff]
    %v458 = vld [vmem:[#allocation9 + $0x1a0] sm:$0xff]
    %v459 = vld [vmem:[#allocation9 + $0x1a8] sm:$0xff]
    %v460 = vld [vmem:[#allocation9 + $0x1b0] sm:$0xff]
    %v461 = vld [vmem:[#allocation9 + $0x1b8] sm:$0xff]
    %v462 = vld [vmem:[#allocation9 + $0x1c0] sm:$0xff]
    %v463 = vld [vmem:[#allocation9 + $0x1c8] sm:$0xff]
    %v464 = vld [vmem:[#allocation9 + $0x1d0] sm:$0xff]
    %v465 = vld [vmem:[#allocation9 + $0x1d8] sm:$0xff]
    %v466 = vld [vmem:[#allocation9 + $0x1e0] sm:$0xff]
    %v467 = vld [vmem:[#allocation9 + $0x1e8] sm:$0xff]
    %v468 = vld [vmem:[#allocation9 + $0x1f0] sm:$0xff]
    %v469 = vld [vmem:[#allocation9 + $0x1f8] sm:$0xff]
    %470 = vmatpush.msra.mxu0 %v466
    %471 = vmatpush.msra.mxu0 %v462
    %472 = vmatpush.msra.mxu0 %v458
    %473 = vmatpush.msra.mxu0 %v454
    %474 = vmatpush.msra.mxu0 %v450
    %475 = vmatpush.msra.mxu0 %v446
    %476 = vmatpush.msra.mxu0 %v442
    %477 = vmatpush.msra.mxu0 %v438
    %478 = vmatpush.msra.mxu0 %v434
    %479 = vmatpush.msra.mxu0 %v430
    %480 = vmatpush.msra.mxu0 %v426
    %481 = vmatpush.msra.mxu0 %v422
    %482 = vmatpush.msra.mxu0 %v418
    %483 = vmatpush.msra.mxu0 %v414
    %484 = vmatpush.msra.mxu0 %v410
    %485 = vmatpush.msra.mxu0 %v406
    %486 = vmatmul.f32.gmra.mxu0 %v402
    %v487 = vpop.f32.mrf.mxu0
    %v488 = vadd.f32 0.0, %v487
    %489 = vmatmul.f32.gmra.mxu0 %v403
    %v490 = vpop.f32.mrf.mxu0
    %v491 = vadd.f32 0.0, %v490
    %492 = vmatmul.f32.gmra.mxu0 %v404
    %v493 = vpop.f32.mrf.mxu0
    %v494 = vadd.f32 0.0, %v493
    %495 = vmatmul.f32.gmra.mxu0 %v405
    %v496 = vpop.f32.mrf.mxu0
    %v497 = vadd.f32 0.0, %v496
    %498 = vdwg.mxu0
    %499 = vmatpush.msra.mxu0 %v467
    %500 = vmatpush.msra.mxu0 %v463
    %501 = vmatpush.msra.mxu0 %v459
    %502 = vmatpush.msra.mxu0 %v455
    %503 = vmatpush.msra.mxu0 %v451
    %504 = vmatpush.msra.mxu0 %v447
    %505 = vmatpush.msra.mxu0 %v443
    %506 = vmatpush.msra.mxu0 %v439
    %507 = vmatpush.msra.mxu0 %v435
    %508 = vmatpush.msra.mxu0 %v431
    %509 = vmatpush.msra.mxu0 %v427
    %510 = vmatpush.msra.mxu0 %v423
    %511 = vmatpush.msra.mxu0 %v419
    %512 = vmatpush.msra.mxu0 %v415
    %513 = vmatpush.msra.mxu0 %v411
    %514 = vmatpush.msra.mxu0 %v407
    %515 = vmatmul.f32.gmra.mxu0 %v402
    %v516 = vpop.f32.mrf.mxu0
    %v517 = vadd.f32 0.0, %v516
    %518 = vmatmul.f32.gmra.mxu0 %v403
    %v519 = vpop.f32.mrf.mxu0
    %v520 = vadd.f32 0.0, %v519
    %521 = vmatmul.f32.gmra.mxu0 %v404
    %v522 = vpop.f32.mrf.mxu0
    %v523 = vadd.f32 0.0, %v522
    %524 = vmatmul.f32.gmra.mxu0 %v405
    %v525 = vpop.f32.mrf.mxu0
    %v526 = vadd.f32 0.0, %v525
    %527 = vdwg.mxu0
    %528 = vmatpush.msra.mxu0 %v468
    %529 = vmatpush.msra.mxu0 %v464
    %530 = vmatpush.msra.mxu0 %v460
    %531 = vmatpush.msra.mxu0 %v456
    %532 = vmatpush.msra.mxu0 %v452
    %533 = vmatpush.msra.mxu0 %v448
    %534 = vmatpush.msra.mxu0 %v444
    %535 = vmatpush.msra.mxu0 %v440
    %536 = vmatpush.msra.mxu0 %v436
    %537 = vmatpush.msra.mxu0 %v432
    %538 = vmatpush.msra.mxu0 %v428
    %539 = vmatpush.msra.mxu0 %v424
    %540 = vmatpush.msra.mxu0 %v420
    %541 = vmatpush.msra.mxu0 %v416
    %542 = vmatpush.msra.mxu0 %v412
    %543 = vmatpush.msra.mxu0 %v408
    %544 = vmatmul.f32.gmra.mxu0 %v402
    %v545 = vpop.f32.mrf.mxu0
    %v546 = vadd.f32 0.0, %v545
    %547 = vmatmul.f32.gmra.mxu0 %v403
    %v548 = vpop.f32.mrf.mxu0
    %v549 = vadd.f32 0.0, %v548
    %550 = vmatmul.f32.gmra.mxu0 %v404
    %v551 = vpop.f32.mrf.mxu0
    %v552 = vadd.f32 0.0, %v551
    %553 = vmatmul.f32.gmra.mxu0 %v405
    %v554 = vpop.f32.mrf.mxu0
    %v555 = vadd.f32 0.0, %v554
    %556 = vdwg.mxu0
    %557 = vmatpush.msra.mxu0 %v469
    %558 = vmatpush.msra.mxu0 %v465
    %559 = vmatpush.msra.mxu0 %v461
    %560 = vmatpush.msra.mxu0 %v457
    %561 = vmatpush.msra.mxu0 %v453
    %562 = vmatpush.msra.mxu0 %v449
    %563 = vmatpush.msra.mxu0 %v445
    %564 = vmatpush.msra.mxu0 %v441
    %565 = vmatpush.msra.mxu0 %v437
    %566 = vmatpush.msra.mxu0 %v433
    %567 = vmatpush.msra.mxu0 %v429
    %568 = vmatpush.msra.mxu0 %v425
    %569 = vmatpush.msra.mxu0 %v421
    %570 = vmatpush.msra.mxu0 %v417
    %571 = vmatpush.msra.mxu0 %v413
    %572 = vmatpush.msra.mxu0 %v409
    %573 = vmatmul.f32.gmra.mxu0 %v402
    %v574 = vpop.f32.mrf.mxu0
    %v575 = vadd.f32 0.0, %v574
    %576 = vmatmul.f32.gmra.mxu0 %v403
    %v577 = vpop.f32.mrf.mxu0
    %v578 = vadd.f32 0.0, %v577
    %579 = vmatmul.f32.gmra.mxu0 %v404
    %v580 = vpop.f32.mrf.mxu0
    %v581 = vadd.f32 0.0, %v580
    %582 = vmatmul.f32.gmra.mxu0 %v405
    %v583 = vpop.f32.mrf.mxu0
    %v584 = vadd.f32 0.0, %v583
    %585 = vdwg.mxu0
    %586 = vst [vmem:[#allocation3] sm:$0xff] %v488
    %587 = vst [vmem:[#allocation3 + $0x8] sm:$0xff] %v517
    %588 = vst [vmem:[#allocation3 + $0x10] sm:$0xff] %v546
    %589 = vst [vmem:[#allocation3 + $0x18] sm:$0xff] %v575
    %590 = vst [vmem:[#allocation3 + $0x20] sm:$0xff] %v491
    %591 = vst [vmem:[#allocation3 + $0x28] sm:$0xff] %v520
    %592 = vst [vmem:[#allocation3 + $0x30] sm:$0xff] %v549
    %593 = vst [vmem:[#allocation3 + $0x38] sm:$0xff] %v578
    %594 = vst [vmem:[#allocation3 + $0x40] sm:$0xff] %v494
    %595 = vst [vmem:[#allocation3 + $0x48] sm:$0xff] %v523
    %596 = vst [vmem:[#allocation3 + $0x50] sm:$0xff] %v552
    %597 = vst [vmem:[#allocation3 + $0x58] sm:$0xff] %v581
    %598 = vst [vmem:[#allocation3 + $0x60] sm:$0xff] %v497
    %599 = vst [vmem:[#allocation3 + $0x68] sm:$0xff] %v526
    %600 = vst [vmem:[#allocation3 + $0x70] sm:$0xff] %v555
    %601 = vst [vmem:[#allocation3 + $0x78] sm:$0xff] %v584
    %v602 = vld [vmem:[#allocation2] sm:$0xff]
    %v603 = vld [vmem:[#allocation2 + $0x8] sm:$0xff]
    %v604 = vld [vmem:[#allocation2 + $0x10] sm:$0xff]
    %v605 = vld [vmem:[#allocation2 + $0x18] sm:$0xff]
    %v606 = vld [vmem:[#allocation7] sm:$0xff]
    %v607 = vld [vmem:[#allocation7 + $0x8] sm:$0xff]
    %v608 = vld [vmem:[#allocation7 + $0x10] sm:$0xff]
    %v609 = vld [vmem:[#allocation7 + $0x18] sm:$0xff]
    %v610 = vld [vmem:[#allocation7 + $0x20] sm:$0xff]
    %v611 = vld [vmem:[#allocation7 + $0x28] sm:$0xff]
    %v612 = vld [vmem:[#allocation7 + $0x30] sm:$0xff]
    %v613 = vld [vmem:[#allocation7 + $0x38] sm:$0xff]
    %v614 = vld [vmem:[#allocation7 + $0x40] sm:$0xff]
    %v615 = vld [vmem:[#allocation7 + $0x48] sm:$0xff]
    %v616 = vld [vmem:[#allocation7 + $0x50] sm:$0xff]
    %v617 = vld [vmem:[#allocation7 + $0x58] sm:$0xff]
    %v618 = vld [vmem:[#allocation7 + $0x60] sm:$0xff]
    %v619 = vld [vmem:[#allocation7 + $0x68] sm:$0xff]
    %v620 = vld [vmem:[#allocation7 + $0x70] sm:$0xff]
    %v621 = vld [vmem:[#allocation7 + $0x78] sm:$0xff]
    %v622 = vld [vmem:[#allocation7 + $0x80] sm:$0xff]
    %v623 = vld [vmem:[#allocation7 + $0x88] sm:$0xff]
    %v624 = vld [vmem:[#allocation7 + $0x90] sm:$0xff]
    %v625 = vld [vmem:[#allocation7 + $0x98] sm:$0xff]
    %v626 = vld [vmem:[#allocation7 + $0xa0] sm:$0xff]
    %v627 = vld [vmem:[#allocation7 + $0xa8] sm:$0xff]
    %v628 = vld [vmem:[#allocation7 + $0xb0] sm:$0xff]
    %v629 = vld [vmem:[#allocation7 + $0xb8] sm:$0xff]
    %v630 = vld [vmem:[#allocation7 + $0xc0] sm:$0xff]
    %v631 = vld [vmem:[#allocation7 + $0xc8] sm:$0xff]
    %v632 = vld [vmem:[#allocation7 + $0xd0] sm:$0xff]
    %v633 = vld [vmem:[#allocation7 + $0xd8] sm:$0xff]
    %v634 = vld [vmem:[#allocation7 + $0xe0] sm:$0xff]
    %v635 = vld [vmem:[#allocation7 + $0xe8] sm:$0xff]
    %v636 = vld [vmem:[#allocation7 + $0xf0] sm:$0xff]
    %v637 = vld [vmem:[#allocation7 + $0xf8] sm:$0xff]
    %v638 = vld [vmem:[#allocation7 + $0x100] sm:$0xff]
    %v639 = vld [vmem:[#allocation7 + $0x108] sm:$0xff]
    %v640 = vld [vmem:[#allocation7 + $0x110] sm:$0xff]
    %v641 = vld [vmem:[#allocation7 + $0x118] sm:$0xff]
    %v642 = vld [vmem:[#allocation7 + $0x120] sm:$0xff]
    %v643 = vld [vmem:[#allocation7 + $0x128] sm:$0xff]
    %v644 = vld [vmem:[#allocation7 + $0x130] sm:$0xff]
    %v645 = vld [vmem:[#allocation7 + $0x138] sm:$0xff]
    %v646 = vld [vmem:[#allocation7 + $0x140] sm:$0xff]
    %v647 = vld [vmem:[#allocation7 + $0x148] sm:$0xff]
    %v648 = vld [vmem:[#allocation7 + $0x150] sm:$0xff]
    %v649 = vld [vmem:[#allocation7 + $0x158] sm:$0xff]
    %v650 = vld [vmem:[#allocation7 + $0x160] sm:$0xff]
    %v651 = vld [vmem:[#allocation7 + $0x168] sm:$0xff]
    %v652 = vld [vmem:[#allocation7 + $0x170] sm:$0xff]
    %v653 = vld [vmem:[#allocation7 + $0x178] sm:$0xff]
    %v654 = vld [vmem:[#allocation7 + $0x180] sm:$0xff]
    %v655 = vld [vmem:[#allocation7 + $0x188] sm:$0xff]
    %v656 = vld [vmem:[#allocation7 + $0x190] sm:$0xff]
    %v657 = vld [vmem:[#allocation7 + $0x198] sm:$0xff]
    %v658 = vld [vmem:[#allocation7 + $0x1a0] sm:$0xff]
    %v659 = vld [vmem:[#allocation7 + $0x1a8] sm:$0xff]
    %v660 = vld [vmem:[#allocation7 + $0x1b0] sm:$0xff]
    %v661 = vld [vmem:[#allocation7 + $0x1b8] sm:$0xff]
    %v662 = vld [vmem:[#allocation7 + $0x1c0] sm:$0xff]
    %v663 = vld [vmem:[#allocation7 + $0x1c8] sm:$0xff]
    %v664 = vld [vmem:[#allocation7 + $0x1d0] sm:$0xff]
    %v665 = vld [vmem:[#allocation7 + $0x1d8] sm:$0xff]
    %v666 = vld [vmem:[#allocation7 + $0x1e0] sm:$0xff]
    %v667 = vld [vmem:[#allocation7 + $0x1e8] sm:$0xff]
    %v668 = vld [vmem:[#allocation7 + $0x1f0] sm:$0xff]
    %v669 = vld [vmem:[#allocation7 + $0x1f8] sm:$0xff]
    %670 = vmatpush.msra.mxu0 %v666
    %671 = vmatpush.msra.mxu0 %v662
    %672 = vmatpush.msra.mxu0 %v658
    %673 = vmatpush.msra.mxu0 %v654
    %674 = vmatpush.msra.mxu0 %v650
    %675 = vmatpush.msra.mxu0 %v646
    %676 = vmatpush.msra.mxu0 %v642
    %677 = vmatpush.msra.mxu0 %v638
    %678 = vmatpush.msra.mxu0 %v634
    %679 = vmatpush.msra.mxu0 %v630
    %680 = vmatpush.msra.mxu0 %v626
    %681 = vmatpush.msra.mxu0 %v622
    %682 = vmatpush.msra.mxu0 %v618
    %683 = vmatpush.msra.mxu0 %v614
    %684 = vmatpush.msra.mxu0 %v610
    %685 = vmatpush.msra.mxu0 %v606
    %686 = vmatmul.f32.gmra.mxu0 0.0
    %v687 = vpop.f32.mrf.mxu0
    %v688 = vadd.f32 0.0, %v687
    %689 = vdwg.mxu0
    %690 = vmatpush.msra.mxu0 %v667
    %691 = vmatpush.msra.mxu0 %v663
    %692 = vmatpush.msra.mxu0 %v659
    %693 = vmatpush.msra.mxu0 %v655
    %694 = vmatpush.msra.mxu0 %v651
    %695 = vmatpush.msra.mxu0 %v647
    %696 = vmatpush.msra.mxu0 %v643
    %697 = vmatpush.msra.mxu0 %v639
    %698 = vmatpush.msra.mxu0 %v635
    %699 = vmatpush.msra.mxu0 %v631
    %700 = vmatpush.msra.mxu0 %v627
    %701 = vmatpush.msra.mxu0 %v623
    %702 = vmatpush.msra.mxu0 %v619
    %703 = vmatpush.msra.mxu0 %v615
    %704 = vmatpush.msra.mxu0 %v611
    %705 = vmatpush.msra.mxu0 %v607
    %706 = vmatmul.f32.gmra.mxu0 0.0
    %v707 = vpop.f32.mrf.mxu0
    %v708 = vadd.f32 0.0, %v707
    %709 = vdwg.mxu0
    %710 = vmatpush.msra.mxu0 %v668
    %711 = vmatpush.msra.mxu0 %v664
    %712 = vmatpush.msra.mxu0 %v660
    %713 = vmatpush.msra.mxu0 %v656
    %714 = vmatpush.msra.mxu0 %v652
    %715 = vmatpush.msra.mxu0 %v648
    %716 = vmatpush.msra.mxu0 %v644
    %717 = vmatpush.msra.mxu0 %v640
    %718 = vmatpush.msra.mxu0 %v636
    %719 = vmatpush.msra.mxu0 %v632
    %720 = vmatpush.msra.mxu0 %v628
    %721 = vmatpush.msra.mxu0 %v624
    %722 = vmatpush.msra.mxu0 %v620
    %723 = vmatpush.msra.mxu0 %v616
    %724 = vmatpush.msra.mxu0 %v612
    %725 = vmatpush.msra.mxu0 %v608
    %726 = vmatmul.f32.gmra.mxu0 0.0
    %v727 = vpop.f32.mrf.mxu0
    %v728 = vadd.f32 0.0, %v727
    %729 = vdwg.mxu0
    %730 = vmatpush.msra.mxu0 %v669
    %731 = vmatpush.msra.mxu0 %v665
    %732 = vmatpush.msra.mxu0 %v661
    %733 = vmatpush.msra.mxu0 %v657
    %734 = vmatpush.msra.mxu0 %v653
    %735 = vmatpush.msra.mxu0 %v649
    %736 = vmatpush.msra.mxu0 %v645
    %737 = vmatpush.msra.mxu0 %v641
    %738 = vmatpush.msra.mxu0 %v637
    %739 = vmatpush.msra.mxu0 %v633
    %740 = vmatpush.msra.mxu0 %v629
    %741 = vmatpush.msra.mxu0 %v625
    %742 = vmatpush.msra.mxu0 %v621
    %743 = vmatpush.msra.mxu0 %v617
    %744 = vmatpush.msra.mxu0 %v613
    %745 = vmatpush.msra.mxu0 %v609
    %746 = vmatmul.f32.gmra.mxu0 0.0
    %v747 = vpop.f32.mrf.mxu0
    %v748 = vadd.f32 0.0, %v747
    %749 = vdwg.mxu0
    %v750 = vadd.f32 %v602, %v688
    %v751 = vadd.f32 %v603, %v708
    %v752 = vadd.f32 %v604, %v728
    %v753 = vadd.f32 %v605, %v748
    %v754 = vxor.u32 %v750, 2147483648
    %v755 = vxor.u32 %v751, 2147483648
    %v756 = vxor.u32 %v752, 2147483648
    %v757 = vmul.f32 %v754, 1.442695
    %v758 = vpow.pop %v757
    %v759 = vmul.f32 %v755, 1.442695
    %v760 = vpow.pop %v759
    %v761 = vmul.f32 %v756, 1.442695
    %v762 = vpow.pop %v761
    %v763 = vadd.f32 %v758, 1.0
    %v764 = vadd.f32 %v760, 1.0
    %v765 = vadd.f32 %v762, 1.0
    %v766 = vrcp.pop %v763
    %v767 = vmul.f32 %v763, %v766
    %v768 = vsub.f32 1.0, %v767
    %v769 = vmul.f32 %v766, %v768
    %v770 = vadd.f32 %v766, %v769
    %vm771 = vweird.f32 %v763
    %vm772 = vweird.f32 %v766
    %vm773 = vmor %vm771, %vm772
    %v774 = vsel %vm773, %v766, %v770
    %v775 = vand.u32 2147483647, %v763
    %vm776 = vcmp.eq.f32.partialorder %v775, 8.507059e+37
    %v777 = vand.u32 %v763, 2147483648
    %v778 = vor.u32 1.1754944e-38, %v777
    %v779 = vsel %vm776, %v778, %v774
    %v780 = vmul.f32 1.0, %v779
    %v781 = vrcp.pop %v764
    %v782 = vmul.f32 %v764, %v781
    %v783 = vsub.f32 1.0, %v782
    %v784 = vmul.f32 %v781, %v783
    %v785 = vadd.f32 %v781, %v784
    %vm786 = vweird.f32 %v764
    %vm787 = vweird.f32 %v781
    %vm788 = vmor %vm786, %vm787
    %v789 = vsel %vm788, %v781, %v785
    %v790 = vand.u32 2147483647, %v764
    %vm791 = vcmp.eq.f32.partialorder %v790, 8.507059e+37
    %v792 = vand.u32 %v764, 2147483648
    %v793 = vor.u32 1.1754944e-38, %v792
    %v794 = vsel %vm791, %v793, %v789
    %v795 = vmul.f32 1.0, %v794
    %v796 = vrcp.pop %v765
    %v797 = vmul.f32 %v765, %v796
    %v798 = vsub.f32 1.0, %v797
    %v799 = vmul.f32 %v796, %v798
    %v800 = vadd.f32 %v796, %v799
    %vm801 = vweird.f32 %v765
    %vm802 = vweird.f32 %v796
    %vm803 = vmor %vm801, %vm802
    %v804 = vsel %vm803, %v796, %v800
    %v805 = vand.u32 2147483647, %v765
    %vm806 = vcmp.eq.f32.partialorder %v805, 8.507059e+37
    %v807 = vand.u32 %v765, 2147483648
    %v808 = vor.u32 1.1754944e-38, %v807
    %v809 = vsel %vm806, %v808, %v804
    %v810 = vmul.f32 1.0, %v809
    %v811 = vtanh.pop %v753
    %v812 = vmul.f32 %v795, 0.0
    %v813 = vmul.f32 %v780, %v811
    %v814 = vadd.f32 %v812, %v813
    %v815 = vtanh.pop %v814
    %v816 = vmul.f32 %v810, %v815
    %v817 = vld [vmem:[#allocation2 + $0x20] sm:$0xff]
    %v818 = vld [vmem:[#allocation2 + $0x28] sm:$0xff]
    %v819 = vld [vmem:[#allocation2 + $0x30] sm:$0xff]
    %v820 = vld [vmem:[#allocation2 + $0x38] sm:$0xff]
    %821 = vmatpush.msra.mxu0 %v666
    %822 = vmatpush.msra.mxu0 %v662
    %823 = vmatpush.msra.mxu0 %v658
    %824 = vmatpush.msra.mxu0 %v654
    %825 = vmatpush.msra.mxu0 %v650
    %826 = vmatpush.msra.mxu0 %v646
    %827 = vmatpush.msra.mxu0 %v642
    %828 = vmatpush.msra.mxu0 %v638
    %829 = vmatpush.msra.mxu0 %v634
    %830 = vmatpush.msra.mxu0 %v630
    %831 = vmatpush.msra.mxu0 %v626
    %832 = vmatpush.msra.mxu0 %v622
    %833 = vmatpush.msra.mxu0 %v618
    %834 = vmatpush.msra.mxu0 %v614
    %835 = vmatpush.msra.mxu0 %v610
    %836 = vmatpush.msra.mxu0 %v606
    %837 = vmatmul.f32.gmra.mxu0 %v816
    %v838 = vpop.f32.mrf.mxu0
    %v839 = vadd.f32 0.0, %v838
    %840 = vdwg.mxu0
    %841 = vmatpush.msra.mxu0 %v667
    %842 = vmatpush.msra.mxu0 %v663
    %843 = vmatpush.msra.mxu0 %v659
    %844 = vmatpush.msra.mxu0 %v655
    %845 = vmatpush.msra.mxu0 %v651
    %846 = vmatpush.msra.mxu0 %v647
    %847 = vmatpush.msra.mxu0 %v643
    %848 = vmatpush.msra.mxu0 %v639
    %849 = vmatpush.msra.mxu0 %v635
    %850 = vmatpush.msra.mxu0 %v631
    %851 = vmatpush.msra.mxu0 %v627
    %852 = vmatpush.msra.mxu0 %v623
    %853 = vmatpush.msra.mxu0 %v619
    %854 = vmatpush.msra.mxu0 %v615
    %855 = vmatpush.msra.mxu0 %v611
    %856 = vmatpush.msra.mxu0 %v607
    %857 = vmatmul.f32.gmra.mxu0 %v816
    %v858 = vpop.f32.mrf.mxu0
    %v859 = vadd.f32 0.0, %v858
    %860 = vdwg.mxu0
    %861 = vmatpush.msra.mxu0 %v668
    %862 = vmatpush.msra.mxu0 %v664
    %863 = vmatpush.msra.mxu0 %v660
    %864 = vmatpush.msra.mxu0 %v656
    %865 = vmatpush.msra.mxu0 %v652
    %866 = vmatpush.msra.mxu0 %v648
    %867 = vmatpush.msra.mxu0 %v644
    %868 = vmatpush.msra.mxu0 %v640
    %869 = vmatpush.msra.mxu0 %v636
    %870 = vmatpush.msra.mxu0 %v632
    %871 = vmatpush.msra.mxu0 %v628
    %872 = vmatpush.msra.mxu0 %v624
    %873 = vmatpush.msra.mxu0 %v620
    %874 = vmatpush.msra.mxu0 %v616
    %875 = vmatpush.msra.mxu0 %v612
    %876 = vmatpush.msra.mxu0 %v608
    %877 = vmatmul.f32.gmra.mxu0 %v816
    %v878 = vpop.f32.mrf.mxu0
    %v879 = vadd.f32 0.0, %v878
    %880 = vdwg.mxu0
    %881 = vmatpush.msra.mxu0 %v669
    %882 = vmatpush.msra.mxu0 %v665
    %883 = vmatpush.msra.mxu0 %v661
    %884 = vmatpush.msra.mxu0 %v657
    %885 = vmatpush.msra.mxu0 %v653
    %886 = vmatpush.msra.mxu0 %v649
    %887 = vmatpush.msra.mxu0 %v645
    %888 = vmatpush.msra.mxu0 %v641
    %889 = vmatpush.msra.mxu0 %v637
    %890 = vmatpush.msra.mxu0 %v633
    %891 = vmatpush.msra.mxu0 %v629
    %892 = vmatpush.msra.mxu0 %v625
    %893 = vmatpush.msra.mxu0 %v621
    %894 = vmatpush.msra.mxu0 %v617
    %895 = vmatpush.msra.mxu0 %v613
    %896 = vmatpush.msra.mxu0 %v609
    %897 = vmatmul.f32.gmra.mxu0 %v816
    %v898 = vpop.f32.mrf.mxu0
    %v899 = vadd.f32 0.0, %v898
    %900 = vdwg.mxu0
    %v901 = vadd.f32 %v817, %v839
    %v902 = vadd.f32 %v818, %v859
    %v903 = vadd.f32 %v819, %v879
    %v904 = vadd.f32 %v820, %v899
    %v905 = vxor.u32 %v901, 2147483648
    %v906 = vxor.u32 %v902, 2147483648
    %v907 = vxor.u32 %v903, 2147483648
    %v908 = vmul.f32 %v905, 1.442695
    %v909 = vpow.pop %v908
    %v910 = vmul.f32 %v906, 1.442695
    %v911 = vpow.pop %v910
    %v912 = vmul.f32 %v907, 1.442695
    %v913 = vpow.pop %v912
    %v914 = vadd.f32 %v909, 1.0
    %v915 = vadd.f32 %v911, 1.0
    %v916 = vadd.f32 %v913, 1.0
    %v917 = vrcp.pop %v914
    %v918 = vmul.f32 %v914, %v917
    %v919 = vsub.f32 1.0, %v918
    %v920 = vmul.f32 %v917, %v919
    %v921 = vadd.f32 %v917, %v920
    %vm922 = vweird.f32 %v914
    %vm923 = vweird.f32 %v917
    %vm924 = vmor %vm922, %vm923
    %v925 = vsel %vm924, %v917, %v921
    %v926 = vand.u32 2147483647, %v914
    %vm927 = vcmp.eq.f32.partialorder %v926, 8.507059e+37
    %v928 = vand.u32 %v914, 2147483648
    %v929 = vor.u32 1.1754944e-38, %v928
    %v930 = vsel %vm927, %v929, %v925
    %v931 = vmul.f32 1.0, %v930
    %v932 = vrcp.pop %v915
    %v933 = vmul.f32 %v915, %v932
    %v934 = vsub.f32 1.0, %v933
    %v935 = vmul.f32 %v932, %v934
    %v936 = vadd.f32 %v932, %v935
    %vm937 = vweird.f32 %v915
    %vm938 = vweird.f32 %v932
    %vm939 = vmor %vm937, %vm938
    %v940 = vsel %vm939, %v932, %v936
    %v941 = vand.u32 2147483647, %v915
    %vm942 = vcmp.eq.f32.partialorder %v941, 8.507059e+37
    %v943 = vand.u32 %v915, 2147483648
    %v944 = vor.u32 1.1754944e-38, %v943
    %v945 = vsel %vm942, %v944, %v940
    %v946 = vmul.f32 1.0, %v945
    %v947 = vrcp.pop %v916
    %v948 = vmul.f32 %v916, %v947
    %v949 = vsub.f32 1.0, %v948
    %v950 = vmul.f32 %v947, %v949
    %v951 = vadd.f32 %v947, %v950
    %vm952 = vweird.f32 %v916
    %vm953 = vweird.f32 %v947
    %vm954 = vmor %vm952, %vm953
    %v955 = vsel %vm954, %v947, %v951
    %v956 = vand.u32 2147483647, %v916
    %vm957 = vcmp.eq.f32.partialorder %v956, 8.507059e+37
    %v958 = vand.u32 %v916, 2147483648
    %v959 = vor.u32 1.1754944e-38, %v958
    %v960 = vsel %vm957, %v959, %v955
    %v961 = vmul.f32 1.0, %v960
    %v962 = vtanh.pop %v904
    %v963 = vmul.f32 %v946, %v814
    %v964 = vmul.f32 %v931, %v962
    %v965 = vadd.f32 %v963, %v964
    %v966 = vtanh.pop %v965
    %v967 = vmul.f32 %v961, %v966
    %v968 = vld [vmem:[#allocation2 + $0x40] sm:$0xff]
    %v969 = vld [vmem:[#allocation2 + $0x48] sm:$0xff]
    %v970 = vld [vmem:[#allocation2 + $0x50] sm:$0xff]
    %v971 = vld [vmem:[#allocation2 + $0x58] sm:$0xff]
    %972 = vmatpush.msra.mxu0 %v666
    %973 = vmatpush.msra.mxu0 %v662
    %974 = vmatpush.msra.mxu0 %v658
    %975 = vmatpush.msra.mxu0 %v654
    %976 = vmatpush.msra.mxu0 %v650
    %977 = vmatpush.msra.mxu0 %v646
    %978 = vmatpush.msra.mxu0 %v642
    %979 = vmatpush.msra.mxu0 %v638
    %980 = vmatpush.msra.mxu0 %v634
    %981 = vmatpush.msra.mxu0 %v630
    %982 = vmatpush.msra.mxu0 %v626
    %983 = vmatpush.msra.mxu0 %v622
    %984 = vmatpush.msra.mxu0 %v618
    %985 = vmatpush.msra.mxu0 %v614
    %986 = vmatpush.msra.mxu0 %v610
    %987 = vmatpush.msra.mxu0 %v606
    %988 = vmatmul.f32.gmra.mxu0 %v967
    %v989 = vpop.f32.mrf.mxu0
    %v990 = vadd.f32 0.0, %v989
    %991 = vdwg.mxu0
    %992 = vmatpush.msra.mxu0 %v667
    %993 = vmatpush.msra.mxu0 %v663
    %994 = vmatpush.msra.mxu0 %v659
    %995 = vmatpush.msra.mxu0 %v655
    %996 = vmatpush.msra.mxu0 %v651
    %997 = vmatpush.msra.mxu0 %v647
    %998 = vmatpush.msra.mxu0 %v643
    %999 = vmatpush.msra.mxu0 %v639
    %1000 = vmatpush.msra.mxu0 %v635
    %1001 = vmatpush.msra.mxu0 %v631
    %1002 = vmatpush.msra.mxu0 %v627
    %1003 = vmatpush.msra.mxu0 %v623
    %1004 = vmatpush.msra.mxu0 %v619
    %1005 = vmatpush.msra.mxu0 %v615
    %1006 = vmatpush.msra.mxu0 %v611
    %1007 = vmatpush.msra.mxu0 %v607
    %1008 = vmatmul.f32.gmra.mxu0 %v967
    %v1009 = vpop.f32.mrf.mxu0
    %v1010 = vadd.f32 0.0, %v1009
    %1011 = vdwg.mxu0
    %1012 = vmatpush.msra.mxu0 %v668
    %1013 = vmatpush.msra.mxu0 %v664
    %1014 = vmatpush.msra.mxu0 %v660
    %1015 = vmatpush.msra.mxu0 %v656
    %1016 = vmatpush.msra.mxu0 %v652
    %1017 = vmatpush.msra.mxu0 %v648
    %1018 = vmatpush.msra.mxu0 %v644
    %1019 = vmatpush.msra.mxu0 %v640
    %1020 = vmatpush.msra.mxu0 %v636
    %1021 = vmatpush.msra.mxu0 %v632
    %1022 = vmatpush.msra.mxu0 %v628
    %1023 = vmatpush.msra.mxu0 %v624
    %1024 = vmatpush.msra.mxu0 %v620
    %1025 = vmatpush.msra.mxu0 %v616
    %1026 = vmatpush.msra.mxu0 %v612
    %1027 = vmatpush.msra.mxu0 %v608
    %1028 = vmatmul.f32.gmra.mxu0 %v967
    %v1029 = vpop.f32.mrf.mxu0
    %v1030 = vadd.f32 0.0, %v1029
    %1031 = vdwg.mxu0
    %1032 = vmatpush.msra.mxu0 %v669
    %1033 = vmatpush.msra.mxu0 %v665
    %1034 = vmatpush.msra.mxu0 %v661
    %1035 = vmatpush.msra.mxu0 %v657
    %1036 = vmatpush.msra.mxu0 %v653
    %1037 = vmatpush.msra.mxu0 %v649
    %1038 = vmatpush.msra.mxu0 %v645
    %1039 = vmatpush.msra.mxu0 %v641
    %1040 = vmatpush.msra.mxu0 %v637
    %1041 = vmatpush.msra.mxu0 %v633
    %1042 = vmatpush.msra.mxu0 %v629
    %1043 = vmatpush.msra.mxu0 %v625
    %1044 = vmatpush.msra.mxu0 %v621
    %1045 = vmatpush.msra.mxu0 %v617
    %1046 = vmatpush.msra.mxu0 %v613
    %1047 = vmatpush.msra.mxu0 %v609
    %1048 = vmatmul.f32.gmra.mxu0 %v967
    %v1049 = vpop.f32.mrf.mxu0
    %v1050 = vadd.f32 0.0, %v1049
    %1051 = vdwg.mxu0
    %v1052 = vadd.f32 %v968, %v990
    %v1053 = vadd.f32 %v969, %v1010
    %v1054 = vadd.f32 %v970, %v1030
    %v1055 = vadd.f32 %v971, %v1050
    %v1056 = vxor.u32 %v1052, 2147483648
    %v1057 = vxor.u32 %v1053, 2147483648
    %v1058 = vxor.u32 %v1054, 2147483648
    %v1059 = vmul.f32 %v1056, 1.442695
    %v1060 = vpow.pop %v1059
    %v1061 = vmul.f32 %v1057, 1.442695
    %v1062 = vpow.pop %v1061
    %v1063 = vmul.f32 %v1058, 1.442695
    %v1064 = vpow.pop %v1063
    %v1065 = vadd.f32 %v1060, 1.0
    %v1066 = vadd.f32 %v1062, 1.0
    %v1067 = vadd.f32 %v1064, 1.0
    %v1068 = vrcp.pop %v1065
    %v1069 = vmul.f32 %v1065, %v1068
    %v1070 = vsub.f32 1.0, %v1069
    %v1071 = vmul.f32 %v1068, %v1070
    %v1072 = vadd.f32 %v1068, %v1071
    %vm1073 = vweird.f32 %v1065
    %vm1074 = vweird.f32 %v1068
    %vm1075 = vmor %vm1073, %vm1074
    %v1076 = vsel %vm1075, %v1068, %v1072
    %v1077 = vand.u32 2147483647, %v1065
    %vm1078 = vcmp.eq.f32.partialorder %v1077, 8.507059e+37
    %v1079 = vand.u32 %v1065, 2147483648
    %v1080 = vor.u32 1.1754944e-38, %v1079
    %v1081 = vsel %vm1078, %v1080, %v1076
    %v1082 = vmul.f32 1.0, %v1081
    %v1083 = vrcp.pop %v1066
    %v1084 = vmul.f32 %v1066, %v1083
    %v1085 = vsub.f32 1.0, %v1084
    %v1086 = vmul.f32 %v1083, %v1085
    %v1087 = vadd.f32 %v1083, %v1086
    %vm1088 = vweird.f32 %v1066
    %vm1089 = vweird.f32 %v1083
    %vm1090 = vmor %vm1088, %vm1089
    %v1091 = vsel %vm1090, %v1083, %v1087
    %v1092 = vand.u32 2147483647, %v1066
    %vm1093 = vcmp.eq.f32.partialorder %v1092, 8.507059e+37
    %v1094 = vand.u32 %v1066, 2147483648
    %v1095 = vor.u32 1.1754944e-38, %v1094
    %v1096 = vsel %vm1093, %v1095, %v1091
    %v1097 = vmul.f32 1.0, %v1096
    %v1098 = vrcp.pop %v1067
    %v1099 = vmul.f32 %v1067, %v1098
    %v1100 = vsub.f32 1.0, %v1099
    %v1101 = vmul.f32 %v1098, %v1100
    %v1102 = vadd.f32 %v1098, %v1101
    %vm1103 = vweird.f32 %v1067
    %vm1104 = vweird.f32 %v1098
    %vm1105 = vmor %vm1103, %vm1104
    %v1106 = vsel %vm1105, %v1098, %v1102
    %v1107 = vand.u32 2147483647, %v1067
    %vm1108 = vcmp.eq.f32.partialorder %v1107, 8.507059e+37
    %v1109 = vand.u32 %v1067, 2147483648
    %v1110 = vor.u32 1.1754944e-38, %v1109
    %v1111 = vsel %vm1108, %v1110, %v1106
    %v1112 = vmul.f32 1.0, %v1111
    %v1113 = vtanh.pop %v1055
    %v1114 = vmul.f32 %v1097, %v965
    %v1115 = vmul.f32 %v1082, %v1113
    %v1116 = vadd.f32 %v1114, %v1115
    %v1117 = vtanh.pop %v1116
    %v1118 = vmul.f32 %v1112, %v1117
    %v1119 = vld [vmem:[#allocation2 + $0x60] sm:$0xff]
    %v1120 = vld [vmem:[#allocation2 + $0x68] sm:$0xff]
    %v1121 = vld [vmem:[#allocation2 + $0x70] sm:$0xff]
    %v1122 = vld [vmem:[#allocation2 + $0x78] sm:$0xff]
    %1123 = vmatpush.msra.mxu0 %v666
    %1124 = vmatpush.msra.mxu0 %v662
    %1125 = vmatpush.msra.mxu0 %v658
    %1126 = vmatpush.msra.mxu0 %v654
    %1127 = vmatpush.msra.mxu0 %v650
    %1128 = vmatpush.msra.mxu0 %v646
    %1129 = vmatpush.msra.mxu0 %v642
    %1130 = vmatpush.msra.mxu0 %v638
    %1131 = vmatpush.msra.mxu0 %v634
    %1132 = vmatpush.msra.mxu0 %v630
    %1133 = vmatpush.msra.mxu0 %v626
    %1134 = vmatpush.msra.mxu0 %v622
    %1135 = vmatpush.msra.mxu0 %v618
    %1136 = vmatpush.msra.mxu0 %v614
    %1137 = vmatpush.msra.mxu0 %v610
    %1138 = vmatpush.msra.mxu0 %v606
    %1139 = vmatmul.f32.gmra.mxu0 %v1118
    %v1140 = vpop.f32.mrf.mxu0
    %v1141 = vadd.f32 0.0, %v1140
    %1142 = vdwg.mxu0
    %1143 = vmatpush.msra.mxu0 %v667
    %1144 = vmatpush.msra.mxu0 %v663
    %1145 = vmatpush.msra.mxu0 %v659
    %1146 = vmatpush.msra.mxu0 %v655
    %1147 = vmatpush.msra.mxu0 %v651
    %1148 = vmatpush.msra.mxu0 %v647
    %1149 = vmatpush.msra.mxu0 %v643
    %1150 = vmatpush.msra.mxu0 %v639
    %1151 = vmatpush.msra.mxu0 %v635
    %1152 = vmatpush.msra.mxu0 %v631
    %1153 = vmatpush.msra.mxu0 %v627
    %1154 = vmatpush.msra.mxu0 %v623
    %1155 = vmatpush.msra.mxu0 %v619
    %1156 = vmatpush.msra.mxu0 %v615
    %1157 = vmatpush.msra.mxu0 %v611
    %1158 = vmatpush.msra.mxu0 %v607
    %1159 = vmatmul.f32.gmra.mxu0 %v1118
    %v1160 = vpop.f32.mrf.mxu0
    %v1161 = vadd.f32 0.0, %v1160
    %1162 = vdwg.mxu0
    %1163 = vmatpush.msra.mxu0 %v668
    %1164 = vmatpush.msra.mxu0 %v664
    %1165 = vmatpush.msra.mxu0 %v660
    %1166 = vmatpush.msra.mxu0 %v656
    %1167 = vmatpush.msra.mxu0 %v652
    %1168 = vmatpush.msra.mxu0 %v648
    %1169 = vmatpush.msra.mxu0 %v644
    %1170 = vmatpush.msra.mxu0 %v640
    %1171 = vmatpush.msra.mxu0 %v636
    %1172 = vmatpush.msra.mxu0 %v632
    %1173 = vmatpush.msra.mxu0 %v628
    %1174 = vmatpush.msra.mxu0 %v624
    %1175 = vmatpush.msra.mxu0 %v620
    %1176 = vmatpush.msra.mxu0 %v616
    %1177 = vmatpush.msra.mxu0 %v612
    %1178 = vmatpush.msra.mxu0 %v608
    %1179 = vmatmul.f32.gmra.mxu0 %v1118
    %v1180 = vpop.f32.mrf.mxu0
    %v1181 = vadd.f32 0.0, %v1180
    %1182 = vdwg.mxu0
    %1183 = vmatpush.msra.mxu0 %v669
    %1184 = vmatpush.msra.mxu0 %v665
    %1185 = vmatpush.msra.mxu0 %v661
    %1186 = vmatpush.msra.mxu0 %v657
    %1187 = vmatpush.msra.mxu0 %v653
    %1188 = vmatpush.msra.mxu0 %v649
    %1189 = vmatpush.msra.mxu0 %v645
    %1190 = vmatpush.msra.mxu0 %v641
    %1191 = vmatpush.msra.mxu0 %v637
    %1192 = vmatpush.msra.mxu0 %v633
    %1193 = vmatpush.msra.mxu0 %v629
    %1194 = vmatpush.msra.mxu0 %v625
    %1195 = vmatpush.msra.mxu0 %v621
    %1196 = vmatpush.msra.mxu0 %v617
    %1197 = vmatpush.msra.mxu0 %v613
    %1198 = vmatpush.msra.mxu0 %v609
    %1199 = vmatmul.f32.gmra.mxu0 %v1118
    %v1200 = vpop.f32.mrf.mxu0
    %v1201 = vadd.f32 0.0, %v1200
    %1202 = vdwg.mxu0
    %v1203 = vadd.f32 %v1119, %v1141
    %v1204 = vadd.f32 %v1120, %v1161
    %v1205 = vadd.f32 %v1121, %v1181
    %v1206 = vadd.f32 %v1122, %v1201
    %v1207 = vxor.u32 %v1203, 2147483648
    %v1208 = vxor.u32 %v1204, 2147483648
    %v1209 = vxor.u32 %v1205, 2147483648
    %v1210 = vmul.f32 %v1207, 1.442695
    %v1211 = vpow.pop %v1210
    %v1212 = vmul.f32 %v1208, 1.442695
    %v1213 = vpow.pop %v1212
    %v1214 = vmul.f32 %v1209, 1.442695
    %v1215 = vpow.pop %v1214
    %v1216 = vadd.f32 %v1211, 1.0
    %v1217 = vadd.f32 %v1213, 1.0
    %v1218 = vadd.f32 %v1215, 1.0
    %v1219 = vrcp.pop %v1216
    %v1220 = vmul.f32 %v1216, %v1219
    %v1221 = vsub.f32 1.0, %v1220
    %v1222 = vmul.f32 %v1219, %v1221
    %v1223 = vadd.f32 %v1219, %v1222
    %vm1224 = vweird.f32 %v1216
    %vm1225 = vweird.f32 %v1219
    %vm1226 = vmor %vm1224, %vm1225
    %v1227 = vsel %vm1226, %v1219, %v1223
    %v1228 = vand.u32 2147483647, %v1216
    %vm1229 = vcmp.eq.f32.partialorder %v1228, 8.507059e+37
    %v1230 = vand.u32 %v1216, 2147483648
    %v1231 = vor.u32 1.1754944e-38, %v1230
    %v1232 = vsel %vm1229, %v1231, %v1227
    %v1233 = vmul.f32 1.0, %v1232
    %v1234 = vrcp.pop %v1217
    %v1235 = vmul.f32 %v1217, %v1234
    %v1236 = vsub.f32 1.0, %v1235
    %v1237 = vmul.f32 %v1234, %v1236
    %v1238 = vadd.f32 %v1234, %v1237
    %vm1239 = vweird.f32 %v1217
    %vm1240 = vweird.f32 %v1234
    %vm1241 = vmor %vm1239, %vm1240
    %v1242 = vsel %vm1241, %v1234, %v1238
    %v1243 = vand.u32 2147483647, %v1217
    %vm1244 = vcmp.eq.f32.partialorder %v1243, 8.507059e+37
    %v1245 = vand.u32 %v1217, 2147483648
    %v1246 = vor.u32 1.1754944e-38, %v1245
    %v1247 = vsel %vm1244, %v1246, %v1242
    %v1248 = vmul.f32 1.0, %v1247
    %v1249 = vrcp.pop %v1218
    %v1250 = vmul.f32 %v1218, %v1249
    %v1251 = vsub.f32 1.0, %v1250
    %v1252 = vmul.f32 %v1249, %v1251
    %v1253 = vadd.f32 %v1249, %v1252
    %vm1254 = vweird.f32 %v1218
    %vm1255 = vweird.f32 %v1249
    %vm1256 = vmor %vm1254, %vm1255
    %v1257 = vsel %vm1256, %v1249, %v1253
    %v1258 = vand.u32 2147483647, %v1218
    %vm1259 = vcmp.eq.f32.partialorder %v1258, 8.507059e+37
    %v1260 = vand.u32 %v1218, 2147483648
    %v1261 = vor.u32 1.1754944e-38, %v1260
    %v1262 = vsel %vm1259, %v1261, %v1257
    %v1263 = vmul.f32 1.0, %v1262
    %v1264 = vtanh.pop %v1206
    %v1265 = vmul.f32 %v1248, %v1116
    %v1266 = vmul.f32 %v1233, %v1264
    %v1267 = vadd.f32 %v1265, %v1266
    %v1268 = vtanh.pop %v1267
    %v1269 = vmul.f32 %v1263, %v1268
    %v1270 = vld [vmem:[#allocation2 + $0x80] sm:$0xff]
    %v1271 = vld [vmem:[#allocation2 + $0x88] sm:$0xff]
    %v1272 = vld [vmem:[#allocation2 + $0x90] sm:$0xff]
    %v1273 = vld [vmem:[#allocation2 + $0x98] sm:$0xff]
    %1274 = vmatpush.msra.mxu0 %v666
    %1275 = vmatpush.msra.mxu0 %v662
    %1276 = vmatpush.msra.mxu0 %v658
    %1277 = vmatpush.msra.mxu0 %v654
    %1278 = vmatpush.msra.mxu0 %v650
    %1279 = vmatpush.msra.mxu0 %v646
    %1280 = vmatpush.msra.mxu0 %v642
    %1281 = vmatpush.msra.mxu0 %v638
    %1282 = vmatpush.msra.mxu0 %v634
    %1283 = vmatpush.msra.mxu0 %v630
    %1284 = vmatpush.msra.mxu0 %v626
    %1285 = vmatpush.msra.mxu0 %v622
    %1286 = vmatpush.msra.mxu0 %v618
    %1287 = vmatpush.msra.mxu0 %v614
    %1288 = vmatpush.msra.mxu0 %v610
    %1289 = vmatpush.msra.mxu0 %v606
    %1290 = vmatmul.f32.gmra.mxu0 %v1269
    %v1291 = vpop.f32.mrf.mxu0
    %v1292 = vadd.f32 0.0, %v1291
    %1293 = vdwg.mxu0
    %1294 = vmatpush.msra.mxu0 %v667
    %1295 = vmatpush.msra.mxu0 %v663
    %1296 = vmatpush.msra.mxu0 %v659
    %1297 = vmatpush.msra.mxu0 %v655
    %1298 = vmatpush.msra.mxu0 %v651
    %1299 = vmatpush.msra.mxu0 %v647
    %1300 = vmatpush.msra.mxu0 %v643
    %1301 = vmatpush.msra.mxu0 %v639
    %1302 = vmatpush.msra.mxu0 %v635
    %1303 = vmatpush.msra.mxu0 %v631
    %1304 = vmatpush.msra.mxu0 %v627
    %1305 = vmatpush.msra.mxu0 %v623
    %1306 = vmatpush.msra.mxu0 %v619
    %1307 = vmatpush.msra.mxu0 %v615
    %1308 = vmatpush.msra.mxu0 %v611
    %1309 = vmatpush.msra.mxu0 %v607
    %1310 = vmatmul.f32.gmra.mxu0 %v1269
    %v1311 = vpop.f32.mrf.mxu0
    %v1312 = vadd.f32 0.0, %v1311
    %1313 = vdwg.mxu0
    %1314 = vmatpush.msra.mxu0 %v668
    %1315 = vmatpush.msra.mxu0 %v664
    %1316 = vmatpush.msra.mxu0 %v660
    %1317 = vmatpush.msra.mxu0 %v656
    %1318 = vmatpush.msra.mxu0 %v652
    %1319 = vmatpush.msra.mxu0 %v648
    %1320 = vmatpush.msra.mxu0 %v644
    %1321 = vmatpush.msra.mxu0 %v640
    %1322 = vmatpush.msra.mxu0 %v636
    %1323 = vmatpush.msra.mxu0 %v632
    %1324 = vmatpush.msra.mxu0 %v628
    %1325 = vmatpush.msra.mxu0 %v624
    %1326 = vmatpush.msra.mxu0 %v620
    %1327 = vmatpush.msra.mxu0 %v616
    %1328 = vmatpush.msra.mxu0 %v612
    %1329 = vmatpush.msra.mxu0 %v608
    %1330 = vmatmul.f32.gmra.mxu0 %v1269
    %v1331 = vpop.f32.mrf.mxu0
    %v1332 = vadd.f32 0.0, %v1331
    %1333 = vdwg.mxu0
    %1334 = vmatpush.msra.mxu0 %v669
    %1335 = vmatpush.msra.mxu0 %v665
    %1336 = vmatpush.msra.mxu0 %v661
    %1337 = vmatpush.msra.mxu0 %v657
    %1338 = vmatpush.msra.mxu0 %v653
    %1339 = vmatpush.msra.mxu0 %v649
    %1340 = vmatpush.msra.mxu0 %v645
    %1341 = vmatpush.msra.mxu0 %v641
    %1342 = vmatpush.msra.mxu0 %v637
    %1343 = vmatpush.msra.mxu0 %v633
    %1344 = vmatpush.msra.mxu0 %v629
    %1345 = vmatpush.msra.mxu0 %v625
    %1346 = vmatpush.msra.mxu0 %v621
    %1347 = vmatpush.msra.mxu0 %v617
    %1348 = vmatpush.msra.mxu0 %v613
    %1349 = vmatpush.msra.mxu0 %v609
    %1350 = vmatmul.f32.gmra.mxu0 %v1269
    %v1351 = vpop.f32.mrf.mxu0
    %v1352 = vadd.f32 0.0, %v1351
    %1353 = vdwg.mxu0
    %v1354 = vadd.f32 %v1270, %v1292
    %v1355 = vadd.f32 %v1271, %v1312
    %v1356 = vadd.f32 %v1272, %v1332
    %v1357 = vadd.f32 %v1273, %v1352
    %v1358 = vxor.u32 %v1354, 2147483648
    %v1359 = vxor.u32 %v1355, 2147483648
    %v1360 = vxor.u32 %v1356, 2147483648
    %v1361 = vmul.f32 %v1358, 1.442695
    %v1362 = vpow.pop %v1361
    %v1363 = vmul.f32 %v1359, 1.442695
    %v1364 = vpow.pop %v1363
    %v1365 = vmul.f32 %v1360, 1.442695
    %v1366 = vpow.pop %v1365
    %v1367 = vadd.f32 %v1362, 1.0
    %v1368 = vadd.f32 %v1364, 1.0
    %v1369 = vadd.f32 %v1366, 1.0
    %v1370 = vrcp.pop %v1367
    %v1371 = vmul.f32 %v1367, %v1370
    %v1372 = vsub.f32 1.0, %v1371
    %v1373 = vmul.f32 %v1370, %v1372
    %v1374 = vadd.f32 %v1370, %v1373
    %vm1375 = vweird.f32 %v1367
    %vm1376 = vweird.f32 %v1370
    %vm1377 = vmor %vm1375, %vm1376
    %v1378 = vsel %vm1377, %v1370, %v1374
    %v1379 = vand.u32 2147483647, %v1367
    %vm1380 = vcmp.eq.f32.partialorder %v1379, 8.507059e+37
    %v1381 = vand.u32 %v1367, 2147483648
    %v1382 = vor.u32 1.1754944e-38, %v1381
    %v1383 = vsel %vm1380, %v1382, %v1378
    %v1384 = vmul.f32 1.0, %v1383
    %v1385 = vrcp.pop %v1368
    %v1386 = vmul.f32 %v1368, %v1385
    %v1387 = vsub.f32 1.0, %v1386
    %v1388 = vmul.f32 %v1385, %v1387
    %v1389 = vadd.f32 %v1385, %v1388
    %vm1390 = vweird.f32 %v1368
    %vm1391 = vweird.f32 %v1385
    %vm1392 = vmor %vm1390, %vm1391
    %v1393 = vsel %vm1392, %v1385, %v1389
    %v1394 = vand.u32 2147483647, %v1368
    %vm1395 = vcmp.eq.f32.partialorder %v1394, 8.507059e+37
    %v1396 = vand.u32 %v1368, 2147483648
    %v1397 = vor.u32 1.1754944e-38, %v1396
    %v1398 = vsel %vm1395, %v1397, %v1393
    %v1399 = vmul.f32 1.0, %v1398
    %v1400 = vrcp.pop %v1369
    %v1401 = vmul.f32 %v1369, %v1400
    %v1402 = vsub.f32 1.0, %v1401
    %v1403 = vmul.f32 %v1400, %v1402
    %v1404 = vadd.f32 %v1400, %v1403
    %vm1405 = vweird.f32 %v1369
    %vm1406 = vweird.f32 %v1400
    %vm1407 = vmor %vm1405, %vm1406
    %v1408 = vsel %vm1407, %v1400, %v1404
    %v1409 = vand.u32 2147483647, %v1369
    %vm1410 = vcmp.eq.f32.partialorder %v1409, 8.507059e+37
    %v1411 = vand.u32 %v1369, 2147483648
    %v1412 = vor.u32 1.1754944e-38, %v1411
    %v1413 = vsel %vm1410, %v1412, %v1408
    %v1414 = vmul.f32 1.0, %v1413
    %v1415 = vtanh.pop %v1357
    %v1416 = vmul.f32 %v1399, %v1267
    %v1417 = vmul.f32 %v1384, %v1415
    %v1418 = vadd.f32 %v1416, %v1417
    %v1419 = vtanh.pop %v1418
    %v1420 = vmul.f32 %v1414, %v1419
    %v1421 = vld [vmem:[#allocation2 + $0xa0] sm:$0xff]
    %v1422 = vld [vmem:[#allocation2 + $0xa8] sm:$0xff]
    %v1423 = vld [vmem:[#allocation2 + $0xb0] sm:$0xff]
    %v1424 = vld [vmem:[#allocation2 + $0xb8] sm:$0xff]
    %1425 = vmatpush.msra.mxu0 %v666
    %1426 = vmatpush.msra.mxu0 %v662
    %1427 = vmatpush.msra.mxu0 %v658
    %1428 = vmatpush.msra.mxu0 %v654
    %1429 = vmatpush.msra.mxu0 %v650
    %1430 = vmatpush.msra.mxu0 %v646
    %1431 = vmatpush.msra.mxu0 %v642
    %1432 = vmatpush.msra.mxu0 %v638
    %1433 = vmatpush.msra.mxu0 %v634
    %1434 = vmatpush.msra.mxu0 %v630
    %1435 = vmatpush.msra.mxu0 %v626
    %1436 = vmatpush.msra.mxu0 %v622
    %1437 = vmatpush.msra.mxu0 %v618
    %1438 = vmatpush.msra.mxu0 %v614
    %1439 = vmatpush.msra.mxu0 %v610
    %1440 = vmatpush.msra.mxu0 %v606
    %1441 = vmatmul.f32.gmra.mxu0 %v1420
    %v1442 = vpop.f32.mrf.mxu0
    %v1443 = vadd.f32 0.0, %v1442
    %1444 = vdwg.mxu0
    %1445 = vmatpush.msra.mxu0 %v667
    %1446 = vmatpush.msra.mxu0 %v663
    %1447 = vmatpush.msra.mxu0 %v659
    %1448 = vmatpush.msra.mxu0 %v655
    %1449 = vmatpush.msra.mxu0 %v651
    %1450 = vmatpush.msra.mxu0 %v647
    %1451 = vmatpush.msra.mxu0 %v643
    %1452 = vmatpush.msra.mxu0 %v639
    %1453 = vmatpush.msra.mxu0 %v635
    %1454 = vmatpush.msra.mxu0 %v631
    %1455 = vmatpush.msra.mxu0 %v627
    %1456 = vmatpush.msra.mxu0 %v623
    %1457 = vmatpush.msra.mxu0 %v619
    %1458 = vmatpush.msra.mxu0 %v615
    %1459 = vmatpush.msra.mxu0 %v611
    %1460 = vmatpush.msra.mxu0 %v607
    %1461 = vmatmul.f32.gmra.mxu0 %v1420
    %v1462 = vpop.f32.mrf.mxu0
    %v1463 = vadd.f32 0.0, %v1462
    %1464 = vdwg.mxu0
    %1465 = vmatpush.msra.mxu0 %v668
    %1466 = vmatpush.msra.mxu0 %v664
    %1467 = vmatpush.msra.mxu0 %v660
    %1468 = vmatpush.msra.mxu0 %v656
    %1469 = vmatpush.msra.mxu0 %v652
    %1470 = vmatpush.msra.mxu0 %v648
    %1471 = vmatpush.msra.mxu0 %v644
    %1472 = vmatpush.msra.mxu0 %v640
    %1473 = vmatpush.msra.mxu0 %v636
    %1474 = vmatpush.msra.mxu0 %v632
    %1475 = vmatpush.msra.mxu0 %v628
    %1476 = vmatpush.msra.mxu0 %v624
    %1477 = vmatpush.msra.mxu0 %v620
    %1478 = vmatpush.msra.mxu0 %v616
    %1479 = vmatpush.msra.mxu0 %v612
    %1480 = vmatpush.msra.mxu0 %v608
    %1481 = vmatmul.f32.gmra.mxu0 %v1420
    %v1482 = vpop.f32.mrf.mxu0
    %v1483 = vadd.f32 0.0, %v1482
    %1484 = vdwg.mxu0
    %1485 = vmatpush.msra.mxu0 %v669
    %1486 = vmatpush.msra.mxu0 %v665
    %1487 = vmatpush.msra.mxu0 %v661
    %1488 = vmatpush.msra.mxu0 %v657
    %1489 = vmatpush.msra.mxu0 %v653
    %1490 = vmatpush.msra.mxu0 %v649
    %1491 = vmatpush.msra.mxu0 %v645
    %1492 = vmatpush.msra.mxu0 %v641
    %1493 = vmatpush.msra.mxu0 %v637
    %1494 = vmatpush.msra.mxu0 %v633
    %1495 = vmatpush.msra.mxu0 %v629
    %1496 = vmatpush.msra.mxu0 %v625
    %1497 = vmatpush.msra.mxu0 %v621
    %1498 = vmatpush.msra.mxu0 %v617
    %1499 = vmatpush.msra.mxu0 %v613
    %1500 = vmatpush.msra.mxu0 %v609
    %1501 = vmatmul.f32.gmra.mxu0 %v1420
    %v1502 = vpop.f32.mrf.mxu0
    %v1503 = vadd.f32 0.0, %v1502
    %1504 = vdwg.mxu0
    %v1505 = vadd.f32 %v1421, %v1443
    %v1506 = vadd.f32 %v1422, %v1463
    %v1507 = vadd.f32 %v1423, %v1483
    %v1508 = vadd.f32 %v1424, %v1503
    %v1509 = vxor.u32 %v1505, 2147483648
    %v1510 = vxor.u32 %v1506, 2147483648
    %v1511 = vxor.u32 %v1507, 2147483648
    %v1512 = vmul.f32 %v1509, 1.442695
    %v1513 = vpow.pop %v1512
    %v1514 = vmul.f32 %v1510, 1.442695
    %v1515 = vpow.pop %v1514
    %v1516 = vmul.f32 %v1511, 1.442695
    %v1517 = vpow.pop %v1516
    %v1518 = vadd.f32 %v1513, 1.0
    %v1519 = vadd.f32 %v1515, 1.0
    %v1520 = vadd.f32 %v1517, 1.0
    %v1521 = vrcp.pop %v1518
    %v1522 = vmul.f32 %v1518, %v1521
    %v1523 = vsub.f32 1.0, %v1522
    %v1524 = vmul.f32 %v1521, %v1523
    %v1525 = vadd.f32 %v1521, %v1524
    %vm1526 = vweird.f32 %v1518
    %vm1527 = vweird.f32 %v1521
    %vm1528 = vmor %vm1526, %vm1527
    %v1529 = vsel %vm1528, %v1521, %v1525
    %v1530 = vand.u32 2147483647, %v1518
    %vm1531 = vcmp.eq.f32.partialorder %v1530, 8.507059e+37
    %v1532 = vand.u32 %v1518, 2147483648
    %v1533 = vor.u32 1.1754944e-38, %v1532
    %v1534 = vsel %vm1531, %v1533, %v1529
    %v1535 = vmul.f32 1.0, %v1534
    %v1536 = vrcp.pop %v1519
    %v1537 = vmul.f32 %v1519, %v1536
    %v1538 = vsub.f32 1.0, %v1537
    %v1539 = vmul.f32 %v1536, %v1538
    %v1540 = vadd.f32 %v1536, %v1539
    %vm1541 = vweird.f32 %v1519
    %vm1542 = vweird.f32 %v1536
    %vm1543 = vmor %vm1541, %vm1542
    %v1544 = vsel %vm1543, %v1536, %v1540
    %v1545 = vand.u32 2147483647, %v1519
    %vm1546 = vcmp.eq.f32.partialorder %v1545, 8.507059e+37
    %v1547 = vand.u32 %v1519, 2147483648
    %v1548 = vor.u32 1.1754944e-38, %v1547
    %v1549 = vsel %vm1546, %v1548, %v1544
    %v1550 = vmul.f32 1.0, %v1549
    %v1551 = vrcp.pop %v1520
    %v1552 = vmul.f32 %v1520, %v1551
    %v1553 = vsub.f32 1.0, %v1552
    %v1554 = vmul.f32 %v1551, %v1553
    %v1555 = vadd.f32 %v1551, %v1554
    %vm1556 = vweird.f32 %v1520
    %vm1557 = vweird.f32 %v1551
    %vm1558 = vmor %vm1556, %vm1557
    %v1559 = vsel %vm1558, %v1551, %v1555
    %v1560 = vand.u32 2147483647, %v1520
    %vm1561 = vcmp.eq.f32.partialorder %v1560, 8.507059e+37
    %v1562 = vand.u32 %v1520, 2147483648
    %v1563 = vor.u32 1.1754944e-38, %v1562
    %v1564 = vsel %vm1561, %v1563, %v1559
    %v1565 = vmul.f32 1.0, %v1564
    %v1566 = vtanh.pop %v1508
    %v1567 = vmul.f32 %v1550, %v1418
    %v1568 = vmul.f32 %v1535, %v1566
    %v1569 = vadd.f32 %v1567, %v1568
    %v1570 = vtanh.pop %v1569
    %v1571 = vmul.f32 %v1565, %v1570
    %v1572 = vld [vmem:[#allocation2 + $0xc0] sm:$0xff]
    %v1573 = vld [vmem:[#allocation2 + $0xc8] sm:$0xff]
    %v1574 = vld [vmem:[#allocation2 + $0xd0] sm:$0xff]
    %v1575 = vld [vmem:[#allocation2 + $0xd8] sm:$0xff]
    %1576 = vmatpush.msra.mxu0 %v666
    %1577 = vmatpush.msra.mxu0 %v662
    %1578 = vmatpush.msra.mxu0 %v658
    %1579 = vmatpush.msra.mxu0 %v654
    %1580 = vmatpush.msra.mxu0 %v650
    %1581 = vmatpush.msra.mxu0 %v646
    %1582 = vmatpush.msra.mxu0 %v642
    %1583 = vmatpush.msra.mxu0 %v638
    %1584 = vmatpush.msra.mxu0 %v634
    %1585 = vmatpush.msra.mxu0 %v630
    %1586 = vmatpush.msra.mxu0 %v626
    %1587 = vmatpush.msra.mxu0 %v622
    %1588 = vmatpush.msra.mxu0 %v618
    %1589 = vmatpush.msra.mxu0 %v614
    %1590 = vmatpush.msra.mxu0 %v610
    %1591 = vmatpush.msra.mxu0 %v606
    %1592 = vmatmul.f32.gmra.mxu0 %v1571
    %v1593 = vpop.f32.mrf.mxu0
    %v1594 = vadd.f32 0.0, %v1593
    %1595 = vdwg.mxu0
    %1596 = vmatpush.msra.mxu0 %v667
    %1597 = vmatpush.msra.mxu0 %v663
    %1598 = vmatpush.msra.mxu0 %v659
    %1599 = vmatpush.msra.mxu0 %v655
    %1600 = vmatpush.msra.mxu0 %v651
    %1601 = vmatpush.msra.mxu0 %v647
    %1602 = vmatpush.msra.mxu0 %v643
    %1603 = vmatpush.msra.mxu0 %v639
    %1604 = vmatpush.msra.mxu0 %v635
    %1605 = vmatpush.msra.mxu0 %v631
    %1606 = vmatpush.msra.mxu0 %v627
    %1607 = vmatpush.msra.mxu0 %v623
    %1608 = vmatpush.msra.mxu0 %v619
    %1609 = vmatpush.msra.mxu0 %v615
    %1610 = vmatpush.msra.mxu0 %v611
    %1611 = vmatpush.msra.mxu0 %v607
    %1612 = vmatmul.f32.gmra.mxu0 %v1571
    %v1613 = vpop.f32.mrf.mxu0
    %v1614 = vadd.f32 0.0, %v1613
    %1615 = vdwg.mxu0
    %1616 = vmatpush.msra.mxu0 %v668
    %1617 = vmatpush.msra.mxu0 %v664
    %1618 = vmatpush.msra.mxu0 %v660
    %1619 = vmatpush.msra.mxu0 %v656
    %1620 = vmatpush.msra.mxu0 %v652
    %1621 = vmatpush.msra.mxu0 %v648
    %1622 = vmatpush.msra.mxu0 %v644
    %1623 = vmatpush.msra.mxu0 %v640
    %1624 = vmatpush.msra.mxu0 %v636
    %1625 = vmatpush.msra.mxu0 %v632
    %1626 = vmatpush.msra.mxu0 %v628
    %1627 = vmatpush.msra.mxu0 %v624
    %1628 = vmatpush.msra.mxu0 %v620
    %1629 = vmatpush.msra.mxu0 %v616
    %1630 = vmatpush.msra.mxu0 %v612
    %1631 = vmatpush.msra.mxu0 %v608
    %1632 = vmatmul.f32.gmra.mxu0 %v1571
    %v1633 = vpop.f32.mrf.mxu0
    %v1634 = vadd.f32 0.0, %v1633
    %1635 = vdwg.mxu0
    %1636 = vmatpush.msra.mxu0 %v669
    %1637 = vmatpush.msra.mxu0 %v665
    %1638 = vmatpush.msra.mxu0 %v661
    %1639 = vmatpush.msra.mxu0 %v657
    %1640 = vmatpush.msra.mxu0 %v653
    %1641 = vmatpush.msra.mxu0 %v649
    %1642 = vmatpush.msra.mxu0 %v645
    %1643 = vmatpush.msra.mxu0 %v641
    %1644 = vmatpush.msra.mxu0 %v637
    %1645 = vmatpush.msra.mxu0 %v633
    %1646 = vmatpush.msra.mxu0 %v629
    %1647 = vmatpush.msra.mxu0 %v625
    %1648 = vmatpush.msra.mxu0 %v621
    %1649 = vmatpush.msra.mxu0 %v617
    %1650 = vmatpush.msra.mxu0 %v613
    %1651 = vmatpush.msra.mxu0 %v609
    %1652 = vmatmul.f32.gmra.mxu0 %v1571
    %v1653 = vpop.f32.mrf.mxu0
    %v1654 = vadd.f32 0.0, %v1653
    %1655 = vdwg.mxu0
    %v1656 = vadd.f32 %v1572, %v1594
    %v1657 = vadd.f32 %v1573, %v1614
    %v1658 = vadd.f32 %v1574, %v1634
    %v1659 = vadd.f32 %v1575, %v1654
    %v1660 = vxor.u32 %v1656, 2147483648
    %v1661 = vxor.u32 %v1657, 2147483648
    %v1662 = vxor.u32 %v1658, 2147483648
    %v1663 = vmul.f32 %v1660, 1.442695
    %v1664 = vpow.pop %v1663
    %v1665 = vmul.f32 %v1661, 1.442695
    %v1666 = vpow.pop %v1665
    %v1667 = vmul.f32 %v1662, 1.442695
    %v1668 = vpow.pop %v1667
    %v1669 = vadd.f32 %v1664, 1.0
    %v1670 = vadd.f32 %v1666, 1.0
    %v1671 = vadd.f32 %v1668, 1.0
    %v1672 = vrcp.pop %v1669
    %v1673 = vmul.f32 %v1669, %v1672
    %v1674 = vsub.f32 1.0, %v1673
    %v1675 = vmul.f32 %v1672, %v1674
    %v1676 = vadd.f32 %v1672, %v1675
    %vm1677 = vweird.f32 %v1669
    %vm1678 = vweird.f32 %v1672
    %vm1679 = vmor %vm1677, %vm1678
    %v1680 = vsel %vm1679, %v1672, %v1676
    %v1681 = vand.u32 2147483647, %v1669
    %vm1682 = vcmp.eq.f32.partialorder %v1681, 8.507059e+37
    %v1683 = vand.u32 %v1669, 2147483648
    %v1684 = vor.u32 1.1754944e-38, %v1683
    %v1685 = vsel %vm1682, %v1684, %v1680
    %v1686 = vmul.f32 1.0, %v1685
    %v1687 = vrcp.pop %v1670
    %v1688 = vmul.f32 %v1670, %v1687
    %v1689 = vsub.f32 1.0, %v1688
    %v1690 = vmul.f32 %v1687, %v1689
    %v1691 = vadd.f32 %v1687, %v1690
    %vm1692 = vweird.f32 %v1670
    %vm1693 = vweird.f32 %v1687
    %vm1694 = vmor %vm1692, %vm1693
    %v1695 = vsel %vm1694, %v1687, %v1691
    %v1696 = vand.u32 2147483647, %v1670
    %vm1697 = vcmp.eq.f32.partialorder %v1696, 8.507059e+37
    %v1698 = vand.u32 %v1670, 2147483648
    %v1699 = vor.u32 1.1754944e-38, %v1698
    %v1700 = vsel %vm1697, %v1699, %v1695
    %v1701 = vmul.f32 1.0, %v1700
    %v1702 = vrcp.pop %v1671
    %v1703 = vmul.f32 %v1671, %v1702
    %v1704 = vsub.f32 1.0, %v1703
    %v1705 = vmul.f32 %v1702, %v1704
    %v1706 = vadd.f32 %v1702, %v1705
    %vm1707 = vweird.f32 %v1671
    %vm1708 = vweird.f32 %v1702
    %vm1709 = vmor %vm1707, %vm1708
    %v1710 = vsel %vm1709, %v1702, %v1706
    %v1711 = vand.u32 2147483647, %v1671
    %vm1712 = vcmp.eq.f32.partialorder %v1711, 8.507059e+37
    %v1713 = vand.u32 %v1671, 2147483648
    %v1714 = vor.u32 1.1754944e-38, %v1713
    %v1715 = vsel %vm1712, %v1714, %v1710
    %v1716 = vmul.f32 1.0, %v1715
    %v1717 = vtanh.pop %v1659
    %v1718 = vmul.f32 %v1701, %v1569
    %v1719 = vmul.f32 %v1686, %v1717
    %v1720 = vadd.f32 %v1718, %v1719
    %v1721 = vtanh.pop %v1720
    %v1722 = vmul.f32 %v1716, %v1721
    %v1723 = vld [vmem:[#allocation2 + $0xe0] sm:$0xff]
    %v1724 = vld [vmem:[#allocation2 + $0xe8] sm:$0xff]
    %v1725 = vld [vmem:[#allocation2 + $0xf0] sm:$0xff]
    %v1726 = vld [vmem:[#allocation2 + $0xf8] sm:$0xff]
    %1727 = vmatpush.msra.mxu0 %v666
    %1728 = vmatpush.msra.mxu0 %v662
    %1729 = vmatpush.msra.mxu0 %v658
    %1730 = vmatpush.msra.mxu0 %v654
    %1731 = vmatpush.msra.mxu0 %v650
    %1732 = vmatpush.msra.mxu0 %v646
    %1733 = vmatpush.msra.mxu0 %v642
    %1734 = vmatpush.msra.mxu0 %v638
    %1735 = vmatpush.msra.mxu0 %v634
    %1736 = vmatpush.msra.mxu0 %v630
    %1737 = vmatpush.msra.mxu0 %v626
    %1738 = vmatpush.msra.mxu0 %v622
    %1739 = vmatpush.msra.mxu0 %v618
    %1740 = vmatpush.msra.mxu0 %v614
    %1741 = vmatpush.msra.mxu0 %v610
    %1742 = vmatpush.msra.mxu0 %v606
    %1743 = vmatmul.f32.gmra.mxu0 %v1722
    %v1744 = vpop.f32.mrf.mxu0
    %v1745 = vadd.f32 0.0, %v1744
    %1746 = vdwg.mxu0
    %1747 = vmatpush.msra.mxu0 %v667
    %1748 = vmatpush.msra.mxu0 %v663
    %1749 = vmatpush.msra.mxu0 %v659
    %1750 = vmatpush.msra.mxu0 %v655
    %1751 = vmatpush.msra.mxu0 %v651
    %1752 = vmatpush.msra.mxu0 %v647
    %1753 = vmatpush.msra.mxu0 %v643
    %1754 = vmatpush.msra.mxu0 %v639
    %1755 = vmatpush.msra.mxu0 %v635
    %1756 = vmatpush.msra.mxu0 %v631
    %1757 = vmatpush.msra.mxu0 %v627
    %1758 = vmatpush.msra.mxu0 %v623
    %1759 = vmatpush.msra.mxu0 %v619
    %1760 = vmatpush.msra.mxu0 %v615
    %1761 = vmatpush.msra.mxu0 %v611
    %1762 = vmatpush.msra.mxu0 %v607
    %1763 = vmatmul.f32.gmra.mxu0 %v1722
    %v1764 = vpop.f32.mrf.mxu0
    %v1765 = vadd.f32 0.0, %v1764
    %1766 = vdwg.mxu0
    %1767 = vmatpush.msra.mxu0 %v668
    %1768 = vmatpush.msra.mxu0 %v664
    %1769 = vmatpush.msra.mxu0 %v660
    %1770 = vmatpush.msra.mxu0 %v656
    %1771 = vmatpush.msra.mxu0 %v652
    %1772 = vmatpush.msra.mxu0 %v648
    %1773 = vmatpush.msra.mxu0 %v644
    %1774 = vmatpush.msra.mxu0 %v640
    %1775 = vmatpush.msra.mxu0 %v636
    %1776 = vmatpush.msra.mxu0 %v632
    %1777 = vmatpush.msra.mxu0 %v628
    %1778 = vmatpush.msra.mxu0 %v624
    %1779 = vmatpush.msra.mxu0 %v620
    %1780 = vmatpush.msra.mxu0 %v616
    %1781 = vmatpush.msra.mxu0 %v612
    %1782 = vmatpush.msra.mxu0 %v608
    %1783 = vmatmul.f32.gmra.mxu0 %v1722
    %v1784 = vpop.f32.mrf.mxu0
    %v1785 = vadd.f32 0.0, %v1784
    %1786 = vdwg.mxu0
    %1787 = vmatpush.msra.mxu0 %v669
    %1788 = vmatpush.msra.mxu0 %v665
    %1789 = vmatpush.msra.mxu0 %v661
    %1790 = vmatpush.msra.mxu0 %v657
    %1791 = vmatpush.msra.mxu0 %v653
    %1792 = vmatpush.msra.mxu0 %v649
    %1793 = vmatpush.msra.mxu0 %v645
    %1794 = vmatpush.msra.mxu0 %v641
    %1795 = vmatpush.msra.mxu0 %v637
    %1796 = vmatpush.msra.mxu0 %v633
    %1797 = vmatpush.msra.mxu0 %v629
    %1798 = vmatpush.msra.mxu0 %v625
    %1799 = vmatpush.msra.mxu0 %v621
    %1800 = vmatpush.msra.mxu0 %v617
    %1801 = vmatpush.msra.mxu0 %v613
    %1802 = vmatpush.msra.mxu0 %v609
    %1803 = vmatmul.f32.gmra.mxu0 %v1722
    %v1804 = vpop.f32.mrf.mxu0
    %v1805 = vadd.f32 0.0, %v1804
    %1806 = vdwg.mxu0
    %v1807 = vadd.f32 %v1723, %v1745
    %v1808 = vadd.f32 %v1724, %v1765
    %v1809 = vadd.f32 %v1725, %v1785
    %v1810 = vadd.f32 %v1726, %v1805
    %v1811 = vxor.u32 %v1807, 2147483648
    %v1812 = vxor.u32 %v1808, 2147483648
    %v1813 = vxor.u32 %v1809, 2147483648
    %v1814 = vmul.f32 %v1811, 1.442695
    %v1815 = vpow.pop %v1814
    %v1816 = vmul.f32 %v1812, 1.442695
    %v1817 = vpow.pop %v1816
    %v1818 = vmul.f32 %v1813, 1.442695
    %v1819 = vpow.pop %v1818
    %v1820 = vadd.f32 %v1815, 1.0
    %v1821 = vadd.f32 %v1817, 1.0
    %v1822 = vadd.f32 %v1819, 1.0
    %v1823 = vrcp.pop %v1820
    %v1824 = vmul.f32 %v1820, %v1823
    %v1825 = vsub.f32 1.0, %v1824
    %v1826 = vmul.f32 %v1823, %v1825
    %v1827 = vadd.f32 %v1823, %v1826
    %vm1828 = vweird.f32 %v1820
    %vm1829 = vweird.f32 %v1823
    %vm1830 = vmor %vm1828, %vm1829
    %v1831 = vsel %vm1830, %v1823, %v1827
    %v1832 = vand.u32 2147483647, %v1820
    %vm1833 = vcmp.eq.f32.partialorder %v1832, 8.507059e+37
    %v1834 = vand.u32 %v1820, 2147483648
    %v1835 = vor.u32 1.1754944e-38, %v1834
    %v1836 = vsel %vm1833, %v1835, %v1831
    %v1837 = vmul.f32 1.0, %v1836
    %v1838 = vrcp.pop %v1821
    %v1839 = vmul.f32 %v1821, %v1838
    %v1840 = vsub.f32 1.0, %v1839
    %v1841 = vmul.f32 %v1838, %v1840
    %v1842 = vadd.f32 %v1838, %v1841
    %vm1843 = vweird.f32 %v1821
    %vm1844 = vweird.f32 %v1838
    %vm1845 = vmor %vm1843, %vm1844
    %v1846 = vsel %vm1845, %v1838, %v1842
    %v1847 = vand.u32 2147483647, %v1821
    %vm1848 = vcmp.eq.f32.partialorder %v1847, 8.507059e+37
    %v1849 = vand.u32 %v1821, 2147483648
    %v1850 = vor.u32 1.1754944e-38, %v1849
    %v1851 = vsel %vm1848, %v1850, %v1846
    %v1852 = vmul.f32 1.0, %v1851
    %v1853 = vrcp.pop %v1822
    %v1854 = vmul.f32 %v1822, %v1853
    %v1855 = vsub.f32 1.0, %v1854
    %v1856 = vmul.f32 %v1853, %v1855
    %v1857 = vadd.f32 %v1853, %v1856
    %vm1858 = vweird.f32 %v1822
    %vm1859 = vweird.f32 %v1853
    %vm1860 = vmor %vm1858, %vm1859
    %v1861 = vsel %vm1860, %v1853, %v1857
    %v1862 = vand.u32 2147483647, %v1822
    %vm1863 = vcmp.eq.f32.partialorder %v1862, 8.507059e+37
    %v1864 = vand.u32 %v1822, 2147483648
    %v1865 = vor.u32 1.1754944e-38, %v1864
    %v1866 = vsel %vm1863, %v1865, %v1861
    %v1867 = vmul.f32 1.0, %v1866
    %v1868 = vtanh.pop %v1810
    %v1869 = vmul.f32 %v1852, %v1720
    %v1870 = vmul.f32 %v1837, %v1868
    %v1871 = vadd.f32 %v1869, %v1870
    %v1872 = vtanh.pop %v1871
    %v1873 = vmul.f32 %v1867, %v1872
    %v1874 = vld [vmem:[%s0 + $0x38] sm:$0xff]
    %v1875 = vld [vmem:[#allocation3] sm:$0xff]
    %v1876 = vld [vmem:[#allocation3 + $0x8] sm:$0xff]
    %v1877 = vld [vmem:[#allocation3 + $0x10] sm:$0xff]
    %v1878 = vld [vmem:[#allocation3 + $0x18] sm:$0xff]
    %v1879 = vld [vmem:[%s8] sm:$0xf]
    %v1881 = vperm.slane %v1879, 0
    %v1882 = vperm.slane %v1879, 1
    %v1883 = vperm.slane %v1879, 2
    %v1884 = vperm.slane %v1879, 3
    %v1889 = vadd.f32 %v1875, %v1881
    %v1890 = vadd.f32 %v1876, %v1882
    %v1891 = vadd.f32 %v1877, %v1883
    %v1892 = vadd.f32 %v1878, %v1884
    %v1893 = vld [vmem:[%s5] sm:$0xf]
    %1895 = vset.pattern.permute.xlu0 0
    %1896 = vperm.xlu0 %1895, %v1874
    %v1897 = vpop.permute.xlu0 %1896
    %v1900 = vperm.slane %v1893, 0
    %v1901 = vperm.slane %v1893, 1
    %v1902 = vperm.slane %v1893, 2
    %v1903 = vperm.slane %v1893, 3
    %v1908 = vmul.f32 %v1897, %v1900
    %v1909 = vmul.f32 %v1897, %v1901
    %v1910 = vmul.f32 %v1897, %v1902
    %v1911 = vmul.f32 %v1897, %v1903
    %v1912 = vadd.f32 %v1889, %v1908
    %v1913 = vadd.f32 %v1890, %v1909
    %v1914 = vadd.f32 %v1891, %v1910
    %v1915 = vadd.f32 %v1892, %v1911
    %v1916 = vld [vmem:[#allocation10] sm:$0xff]
    %v1917 = vld [vmem:[#allocation10 + $0x8] sm:$0xff]
    %v1918 = vld [vmem:[#allocation10 + $0x10] sm:$0xff]
    %v1919 = vld [vmem:[#allocation10 + $0x18] sm:$0xff]
    %v1920 = vld [vmem:[#allocation10 + $0x20] sm:$0xff]
    %v1921 = vld [vmem:[#allocation10 + $0x28] sm:$0xff]
    %v1922 = vld [vmem:[#allocation10 + $0x30] sm:$0xff]
    %v1923 = vld [vmem:[#allocation10 + $0x38] sm:$0xff]
    %v1924 = vld [vmem:[#allocation10 + $0x40] sm:$0xff]
    %v1925 = vld [vmem:[#allocation10 + $0x48] sm:$0xff]
    %v1926 = vld [vmem:[#allocation10 + $0x50] sm:$0xff]
    %v1927 = vld [vmem:[#allocation10 + $0x58] sm:$0xff]
    %v1928 = vld [vmem:[#allocation10 + $0x60] sm:$0xff]
    %v1929 = vld [vmem:[#allocation10 + $0x68] sm:$0xff]
    %v1930 = vld [vmem:[#allocation10 + $0x70] sm:$0xff]
    %v1931 = vld [vmem:[#allocation10 + $0x78] sm:$0xff]
    %v1932 = vld [vmem:[#allocation10 + $0x80] sm:$0xff]
    %v1933 = vld [vmem:[#allocation10 + $0x88] sm:$0xff]
    %v1934 = vld [vmem:[#allocation10 + $0x90] sm:$0xff]
    %v1935 = vld [vmem:[#allocation10 + $0x98] sm:$0xff]
    %v1936 = vld [vmem:[#allocation10 + $0xa0] sm:$0xff]
    %v1937 = vld [vmem:[#allocation10 + $0xa8] sm:$0xff]
    %v1938 = vld [vmem:[#allocation10 + $0xb0] sm:$0xff]
    %v1939 = vld [vmem:[#allocation10 + $0xb8] sm:$0xff]
    %v1940 = vld [vmem:[#allocation10 + $0xc0] sm:$0xff]
    %v1941 = vld [vmem:[#allocation10 + $0xc8] sm:$0xff]
    %v1942 = vld [vmem:[#allocation10 + $0xd0] sm:$0xff]
    %v1943 = vld [vmem:[#allocation10 + $0xd8] sm:$0xff]
    %v1944 = vld [vmem:[#allocation10 + $0xe0] sm:$0xff]
    %v1945 = vld [vmem:[#allocation10 + $0xe8] sm:$0xff]
    %v1946 = vld [vmem:[#allocation10 + $0xf0] sm:$0xff]
    %v1947 = vld [vmem:[#allocation10 + $0xf8] sm:$0xff]
    %v1948 = vld [vmem:[#allocation10 + $0x100] sm:$0xff]
    %v1949 = vld [vmem:[#allocation10 + $0x108] sm:$0xff]
    %v1950 = vld [vmem:[#allocation10 + $0x110] sm:$0xff]
    %v1951 = vld [vmem:[#allocation10 + $0x118] sm:$0xff]
    %v1952 = vld [vmem:[#allocation10 + $0x120] sm:$0xff]
    %v1953 = vld [vmem:[#allocation10 + $0x128] sm:$0xff]
    %v1954 = vld [vmem:[#allocation10 + $0x130] sm:$0xff]
    %v1955 = vld [vmem:[#allocation10 + $0x138] sm:$0xff]
    %v1956 = vld [vmem:[#allocation10 + $0x140] sm:$0xff]
    %v1957 = vld [vmem:[#allocation10 + $0x148] sm:$0xff]
    %v1958 = vld [vmem:[#allocation10 + $0x150] sm:$0xff]
    %v1959 = vld [vmem:[#allocation10 + $0x158] sm:$0xff]
    %v1960 = vld [vmem:[#allocation10 + $0x160] sm:$0xff]
    %v1961 = vld [vmem:[#allocation10 + $0x168] sm:$0xff]
    %v1962 = vld [vmem:[#allocation10 + $0x170] sm:$0xff]
    %v1963 = vld [vmem:[#allocation10 + $0x178] sm:$0xff]
    %v1964 = vld [vmem:[#allocation10 + $0x180] sm:$0xff]
    %v1965 = vld [vmem:[#allocation10 + $0x188] sm:$0xff]
    %v1966 = vld [vmem:[#allocation10 + $0x190] sm:$0xff]
    %v1967 = vld [vmem:[#allocation10 + $0x198] sm:$0xff]
    %v1968 = vld [vmem:[#allocation10 + $0x1a0] sm:$0xff]
    %v1969 = vld [vmem:[#allocation10 + $0x1a8] sm:$0xff]
    %v1970 = vld [vmem:[#allocation10 + $0x1b0] sm:$0xff]
    %v1971 = vld [vmem:[#allocation10 + $0x1b8] sm:$0xff]
    %v1972 = vld [vmem:[#allocation10 + $0x1c0] sm:$0xff]
    %v1973 = vld [vmem:[#allocation10 + $0x1c8] sm:$0xff]
    %v1974 = vld [vmem:[#allocation10 + $0x1d0] sm:$0xff]
    %v1975 = vld [vmem:[#allocation10 + $0x1d8] sm:$0xff]
    %v1976 = vld [vmem:[#allocation10 + $0x1e0] sm:$0xff]
    %v1977 = vld [vmem:[#allocation10 + $0x1e8] sm:$0xff]
    %v1978 = vld [vmem:[#allocation10 + $0x1f0] sm:$0xff]
    %v1979 = vld [vmem:[#allocation10 + $0x1f8] sm:$0xff]
    %1980 = vmatpush.msra.mxu0 %v1976
    %1981 = vmatpush.msra.mxu0 %v1972
    %1982 = vmatpush.msra.mxu0 %v1968
    %1983 = vmatpush.msra.mxu0 %v1964
    %1984 = vmatpush.msra.mxu0 %v1960
    %1985 = vmatpush.msra.mxu0 %v1956
    %1986 = vmatpush.msra.mxu0 %v1952
    %1987 = vmatpush.msra.mxu0 %v1948
    %1988 = vmatpush.msra.mxu0 %v1944
    %1989 = vmatpush.msra.mxu0 %v1940
    %1990 = vmatpush.msra.mxu0 %v1936
    %1991 = vmatpush.msra.mxu0 %v1932
    %1992 = vmatpush.msra.mxu0 %v1928
    %1993 = vmatpush.msra.mxu0 %v1924
    %1994 = vmatpush.msra.mxu0 %v1920
    %1995 = vmatpush.msra.mxu0 %v1916
    %1996 = vmatmul.f32.gmra.mxu0 %v1873
    %v1997 = vpop.f32.mrf.mxu0
    %v1998 = vadd.f32 0.0, %v1997
    %1999 = vdwg.mxu0
    %2000 = vmatpush.msra.mxu0 %v1977
    %2001 = vmatpush.msra.mxu0 %v1973
    %2002 = vmatpush.msra.mxu0 %v1969
    %2003 = vmatpush.msra.mxu0 %v1965
    %2004 = vmatpush.msra.mxu0 %v1961
    %2005 = vmatpush.msra.mxu0 %v1957
    %2006 = vmatpush.msra.mxu0 %v1953
    %2007 = vmatpush.msra.mxu0 %v1949
    %2008 = vmatpush.msra.mxu0 %v1945
    %2009 = vmatpush.msra.mxu0 %v1941
    %2010 = vmatpush.msra.mxu0 %v1937
    %2011 = vmatpush.msra.mxu0 %v1933
    %2012 = vmatpush.msra.mxu0 %v1929
    %2013 = vmatpush.msra.mxu0 %v1925
    %2014 = vmatpush.msra.mxu0 %v1921
    %2015 = vmatpush.msra.mxu0 %v1917
    %2016 = vmatmul.f32.gmra.mxu0 %v1873
    %v2017 = vpop.f32.mrf.mxu0
    %v2018 = vadd.f32 0.0, %v2017
    %2019 = vdwg.mxu0
    %2020 = vmatpush.msra.mxu0 %v1978
    %2021 = vmatpush.msra.mxu0 %v1974
    %2022 = vmatpush.msra.mxu0 %v1970
    %2023 = vmatpush.msra.mxu0 %v1966
    %2024 = vmatpush.msra.mxu0 %v1962
    %2025 = vmatpush.msra.mxu0 %v1958
    %2026 = vmatpush.msra.mxu0 %v1954
    %2027 = vmatpush.msra.mxu0 %v1950
    %2028 = vmatpush.msra.mxu0 %v1946
    %2029 = vmatpush.msra.mxu0 %v1942
    %2030 = vmatpush.msra.mxu0 %v1938
    %2031 = vmatpush.msra.mxu0 %v1934
    %2032 = vmatpush.msra.mxu0 %v1930
    %2033 = vmatpush.msra.mxu0 %v1926
    %2034 = vmatpush.msra.mxu0 %v1922
    %2035 = vmatpush.msra.mxu0 %v1918
    %2036 = vmatmul.f32.gmra.mxu0 %v1873
    %v2037 = vpop.f32.mrf.mxu0
    %v2038 = vadd.f32 0.0, %v2037
    %2039 = vdwg.mxu0
    %2040 = vmatpush.msra.mxu0 %v1979
    %2041 = vmatpush.msra.mxu0 %v1975
    %2042 = vmatpush.msra.mxu0 %v1971
    %2043 = vmatpush.msra.mxu0 %v1967
    %2044 = vmatpush.msra.mxu0 %v1963
    %2045 = vmatpush.msra.mxu0 %v1959
    %2046 = vmatpush.msra.mxu0 %v1955
    %2047 = vmatpush.msra.mxu0 %v1951
    %2048 = vmatpush.msra.mxu0 %v1947
    %2049 = vmatpush.msra.mxu0 %v1943
    %2050 = vmatpush.msra.mxu0 %v1939
    %2051 = vmatpush.msra.mxu0 %v1935
    %2052 = vmatpush.msra.mxu0 %v1931
    %2053 = vmatpush.msra.mxu0 %v1927
    %2054 = vmatpush.msra.mxu0 %v1923
    %2055 = vmatpush.msra.mxu0 %v1919
    %2056 = vmatmul.f32.gmra.mxu0 %v1873
    %v2057 = vpop.f32.mrf.mxu0
    %v2058 = vadd.f32 0.0, %v2057
    %2059 = vdwg.mxu0
    %v2060 = vadd.f32 %v1912, %v1998
    %v2061 = vadd.f32 %v1913, %v2018
    %v2062 = vadd.f32 %v1914, %v2038
    %v2063 = vadd.f32 %v1915, %v2058
    %v2064 = vxor.u32 %v2060, 2147483648
    %v2065 = vxor.u32 %v2061, 2147483648
    %v2066 = vxor.u32 %v2062, 2147483648
    %v2067 = vmul.f32 %v2064, 1.442695
    %v2068 = vpow.pop %v2067
    %v2069 = vmul.f32 %v2065, 1.442695
    %v2070 = vpow.pop %v2069
    %v2071 = vmul.f32 %v2066, 1.442695
    %v2072 = vpow.pop %v2071
    %v2073 = vadd.f32 %v2068, 1.0
    %v2074 = vadd.f32 %v2070, 1.0
    %v2075 = vadd.f32 %v2072, 1.0
    %v2076 = vrcp.pop %v2073
    %v2077 = vmul.f32 %v2073, %v2076
    %v2078 = vsub.f32 1.0, %v2077
    %v2079 = vmul.f32 %v2076, %v2078
    %v2080 = vadd.f32 %v2076, %v2079
    %vm2081 = vweird.f32 %v2073
    %vm2082 = vweird.f32 %v2076
    %vm2083 = vmor %vm2081, %vm2082
    %v2084 = vsel %vm2083, %v2076, %v2080
    %v2085 = vand.u32 2147483647, %v2073
    %vm2086 = vcmp.eq.f32.partialorder %v2085, 8.507059e+37
    %v2087 = vand.u32 %v2073, 2147483648
    %v2088 = vor.u32 1.1754944e-38, %v2087
    %v2089 = vsel %vm2086, %v2088, %v2084
    %v2090 = vmul.f32 1.0, %v2089
    %v2091 = vrcp.pop %v2074
    %v2092 = vmul.f32 %v2074, %v2091
    %v2093 = vsub.f32 1.0, %v2092
    %v2094 = vmul.f32 %v2091, %v2093
    %v2095 = vadd.f32 %v2091, %v2094
    %vm2096 = vweird.f32 %v2074
    %vm2097 = vweird.f32 %v2091
    %vm2098 = vmor %vm2096, %vm2097
    %v2099 = vsel %vm2098, %v2091, %v2095
    %v2100 = vand.u32 2147483647, %v2074
    %vm2101 = vcmp.eq.f32.partialorder %v2100, 8.507059e+37
    %v2102 = vand.u32 %v2074, 2147483648
    %v2103 = vor.u32 1.1754944e-38, %v2102
    %v2104 = vsel %vm2101, %v2103, %v2099
    %v2105 = vmul.f32 1.0, %v2104
    %v2106 = vrcp.pop %v2075
    %v2107 = vmul.f32 %v2075, %v2106
    %v2108 = vsub.f32 1.0, %v2107
    %v2109 = vmul.f32 %v2106, %v2108
    %v2110 = vadd.f32 %v2106, %v2109
    %vm2111 = vweird.f32 %v2075
    %vm2112 = vweird.f32 %v2106
    %vm2113 = vmor %vm2111, %vm2112
    %v2114 = vsel %vm2113, %v2106, %v2110
    %v2115 = vand.u32 2147483647, %v2075
    %vm2116 = vcmp.eq.f32.partialorder %v2115, 8.507059e+37
    %v2117 = vand.u32 %v2075, 2147483648
    %v2118 = vor.u32 1.1754944e-38, %v2117
    %v2119 = vsel %vm2116, %v2118, %v2114
    %v2120 = vmul.f32 1.0, %v2119
    %v2121 = vtanh.pop %v2063
    %v2122 = vmul.f32 %v2105, %v1871
    %v2123 = vmul.f32 %v2090, %v2121
    %v2124 = vadd.f32 %v2122, %v2123
    %v2125 = vtanh.pop %v2124
    %v2126 = vmul.f32 %v2120, %v2125
    %v2127 = vld [vmem:[#allocation3 + $0x20] sm:$0xff]
    %v2128 = vld [vmem:[#allocation3 + $0x28] sm:$0xff]
    %v2129 = vld [vmem:[#allocation3 + $0x30] sm:$0xff]
    %v2130 = vld [vmem:[#allocation3 + $0x38] sm:$0xff]
    %v2131 = vld [vmem:[%s10] sm:$0xf]
    %v2133 = vperm.slane %v2131, 0
    %v2134 = vperm.slane %v2131, 1
    %v2135 = vperm.slane %v2131, 2
    %v2136 = vperm.slane %v2131, 3
    %v2141 = vadd.f32 %v2127, %v2133
    %v2142 = vadd.f32 %v2128, %v2134
    %v2143 = vadd.f32 %v2129, %v2135
    %v2144 = vadd.f32 %v2130, %v2136
    %v2145 = vld [vmem:[#allocation12] sm:$0xff]
    %v2146 = vld [vmem:[#allocation12 + $0x8] sm:$0xff]
    %v2147 = vld [vmem:[#allocation12 + $0x10] sm:$0xff]
    %v2148 = vld [vmem:[#allocation12 + $0x18] sm:$0xff]
    %v2149 = vld [vmem:[#allocation12 + $0x20] sm:$0xff]
    %v2150 = vld [vmem:[#allocation12 + $0x28] sm:$0xff]
    %v2151 = vld [vmem:[#allocation12 + $0x30] sm:$0xff]
    %v2152 = vld [vmem:[#allocation12 + $0x38] sm:$0xff]
    %v2153 = vld [vmem:[#allocation12 + $0x40] sm:$0xff]
    %v2154 = vld [vmem:[#allocation12 + $0x48] sm:$0xff]
    %v2155 = vld [vmem:[#allocation12 + $0x50] sm:$0xff]
    %v2156 = vld [vmem:[#allocation12 + $0x58] sm:$0xff]
    %v2157 = vld [vmem:[#allocation12 + $0x60] sm:$0xff]
    %v2158 = vld [vmem:[#allocation12 + $0x68] sm:$0xff]
    %v2159 = vld [vmem:[#allocation12 + $0x70] sm:$0xff]
    %v2160 = vld [vmem:[#allocation12 + $0x78] sm:$0xff]
    %v2161 = vld [vmem:[#allocation12 + $0x80] sm:$0xff]
    %v2162 = vld [vmem:[#allocation12 + $0x88] sm:$0xff]
    %v2163 = vld [vmem:[#allocation12 + $0x90] sm:$0xff]
    %v2164 = vld [vmem:[#allocation12 + $0x98] sm:$0xff]
    %v2165 = vld [vmem:[#allocation12 + $0xa0] sm:$0xff]
    %v2166 = vld [vmem:[#allocation12 + $0xa8] sm:$0xff]
    %v2167 = vld [vmem:[#allocation12 + $0xb0] sm:$0xff]
    %v2168 = vld [vmem:[#allocation12 + $0xb8] sm:$0xff]
    %v2169 = vld [vmem:[#allocation12 + $0xc0] sm:$0xff]
    %v2170 = vld [vmem:[#allocation12 + $0xc8] sm:$0xff]
    %v2171 = vld [vmem:[#allocation12 + $0xd0] sm:$0xff]
    %v2172 = vld [vmem:[#allocation12 + $0xd8] sm:$0xff]
    %v2173 = vld [vmem:[#allocation12 + $0xe0] sm:$0xff]
    %v2174 = vld [vmem:[#allocation12 + $0xe8] sm:$0xff]
    %v2175 = vld [vmem:[#allocation12 + $0xf0] sm:$0xff]
    %v2176 = vld [vmem:[#allocation12 + $0xf8] sm:$0xff]
    %v2177 = vld [vmem:[#allocation12 + $0x100] sm:$0xff]
    %v2178 = vld [vmem:[#allocation12 + $0x108] sm:$0xff]
    %v2179 = vld [vmem:[#allocation12 + $0x110] sm:$0xff]
    %v2180 = vld [vmem:[#allocation12 + $0x118] sm:$0xff]
    %v2181 = vld [vmem:[#allocation12 + $0x120] sm:$0xff]
    %v2182 = vld [vmem:[#allocation12 + $0x128] sm:$0xff]
    %v2183 = vld [vmem:[#allocation12 + $0x130] sm:$0xff]
    %v2184 = vld [vmem:[#allocation12 + $0x138] sm:$0xff]
    %v2185 = vld [vmem:[#allocation12 + $0x140] sm:$0xff]
    %v2186 = vld [vmem:[#allocation12 + $0x148] sm:$0xff]
    %v2187 = vld [vmem:[#allocation12 + $0x150] sm:$0xff]
    %v2188 = vld [vmem:[#allocation12 + $0x158] sm:$0xff]
    %v2189 = vld [vmem:[#allocation12 + $0x160] sm:$0xff]
    %v2190 = vld [vmem:[#allocation12 + $0x168] sm:$0xff]
    %v2191 = vld [vmem:[#allocation12 + $0x170] sm:$0xff]
    %v2192 = vld [vmem:[#allocation12 + $0x178] sm:$0xff]
    %v2193 = vld [vmem:[#allocation12 + $0x180] sm:$0xff]
    %v2194 = vld [vmem:[#allocation12 + $0x188] sm:$0xff]
    %v2195 = vld [vmem:[#allocation12 + $0x190] sm:$0xff]
    %v2196 = vld [vmem:[#allocation12 + $0x198] sm:$0xff]
    %v2197 = vld [vmem:[#allocation12 + $0x1a0] sm:$0xff]
    %v2198 = vld [vmem:[#allocation12 + $0x1a8] sm:$0xff]
    %v2199 = vld [vmem:[#allocation12 + $0x1b0] sm:$0xff]
    %v2200 = vld [vmem:[#allocation12 + $0x1b8] sm:$0xff]
    %v2201 = vld [vmem:[#allocation12 + $0x1c0] sm:$0xff]
    %v2202 = vld [vmem:[#allocation12 + $0x1c8] sm:$0xff]
    %v2203 = vld [vmem:[#allocation12 + $0x1d0] sm:$0xff]
    %v2204 = vld [vmem:[#allocation12 + $0x1d8] sm:$0xff]
    %v2205 = vld [vmem:[#allocation12 + $0x1e0] sm:$0xff]
    %v2206 = vld [vmem:[#allocation12 + $0x1e8] sm:$0xff]
    %v2207 = vld [vmem:[#allocation12 + $0x1f0] sm:$0xff]
    %v2208 = vld [vmem:[#allocation12 + $0x1f8] sm:$0xff]
    %2209 = vmatpush.msra.mxu0 %v2205
    %2210 = vmatpush.msra.mxu0 %v2201
    %2211 = vmatpush.msra.mxu0 %v2197
    %2212 = vmatpush.msra.mxu0 %v2193
    %2213 = vmatpush.msra.mxu0 %v2189
    %2214 = vmatpush.msra.mxu0 %v2185
    %2215 = vmatpush.msra.mxu0 %v2181
    %2216 = vmatpush.msra.mxu0 %v2177
    %2217 = vmatpush.msra.mxu0 %v2173
    %2218 = vmatpush.msra.mxu0 %v2169
    %2219 = vmatpush.msra.mxu0 %v2165
    %2220 = vmatpush.msra.mxu0 %v2161
    %2221 = vmatpush.msra.mxu0 %v2157
    %2222 = vmatpush.msra.mxu0 %v2153
    %2223 = vmatpush.msra.mxu0 %v2149
    %2224 = vmatpush.msra.mxu0 %v2145
    %2225 = vmatmul.f32.gmra.mxu0 %v2126
    %v2226 = vpop.f32.mrf.mxu0
    %v2227 = vadd.f32 0.0, %v2226
    %2228 = vdwg.mxu0
    %2229 = vmatpush.msra.mxu0 %v2206
    %2230 = vmatpush.msra.mxu0 %v2202
    %2231 = vmatpush.msra.mxu0 %v2198
    %2232 = vmatpush.msra.mxu0 %v2194
    %2233 = vmatpush.msra.mxu0 %v2190
    %2234 = vmatpush.msra.mxu0 %v2186
    %2235 = vmatpush.msra.mxu0 %v2182
    %2236 = vmatpush.msra.mxu0 %v2178
    %2237 = vmatpush.msra.mxu0 %v2174
    %2238 = vmatpush.msra.mxu0 %v2170
    %2239 = vmatpush.msra.mxu0 %v2166
    %2240 = vmatpush.msra.mxu0 %v2162
    %2241 = vmatpush.msra.mxu0 %v2158
    %2242 = vmatpush.msra.mxu0 %v2154
    %2243 = vmatpush.msra.mxu0 %v2150
    %2244 = vmatpush.msra.mxu0 %v2146
    %2245 = vmatmul.f32.gmra.mxu0 %v2126
    %v2246 = vpop.f32.mrf.mxu0
    %v2247 = vadd.f32 0.0, %v2246
    %2248 = vdwg.mxu0
    %2249 = vmatpush.msra.mxu0 %v2207
    %2250 = vmatpush.msra.mxu0 %v2203
    %2251 = vmatpush.msra.mxu0 %v2199
    %2252 = vmatpush.msra.mxu0 %v2195
    %2253 = vmatpush.msra.mxu0 %v2191
    %2254 = vmatpush.msra.mxu0 %v2187
    %2255 = vmatpush.msra.mxu0 %v2183
    %2256 = vmatpush.msra.mxu0 %v2179
    %2257 = vmatpush.msra.mxu0 %v2175
    %2258 = vmatpush.msra.mxu0 %v2171
    %2259 = vmatpush.msra.mxu0 %v2167
    %2260 = vmatpush.msra.mxu0 %v2163
    %2261 = vmatpush.msra.mxu0 %v2159
    %2262 = vmatpush.msra.mxu0 %v2155
    %2263 = vmatpush.msra.mxu0 %v2151
    %2264 = vmatpush.msra.mxu0 %v2147
    %2265 = vmatmul.f32.gmra.mxu0 %v2126
    %v2266 = vpop.f32.mrf.mxu0
    %v2267 = vadd.f32 0.0, %v2266
    %2268 = vdwg.mxu0
    %2269 = vmatpush.msra.mxu0 %v2208
    %2270 = vmatpush.msra.mxu0 %v2204
    %2271 = vmatpush.msra.mxu0 %v2200
    %2272 = vmatpush.msra.mxu0 %v2196
    %2273 = vmatpush.msra.mxu0 %v2192
    %2274 = vmatpush.msra.mxu0 %v2188
    %2275 = vmatpush.msra.mxu0 %v2184
    %2276 = vmatpush.msra.mxu0 %v2180
    %2277 = vmatpush.msra.mxu0 %v2176
    %2278 = vmatpush.msra.mxu0 %v2172
    %2279 = vmatpush.msra.mxu0 %v2168
    %2280 = vmatpush.msra.mxu0 %v2164
    %2281 = vmatpush.msra.mxu0 %v2160
    %2282 = vmatpush.msra.mxu0 %v2156
    %2283 = vmatpush.msra.mxu0 %v2152
    %2284 = vmatpush.msra.mxu0 %v2148
    %2285 = vmatmul.f32.gmra.mxu0 %v2126
    %v2286 = vpop.f32.mrf.mxu0
    %v2287 = vadd.f32 0.0, %v2286
    %2288 = vdwg.mxu0
    %v2289 = vadd.f32 %v2141, %v2227
    %v2290 = vadd.f32 %v2142, %v2247
    %v2291 = vadd.f32 %v2143, %v2267
    %v2292 = vadd.f32 %v2144, %v2287
    %v2293 = vxor.u32 %v2289, 2147483648
    %v2294 = vxor.u32 %v2290, 2147483648
    %v2295 = vxor.u32 %v2291, 2147483648
    %v2296 = vmul.f32 %v2293, 1.442695
    %v2297 = vpow.pop %v2296
    %v2298 = vmul.f32 %v2294, 1.442695
    %v2299 = vpow.pop %v2298
    %v2300 = vmul.f32 %v2295, 1.442695
    %v2301 = vpow.pop %v2300
    %v2302 = vadd.f32 %v2297, 1.0
    %v2303 = vadd.f32 %v2299, 1.0
    %v2304 = vadd.f32 %v2301, 1.0
    %v2305 = vrcp.pop %v2302
    %v2306 = vmul.f32 %v2302, %v2305
    %v2307 = vsub.f32 1.0, %v2306
    %v2308 = vmul.f32 %v2305, %v2307
    %v2309 = vadd.f32 %v2305, %v2308
    %vm2310 = vweird.f32 %v2302
    %vm2311 = vweird.f32 %v2305
    %vm2312 = vmor %vm2310, %vm2311
    %v2313 = vsel %vm2312, %v2305, %v2309
    %v2314 = vand.u32 2147483647, %v2302
    %vm2315 = vcmp.eq.f32.partialorder %v2314, 8.507059e+37
    %v2316 = vand.u32 %v2302, 2147483648
    %v2317 = vor.u32 1.1754944e-38, %v2316
    %v2318 = vsel %vm2315, %v2317, %v2313
    %v2319 = vmul.f32 1.0, %v2318
    %v2320 = vrcp.pop %v2303
    %v2321 = vmul.f32 %v2303, %v2320
    %v2322 = vsub.f32 1.0, %v2321
    %v2323 = vmul.f32 %v2320, %v2322
    %v2324 = vadd.f32 %v2320, %v2323
    %vm2325 = vweird.f32 %v2303
    %vm2326 = vweird.f32 %v2320
    %vm2327 = vmor %vm2325, %vm2326
    %v2328 = vsel %vm2327, %v2320, %v2324
    %v2329 = vand.u32 2147483647, %v2303
    %vm2330 = vcmp.eq.f32.partialorder %v2329, 8.507059e+37
    %v2331 = vand.u32 %v2303, 2147483648
    %v2332 = vor.u32 1.1754944e-38, %v2331
    %v2333 = vsel %vm2330, %v2332, %v2328
    %v2334 = vmul.f32 1.0, %v2333
    %v2335 = vrcp.pop %v2304
    %v2336 = vmul.f32 %v2304, %v2335
    %v2337 = vsub.f32 1.0, %v2336
    %v2338 = vmul.f32 %v2335, %v2337
    %v2339 = vadd.f32 %v2335, %v2338
    %vm2340 = vweird.f32 %v2304
    %vm2341 = vweird.f32 %v2335
    %vm2342 = vmor %vm2340, %vm2341
    %v2343 = vsel %vm2342, %v2335, %v2339
    %v2344 = vand.u32 2147483647, %v2304
    %vm2345 = vcmp.eq.f32.partialorder %v2344, 8.507059e+37
    %v2346 = vand.u32 %v2304, 2147483648
    %v2347 = vor.u32 1.1754944e-38, %v2346
    %v2348 = vsel %vm2345, %v2347, %v2343
    %v2349 = vmul.f32 1.0, %v2348
    %v2350 = vtanh.pop %v2292
    %v2351 = vmul.f32 %v2334, %v2124
    %v2352 = vmul.f32 %v2319, %v2350
    %v2353 = vadd.f32 %v2351, %v2352
    %v2354 = vtanh.pop %v2353
    %v2355 = vmul.f32 %v2349, %v2354
    %v2356 = vld [vmem:[#allocation3 + $0x40] sm:$0xff]
    %v2357 = vld [vmem:[#allocation3 + $0x48] sm:$0xff]
    %v2358 = vld [vmem:[#allocation3 + $0x50] sm:$0xff]
    %v2359 = vld [vmem:[#allocation3 + $0x58] sm:$0xff]
    %v2360 = vadd.f32 %v2356, %v2133
    %v2361 = vadd.f32 %v2357, %v2134
    %v2362 = vadd.f32 %v2358, %v2135
    %v2363 = vadd.f32 %v2359, %v2136
    %2364 = vmatpush.msra.mxu0 %v2205
    %2365 = vmatpush.msra.mxu0 %v2201
    %2366 = vmatpush.msra.mxu0 %v2197
    %2367 = vmatpush.msra.mxu0 %v2193
    %2368 = vmatpush.msra.mxu0 %v2189
    %2369 = vmatpush.msra.mxu0 %v2185
    %2370 = vmatpush.msra.mxu0 %v2181
    %2371 = vmatpush.msra.mxu0 %v2177
    %2372 = vmatpush.msra.mxu0 %v2173
    %2373 = vmatpush.msra.mxu0 %v2169
    %2374 = vmatpush.msra.mxu0 %v2165
    %2375 = vmatpush.msra.mxu0 %v2161
    %2376 = vmatpush.msra.mxu0 %v2157
    %2377 = vmatpush.msra.mxu0 %v2153
    %2378 = vmatpush.msra.mxu0 %v2149
    %2379 = vmatpush.msra.mxu0 %v2145
    %2380 = vmatmul.f32.gmra.mxu0 %v2355
    %v2381 = vpop.f32.mrf.mxu0
    %v2382 = vadd.f32 0.0, %v2381
    %2383 = vdwg.mxu0
    %2384 = vmatpush.msra.mxu0 %v2206
    %2385 = vmatpush.msra.mxu0 %v2202
    %2386 = vmatpush.msra.mxu0 %v2198
    %2387 = vmatpush.msra.mxu0 %v2194
    %2388 = vmatpush.msra.mxu0 %v2190
    %2389 = vmatpush.msra.mxu0 %v2186
    %2390 = vmatpush.msra.mxu0 %v2182
    %2391 = vmatpush.msra.mxu0 %v2178
    %2392 = vmatpush.msra.mxu0 %v2174
    %2393 = vmatpush.msra.mxu0 %v2170
    %2394 = vmatpush.msra.mxu0 %v2166
    %2395 = vmatpush.msra.mxu0 %v2162
    %2396 = vmatpush.msra.mxu0 %v2158
    %2397 = vmatpush.msra.mxu0 %v2154
    %2398 = vmatpush.msra.mxu0 %v2150
    %2399 = vmatpush.msra.mxu0 %v2146
    %2400 = vmatmul.f32.gmra.mxu0 %v2355
    %v2401 = vpop.f32.mrf.mxu0
    %v2402 = vadd.f32 0.0, %v2401
    %2403 = vdwg.mxu0
    %2404 = vmatpush.msra.mxu0 %v2207
    %2405 = vmatpush.msra.mxu0 %v2203
    %2406 = vmatpush.msra.mxu0 %v2199
    %2407 = vmatpush.msra.mxu0 %v2195
    %2408 = vmatpush.msra.mxu0 %v2191
    %2409 = vmatpush.msra.mxu0 %v2187
    %2410 = vmatpush.msra.mxu0 %v2183
    %2411 = vmatpush.msra.mxu0 %v2179
    %2412 = vmatpush.msra.mxu0 %v2175
    %2413 = vmatpush.msra.mxu0 %v2171
    %2414 = vmatpush.msra.mxu0 %v2167
    %2415 = vmatpush.msra.mxu0 %v2163
    %2416 = vmatpush.msra.mxu0 %v2159
    %2417 = vmatpush.msra.mxu0 %v2155
    %2418 = vmatpush.msra.mxu0 %v2151
    %2419 = vmatpush.msra.mxu0 %v2147
    %2420 = vmatmul.f32.gmra.mxu0 %v2355
    %v2421 = vpop.f32.mrf.mxu0
    %v2422 = vadd.f32 0.0, %v2421
    %2423 = vdwg.mxu0
    %2424 = vmatpush.msra.mxu0 %v2208
    %2425 = vmatpush.msra.mxu0 %v2204
    %2426 = vmatpush.msra.mxu0 %v2200
    %2427 = vmatpush.msra.mxu0 %v2196
    %2428 = vmatpush.msra.mxu0 %v2192
    %2429 = vmatpush.msra.mxu0 %v2188
    %2430 = vmatpush.msra.mxu0 %v2184
    %2431 = vmatpush.msra.mxu0 %v2180
    %2432 = vmatpush.msra.mxu0 %v2176
    %2433 = vmatpush.msra.mxu0 %v2172
    %2434 = vmatpush.msra.mxu0 %v2168
    %2435 = vmatpush.msra.mxu0 %v2164
    %2436 = vmatpush.msra.mxu0 %v2160
    %2437 = vmatpush.msra.mxu0 %v2156
    %2438 = vmatpush.msra.mxu0 %v2152
    %2439 = vmatpush.msra.mxu0 %v2148
    %2440 = vmatmul.f32.gmra.mxu0 %v2355
    %v2441 = vpop.f32.mrf.mxu0
    %v2442 = vadd.f32 0.0, %v2441
    %2443 = vdwg.mxu0
    %v2444 = vadd.f32 %v2360, %v2382
    %v2445 = vadd.f32 %v2361, %v2402
    %v2446 = vadd.f32 %v2362, %v2422
    %v2447 = vadd.f32 %v2363, %v2442
    %v2448 = vxor.u32 %v2444, 2147483648
    %v2449 = vxor.u32 %v2445, 2147483648
    %v2450 = vxor.u32 %v2446, 2147483648
    %v2451 = vmul.f32 %v2448, 1.442695
    %v2452 = vpow.pop %v2451
    %v2453 = vmul.f32 %v2449, 1.442695
    %v2454 = vpow.pop %v2453
    %v2455 = vmul.f32 %v2450, 1.442695
    %v2456 = vpow.pop %v2455
    %v2457 = vadd.f32 %v2452, 1.0
    %v2458 = vadd.f32 %v2454, 1.0
    %v2459 = vadd.f32 %v2456, 1.0
    %v2460 = vrcp.pop %v2457
    %v2461 = vmul.f32 %v2457, %v2460
    %v2462 = vsub.f32 1.0, %v2461
    %v2463 = vmul.f32 %v2460, %v2462
    %v2464 = vadd.f32 %v2460, %v2463
    %vm2465 = vweird.f32 %v2457
    %vm2466 = vweird.f32 %v2460
    %vm2467 = vmor %vm2465, %vm2466
    %v2468 = vsel %vm2467, %v2460, %v2464
    %v2469 = vand.u32 2147483647, %v2457
    %vm2470 = vcmp.eq.f32.partialorder %v2469, 8.507059e+37
    %v2471 = vand.u32 %v2457, 2147483648
    %v2472 = vor.u32 1.1754944e-38, %v2471
    %v2473 = vsel %vm2470, %v2472, %v2468
    %v2474 = vmul.f32 1.0, %v2473
    %v2475 = vrcp.pop %v2458
    %v2476 = vmul.f32 %v2458, %v2475
    %v2477 = vsub.f32 1.0, %v2476
    %v2478 = vmul.f32 %v2475, %v2477
    %v2479 = vadd.f32 %v2475, %v2478
    %vm2480 = vweird.f32 %v2458
    %vm2481 = vweird.f32 %v2475
    %vm2482 = vmor %vm2480, %vm2481
    %v2483 = vsel %vm2482, %v2475, %v2479
    %v2484 = vand.u32 2147483647, %v2458
    %vm2485 = vcmp.eq.f32.partialorder %v2484, 8.507059e+37
    %v2486 = vand.u32 %v2458, 2147483648
    %v2487 = vor.u32 1.1754944e-38, %v2486
    %v2488 = vsel %vm2485, %v2487, %v2483
    %v2489 = vmul.f32 1.0, %v2488
    %v2490 = vrcp.pop %v2459
    %v2491 = vmul.f32 %v2459, %v2490
    %v2492 = vsub.f32 1.0, %v2491
    %v2493 = vmul.f32 %v2490, %v2492
    %v2494 = vadd.f32 %v2490, %v2493
    %vm2495 = vweird.f32 %v2459
    %vm2496 = vweird.f32 %v2490
    %vm2497 = vmor %vm2495, %vm2496
    %v2498 = vsel %vm2497, %v2490, %v2494
    %v2499 = vand.u32 2147483647, %v2459
    %vm2500 = vcmp.eq.f32.partialorder %v2499, 8.507059e+37
    %v2501 = vand.u32 %v2459, 2147483648
    %v2502 = vor.u32 1.1754944e-38, %v2501
    %v2503 = vsel %vm2500, %v2502, %v2498
    %v2504 = vmul.f32 1.0, %v2503
    %v2505 = vtanh.pop %v2447
    %v2506 = vmul.f32 %v2489, %v2353
    %v2507 = vmul.f32 %v2474, %v2505
    %v2508 = vadd.f32 %v2506, %v2507
    %v2509 = vtanh.pop %v2508
    %v2510 = vmul.f32 %v2504, %v2509
    %v2511 = vld [vmem:[#allocation3 + $0x60] sm:$0xff]
    %v2512 = vld [vmem:[#allocation3 + $0x68] sm:$0xff]
    %v2513 = vld [vmem:[#allocation3 + $0x70] sm:$0xff]
    %v2514 = vld [vmem:[#allocation3 + $0x78] sm:$0xff]
    %v2515 = vadd.f32 %v2511, %v2133
    %v2516 = vadd.f32 %v2512, %v2134
    %v2517 = vadd.f32 %v2513, %v2135
    %v2518 = vadd.f32 %v2514, %v2136
    %2519 = vmatpush.msra.mxu0 %v2205
    %2520 = vmatpush.msra.mxu0 %v2201
    %2521 = vmatpush.msra.mxu0 %v2197
    %2522 = vmatpush.msra.mxu0 %v2193
    %2523 = vmatpush.msra.mxu0 %v2189
    %2524 = vmatpush.msra.mxu0 %v2185
    %2525 = vmatpush.msra.mxu0 %v2181
    %2526 = vmatpush.msra.mxu0 %v2177
    %2527 = vmatpush.msra.mxu0 %v2173
    %2528 = vmatpush.msra.mxu0 %v2169
    %2529 = vmatpush.msra.mxu0 %v2165
    %2530 = vmatpush.msra.mxu0 %v2161
    %2531 = vmatpush.msra.mxu0 %v2157
    %2532 = vmatpush.msra.mxu0 %v2153
    %2533 = vmatpush.msra.mxu0 %v2149
    %2534 = vmatpush.msra.mxu0 %v2145
    %2535 = vmatmul.f32.gmra.mxu0 %v2510
    %v2536 = vpop.f32.mrf.mxu0
    %v2537 = vadd.f32 0.0, %v2536
    %2538 = vdwg.mxu0
    %2539 = vmatpush.msra.mxu0 %v2206
    %2540 = vmatpush.msra.mxu0 %v2202
    %2541 = vmatpush.msra.mxu0 %v2198
    %2542 = vmatpush.msra.mxu0 %v2194
    %2543 = vmatpush.msra.mxu0 %v2190
    %2544 = vmatpush.msra.mxu0 %v2186
    %2545 = vmatpush.msra.mxu0 %v2182
    %2546 = vmatpush.msra.mxu0 %v2178
    %2547 = vmatpush.msra.mxu0 %v2174
    %2548 = vmatpush.msra.mxu0 %v2170
    %2549 = vmatpush.msra.mxu0 %v2166
    %2550 = vmatpush.msra.mxu0 %v2162
    %2551 = vmatpush.msra.mxu0 %v2158
    %2552 = vmatpush.msra.mxu0 %v2154
    %2553 = vmatpush.msra.mxu0 %v2150
    %2554 = vmatpush.msra.mxu0 %v2146
    %2555 = vmatmul.f32.gmra.mxu0 %v2510
    %v2556 = vpop.f32.mrf.mxu0
    %v2557 = vadd.f32 0.0, %v2556
    %2558 = vdwg.mxu0
    %2559 = vmatpush.msra.mxu0 %v2207
    %2560 = vmatpush.msra.mxu0 %v2203
    %2561 = vmatpush.msra.mxu0 %v2199
    %2562 = vmatpush.msra.mxu0 %v2195
    %2563 = vmatpush.msra.mxu0 %v2191
    %2564 = vmatpush.msra.mxu0 %v2187
    %2565 = vmatpush.msra.mxu0 %v2183
    %2566 = vmatpush.msra.mxu0 %v2179
    %2567 = vmatpush.msra.mxu0 %v2175
    %2568 = vmatpush.msra.mxu0 %v2171
    %2569 = vmatpush.msra.mxu0 %v2167
    %2570 = vmatpush.msra.mxu0 %v2163
    %2571 = vmatpush.msra.mxu0 %v2159
    %2572 = vmatpush.msra.mxu0 %v2155
    %2573 = vmatpush.msra.mxu0 %v2151
    %2574 = vmatpush.msra.mxu0 %v2147
    %2575 = vmatmul.f32.gmra.mxu0 %v2510
    %v2576 = vpop.f32.mrf.mxu0
    %v2577 = vadd.f32 0.0, %v2576
    %2578 = vdwg.mxu0
    %2579 = vmatpush.msra.mxu0 %v2208
    %2580 = vmatpush.msra.mxu0 %v2204
    %2581 = vmatpush.msra.mxu0 %v2200
    %2582 = vmatpush.msra.mxu0 %v2196
    %2583 = vmatpush.msra.mxu0 %v2192
    %2584 = vmatpush.msra.mxu0 %v2188
    %2585 = vmatpush.msra.mxu0 %v2184
    %2586 = vmatpush.msra.mxu0 %v2180
    %2587 = vmatpush.msra.mxu0 %v2176
    %2588 = vmatpush.msra.mxu0 %v2172
    %2589 = vmatpush.msra.mxu0 %v2168
    %2590 = vmatpush.msra.mxu0 %v2164
    %2591 = vmatpush.msra.mxu0 %v2160
    %2592 = vmatpush.msra.mxu0 %v2156
    %2593 = vmatpush.msra.mxu0 %v2152
    %2594 = vmatpush.msra.mxu0 %v2148
    %2595 = vmatmul.f32.gmra.mxu0 %v2510
    %v2596 = vpop.f32.mrf.mxu0
    %v2597 = vadd.f32 0.0, %v2596
    %2598 = vdwg.mxu0
    %v2599 = vadd.f32 %v2515, %v2537
    %v2600 = vadd.f32 %v2516, %v2557
    %v2601 = vadd.f32 %v2517, %v2577
    %v2602 = vadd.f32 %v2518, %v2597
    %v2603 = vxor.u32 %v2599, 2147483648
    %v2604 = vxor.u32 %v2600, 2147483648
    %v2605 = vxor.u32 %v2601, 2147483648
    %v2606 = vmul.f32 %v2603, 1.442695
    %v2607 = vpow.pop %v2606
    %v2608 = vmul.f32 %v2604, 1.442695
    %v2609 = vpow.pop %v2608
    %v2610 = vmul.f32 %v2605, 1.442695
    %v2611 = vpow.pop %v2610
    %v2612 = vadd.f32 %v2607, 1.0
    %v2613 = vadd.f32 %v2609, 1.0
    %v2614 = vadd.f32 %v2611, 1.0
    %v2615 = vrcp.pop %v2612
    %v2616 = vmul.f32 %v2612, %v2615
    %v2617 = vsub.f32 1.0, %v2616
    %v2618 = vmul.f32 %v2615, %v2617
    %v2619 = vadd.f32 %v2615, %v2618
    %vm2620 = vweird.f32 %v2612
    %vm2621 = vweird.f32 %v2615
    %vm2622 = vmor %vm2620, %vm2621
    %v2623 = vsel %vm2622, %v2615, %v2619
    %v2624 = vand.u32 2147483647, %v2612
    %vm2625 = vcmp.eq.f32.partialorder %v2624, 8.507059e+37
    %v2626 = vand.u32 %v2612, 2147483648
    %v2627 = vor.u32 1.1754944e-38, %v2626
    %v2628 = vsel %vm2625, %v2627, %v2623
    %v2629 = vmul.f32 1.0, %v2628
    %v2630 = vrcp.pop %v2613
    %v2631 = vmul.f32 %v2613, %v2630
    %v2632 = vsub.f32 1.0, %v2631
    %v2633 = vmul.f32 %v2630, %v2632
    %v2634 = vadd.f32 %v2630, %v2633
    %vm2635 = vweird.f32 %v2613
    %vm2636 = vweird.f32 %v2630
    %vm2637 = vmor %vm2635, %vm2636
    %v2638 = vsel %vm2637, %v2630, %v2634
    %v2639 = vand.u32 2147483647, %v2613
    %vm2640 = vcmp.eq.f32.partialorder %v2639, 8.507059e+37
    %v2641 = vand.u32 %v2613, 2147483648
    %v2642 = vor.u32 1.1754944e-38, %v2641
    %v2643 = vsel %vm2640, %v2642, %v2638
    %v2644 = vmul.f32 1.0, %v2643
    %v2645 = vrcp.pop %v2614
    %v2646 = vmul.f32 %v2614, %v2645
    %v2647 = vsub.f32 1.0, %v2646
    %v2648 = vmul.f32 %v2645, %v2647
    %v2649 = vadd.f32 %v2645, %v2648
    %vm2650 = vweird.f32 %v2614
    %vm2651 = vweird.f32 %v2645
    %vm2652 = vmor %vm2650, %vm2651
    %v2653 = vsel %vm2652, %v2645, %v2649
    %v2654 = vand.u32 2147483647, %v2614
    %vm2655 = vcmp.eq.f32.partialorder %v2654, 8.507059e+37
    %v2656 = vand.u32 %v2614, 2147483648
    %v2657 = vor.u32 1.1754944e-38, %v2656
    %v2658 = vsel %vm2655, %v2657, %v2653
    %v2659 = vmul.f32 1.0, %v2658
    %v2660 = vtanh.pop %v2602
    %v2661 = vmul.f32 %v2644, %v2508
    %v2662 = vmul.f32 %v2629, %v2660
    %v2663 = vadd.f32 %v2661, %v2662
    %v2664 = vtanh.pop %v2663
    %v2665 = vmul.f32 %v2659, %v2664
    %v2666 = vld [vmem:[%s11] sm:$0xff]
    %v2667 = vld [vmem:[%s11 + $0x8] sm:$0xff]
    %v2668 = vld [vmem:[%s11 + $0x10] sm:$0xff]
    %v2669 = vld [vmem:[%s11 + $0x18] sm:$0xff]
    %v2670 = vld [vmem:[%s11 + $0x20] sm:$0xff]
    %v2671 = vld [vmem:[%s11 + $0x28] sm:$0xff]
    %v2672 = vld [vmem:[%s11 + $0x30] sm:$0xff]
    %v2673 = vld [vmem:[%s11 + $0x38] sm:$0xff]
    %v2674 = vld [vmem:[%s11 + $0x40] sm:$0xff]
    %v2675 = vld [vmem:[%s11 + $0x48] sm:$0xff]
    %v2676 = vld [vmem:[%s11 + $0x50] sm:$0xff]
    %v2677 = vld [vmem:[%s11 + $0x58] sm:$0xff]
    %v2678 = vld [vmem:[%s11 + $0x60] sm:$0xff]
    %v2679 = vld [vmem:[%s11 + $0x68] sm:$0xff]
    %v2680 = vld [vmem:[%s11 + $0x70] sm:$0xff]
    %v2681 = vld [vmem:[%s11 + $0x78] sm:$0xff]
    %v2682 = vld [vmem:[#allocation4] sm:$0x1]
    %v2684 = vperm.slane %v2682, 0
    %2686 = vmatpush.msra.mxu0 %v2681
    %2687 = vmatpush.msra.mxu0 %v2680
    %2688 = vmatpush.msra.mxu0 %v2679
    %2689 = vmatpush.msra.mxu0 %v2678
    %2690 = vmatpush.msra.mxu0 %v2677
    %2691 = vmatpush.msra.mxu0 %v2676
    %2692 = vmatpush.msra.mxu0 %v2675
    %2693 = vmatpush.msra.mxu0 %v2674
    %2694 = vmatpush.msra.mxu0 %v2673
    %2695 = vmatpush.msra.mxu0 %v2672
    %2696 = vmatpush.msra.mxu0 %v2671
    %2697 = vmatpush.msra.mxu0 %v2670
    %2698 = vmatpush.msra.mxu0 %v2669
    %2699 = vmatpush.msra.mxu0 %v2668
    %2700 = vmatpush.msra.mxu0 %v2667
    %2701 = vmatpush.msra.mxu0 %v2666
    %2702 = vmatmul.f32.gmra.mxu0 %v2126
    %v2703 = vpop.f32.mrf.mxu0
    %v2704 = vadd.f32 %v2684, %v2703
    %2705 = vdwg.mxu0
    %2706 = vmatpush.msra.mxu0 %v2681
    %2707 = vmatpush.msra.mxu0 %v2680
    %2708 = vmatpush.msra.mxu0 %v2679
    %2709 = vmatpush.msra.mxu0 %v2678
    %2710 = vmatpush.msra.mxu0 %v2677
    %2711 = vmatpush.msra.mxu0 %v2676
    %2712 = vmatpush.msra.mxu0 %v2675
    %2713 = vmatpush.msra.mxu0 %v2674
    %2714 = vmatpush.msra.mxu0 %v2673
    %2715 = vmatpush.msra.mxu0 %v2672
    %2716 = vmatpush.msra.mxu0 %v2671
    %2717 = vmatpush.msra.mxu0 %v2670
    %2718 = vmatpush.msra.mxu0 %v2669
    %2719 = vmatpush.msra.mxu0 %v2668
    %2720 = vmatpush.msra.mxu0 %v2667
    %2721 = vmatpush.msra.mxu0 %v2666
    %2722 = vmatmul.f32.gmra.mxu0 %v2355
    %v2723 = vpop.f32.mrf.mxu0
    %v2724 = vadd.f32 %v2684, %v2723
    %2725 = vdwg.mxu0
    %2726 = vmatpush.msra.mxu0 %v2681
    %2727 = vmatpush.msra.mxu0 %v2680
    %2728 = vmatpush.msra.mxu0 %v2679
    %2729 = vmatpush.msra.mxu0 %v2678
    %2730 = vmatpush.msra.mxu0 %v2677
    %2731 = vmatpush.msra.mxu0 %v2676
    %2732 = vmatpush.msra.mxu0 %v2675
    %2733 = vmatpush.msra.mxu0 %v2674
    %2734 = vmatpush.msra.mxu0 %v2673
    %2735 = vmatpush.msra.mxu0 %v2672
    %2736 = vmatpush.msra.mxu0 %v2671
    %2737 = vmatpush.msra.mxu0 %v2670
    %2738 = vmatpush.msra.mxu0 %v2669
    %2739 = vmatpush.msra.mxu0 %v2668
    %2740 = vmatpush.msra.mxu0 %v2667
    %2741 = vmatpush.msra.mxu0 %v2666
    %2742 = vmatmul.f32.gmra.mxu0 %v2510
    %v2743 = vpop.f32.mrf.mxu0
    %v2744 = vadd.f32 %v2684, %v2743
    %2745 = vdwg.mxu0
    %2746 = vmatpush.msra.mxu0 %v2681
    %2747 = vmatpush.msra.mxu0 %v2680
    %2748 = vmatpush.msra.mxu0 %v2679
    %2749 = vmatpush.msra.mxu0 %v2678
    %2750 = vmatpush.msra.mxu0 %v2677
    %2751 = vmatpush.msra.mxu0 %v2676
    %2752 = vmatpush.msra.mxu0 %v2675
    %2753 = vmatpush.msra.mxu0 %v2674
    %2754 = vmatpush.msra.mxu0 %v2673
    %2755 = vmatpush.msra.mxu0 %v2672
    %2756 = vmatpush.msra.mxu0 %v2671
    %2757 = vmatpush.msra.mxu0 %v2670
    %2758 = vmatpush.msra.mxu0 %v2669
    %2759 = vmatpush.msra.mxu0 %v2668
    %2760 = vmatpush.msra.mxu0 %v2667
    %2761 = vmatpush.msra.mxu0 %v2666
    %2762 = vmatmul.f32.gmra.mxu0 %v2665
    %v2763 = vpop.f32.mrf.mxu0
    %v2764 = vadd.f32 %v2684, %v2763
    %2765 = vdwg.mxu0
    %2767 = vrot.lane.b32.xlu0 %v2724, 1
    %v2768 = vpop.permute.xlu0 %2767
    %2771 = vrot.lane.b32.xlu0 %v2744, 2
    %v2772 = vpop.permute.xlu0 %2771
    %2775 = vrot.lane.b32.xlu0 %v2764, 3
    %v2776 = vpop.permute.xlu0 %2775
    %vm2778 = vcmask 7168
    %v2779 = vsel %vm2778, %v2704, %v2768
    %vm2780 = vcmask 15360
    %v2781 = vsel %vm2780, %v2779, %v2772
    %vm2782 = vcmask 23552
    %v2783 = vsel %vm2782, %v2781, %v2776
    %vm2784 = vcmask 31744
    %2785 = vst.msk [vmem:[%s13] sm:$0xff] %vm2784, %v2783
    // Predicated region
    $region74: #{tpu_custom_call.1} parent=1 // pred_check
      _
    $region75: #{tpu_custom_call.1} parent=1 // pred_check_branch
      %2787 = sbr.rel (0) target = $region77
    $region76: #{tpu_custom_call.1} parent=1 // pred_region
      _
    $region77: #{tpu_custom_call.1} parent=1 // pred_fallthru
      _
    // Predicated region
    $region78: #{tpu_custom_call.1} parent=1 // pred_check
      _
    $region79: #{tpu_custom_call.1} parent=1 // pred_check_branch
      %2789 = sbr.rel (0) target = $region81
    $region80: #{tpu_custom_call.1} parent=1 // pred_region
      _
    $region81: #{tpu_custom_call.1} parent=1 // pred_fallthru
      _
    %2790 = vsyncpa [#allocation6], 1
    %2791 = vsyncpa [#allocation8], 1
    %2792 = vsyncpa [#allocation11], 1

</llo_original>
